<compile_context>
chip_gen: v7x
topology: tpu7x:2x2x1
jax: 0.10.0
libtpu: 0.0.40
codegen_flags: <defaults>
</compile_context>

<pallas_src>
import functools

import jax
import jax.numpy as jnp
import numpy as np
from jax.experimental import pallas as pl
from jax.experimental.pallas import tpu as pltpu


_VMEM_LIMIT = 64 * 1024 * 1024  # >= scoped default on all gens, <= v7x physical.


def _round_up(n, m):
    return ((n + m - 1) // m) * m


def _full_spec(shape):
    nd = len(shape)
    return pl.BlockSpec(tuple(shape), lambda i, _nd=nd: (0,) * _nd)


def _batch_spec(c, l):
    # Batch dim squeezed out -> kernel sees a 2-D (C, L) ref.
    return pl.BlockSpec((None, c, l), lambda i: (i, 0, 0))


# ----------------------------------- kernel ------------------------------------ #

def _global_residual_kernel(*args, n_blocks, n_layer, n_ch, growth, c_in,
                            lead, Wp, HWp, HWpad, Lbuf):
    x_ref = args[0]
    sfe1_w_ref, sfe1_b_ref = args[1], args[2]
    dw_refs = args[3:3 + n_layer]
    (lffw_ref, lffb_ref, g1w_ref, g1b_ref,
     g2w_ref, g2b_ref, mask_ref) = args[3 + n_layer:10 + n_layer]
    o_ref = args[10 + n_layer]
    t_ref, s_ref, gacc_ref = args[11 + n_layer:14 + n_layer]

    cmax = n_ch + n_layer * growth
    p0 = lead + Wp + 1                       # 128-aligned interior slab start in t_ref/x_ref

    mask = mask_ref[...]                     # (1, HWpad) f32; 0 on wrap columns & padded tail

    # ------------------------------ helpers (static indices) ------------------- #
    def stage(vals_f32, row0):
        """Masked, aligned, full-width interior store into t_ref rows [row0, row0+nc)."""
        nc = vals_f32.shape[0]
        t_ref[row0:row0 + nc, p0:p0 + HWpad] = (vals_f32 * mask).astype(t_ref.dtype)

    def tap_stack(src_ref, row0, nc, dst_base):
        """Copy the 9 shifted (tap) views of padded-flat rows into the stacked buffer."""
        for k in range(9):
            off = lead + (k // 3) * Wp + (k % 3)
            s_ref[dst_base + k * nc:dst_base + (k + 1) * nc, :] = \
                src_ref[row0:row0 + nc, off:off + HWpad]

    # Border/tail margins of the padded-flat feature buffer must be zero (the shifted tap
    # reads consume them).  The interior [p0, p0+HWpad) is fully rewritten (masked) every
    # grid step, so only the small aligned margins are re-zeroed here; doing it every step
    # keeps "parallel" batch sharding across TensorCores correct (per-core scratch).
    t_ref[:, 0:p0] = jnp.zeros((cmax, p0), t_ref.dtype)
    tail = Lbuf - (p0 + HWpad)
    if tail > 0:
        t_ref[:, p0 + HWpad:Lbuf] = jnp.zeros((cmax, tail), t_ref.dtype)

    # ---- sfe1: 3x3 conv + bias as one fused-K matmul over the 9 taps of x ---- #
    tap_stack(x_ref, 0, c_in, 0)
    h = jnp.dot(sfe1_w_ref[...], s_ref[0:9 * c_in, :],
                preferred_element_type=jnp.float32)
    h = h + sfe1_b_ref[...].astype(jnp.float32)
    stage(h, 0)                              # t_ref rows [0, n_ch) = h (bf16, masked)
    tap_stack(t_ref, 0, n_ch, 0)             # stacked segment 0 for block 0

    # ---- residual blocks (fully resident in VMEM) ----------------------------- #
    for i in range(n_blocks):
        for j in range(n_layer):
            cin = n_ch + j * growth
            # DenseConv: 3x3 (no bias) + ReLU, K = 9*cin fused matmul.
            d = jnp.dot(dw_refs[j][i], s_ref[0:9 * cin, :],
                        preferred_element_type=jnp.float32)
            d = jnp.maximum(d, 0.0)
            stage(d, cin)                    # torch.cat == append rows to t_ref
            tap_stack(t_ref, cin, growth, 9 * cin)

        # lff: 1x1 conv + bias over all features, then residual add with block input.
        feat = t_ref[0:cmax, p0:p0 + HWpad]                      # (cmax, HWpad) bf16
        lff = jnp.dot(lffw_ref[i], feat, preferred_element_type=jnp.float32)
        lff = lff + lffb_ref[i].astype(jnp.float32)
        h_new = lff + feat[0:n_ch, :].astype(jnp.float32)
        stage(h_new, 0)

        # Online gff1 accumulation on the bf16-rounded block output (kills HBM concat).
        h_bf = t_ref[0:n_ch, p0:p0 + HWpad]
        contrib = jnp.dot(g1w_ref[i], h_bf, preferred_element_type=jnp.float32)
        if i == 0:
            gacc_ref[...] = contrib
        else:
            gacc_ref[...] = gacc_ref[...] + contrib

        if i < n_blocks - 1:
            tap_stack(t_ref, 0, n_ch, 0)     # stacked segment 0 for the next block

    # ---- gff: 1x1 bias epilogue, then 3x3 conv + bias + global residual ------- #
    g = gacc_ref[...] + g1b_ref[...].astype(jnp.float32)
    stage(g, 0)                              # reuse rows [0, n_ch) of t_ref
    tap_stack(t_ref, 0, n_ch, 0)
    out = jnp.dot(g2w_ref[...], s_ref[0:9 * n_ch, :],
                  preferred_element_type=jnp.float32)
    out = out + g2b_ref[...].astype(jnp.float32)
    out = out + x_ref[0:c_in, p0:p0 + HWpad].astype(jnp.float32)
    o_ref[...] = (out * mask).astype(o_ref.dtype)                # single lane-dense store


# ------------------------------ layout / weight glue ---------------------------- #

def _prep_w3_seg(w, seg_sizes):
    """PyTorch OIHW (Cout, Cin, 3, 3) -> (Cout, 9*Cin) bf16.

    Column order matches the in-kernel tap-stacked buffer: channel segments in order,
    tap-major (k = dh*3 + dw) within each segment.
    """
    cout = w.shape[0]
    parts, c0 = [], 0
    for sc in seg_sizes:
        blk = jnp.transpose(w[:, c0:c0 + sc, :, :], (0, 2, 3, 1))   # (Cout, 3, 3, sc)
        parts.append(blk.reshape(cout, 9 * sc))
        c0 += sc
    return jnp.concatenate(parts, axis=1).astype(jnp.bfloat16)


def _prep_w1(w):
    """(Cout, Cin, 1, 1) -> (Cout, Cin) bf16."""
    return w[:, :, 0, 0].astype(jnp.bfloat16)


def _prep_b(b):
    """(Cout,) -> (Cout, 1) bf16 (broadcasts over the spatial lane axis)."""
    return b.reshape(-1, 1).astype(jnp.bfloat16)


def _to_padded_flat(x, lead, lbuf):
    """(B, C, H, W) -> (B, C, Lbuf): zero border pad, row-major flatten, lead/tail zeros."""
    B, C, H, W = x.shape
    Hp, Wp = H + 2, W + 2
    xp = jnp.pad(x, ((0, 0), (0, 0), (1, 1), (1, 1)))
    flat = xp.reshape(B, C, Hp * Wp)
    return jnp.pad(flat, ((0, 0), (0, 0), (lead, lbuf - lead - Hp * Wp)))


# ----------------------------- GlobalResidual forward --------------------------- #

def global_residual_forward_pallas(x, params):
    """x: (B, C_in, H, W) float32 (NCHW, like PyTorch). Returns (B, C_in, H, W) float32."""
    B, c_in, H, W = x.shape
    n_ch = params["sfe1_w"].shape[0]
    n_blocks = len(params["blocks"])
    n_layer = len(params["blocks"][0]["dense_ws"])
    growth = params["blocks"][0]["dense_ws"][0].shape[0]
    cmax = n_ch + n_layer * growth

    Wp = W + 2
    HWp = H * Wp
    HWpad = _round_up(HWp, 128)
    lead = (-(Wp + 1)) % 128                 # 128-aligns the interior slab start
    Lbuf = _round_up(lead + 2 * Wp + 2 + HWpad, 128)

    # f32 lane mask: zero the wrapped columns (p % Wp >= W) and the padded tail.
    pos = jnp.arange(HWpad, dtype=jnp.int32)
    mask = (((pos % Wp) < W) & (pos < HWp)).astype(jnp.float32).reshape(1, HWpad)

    x_flat = _to_padded_flat(x.astype(jnp.bfloat16), lead, Lbuf)   # (B, c_in, Lbuf) bf16

    # Weights pre-permuted / stacked host-side (one array per role).
    sfe1_w = _prep_w3_seg(params["sfe1_w"], [c_in])                # (n_ch, 9*c_in)
    sfe1_b = _prep_b(params["sfe1_b"])
    dense_ws = []
    for j in range(n_layer):
        segs = [n_ch] + [growth] * j
        dense_ws.append(jnp.stack([_prep_w3_seg(blk["dense_ws"][j], segs)
                                   for blk in params["blocks"]]))  # (n_blocks, growth, 9*cin_j)
    lff_w = jnp.stack([_prep_w1(blk["lff_w"]) for blk in params["blocks"]])   # (nb, n_ch, cmax)
    lff_b = jnp.stack([_prep_b(blk["lff_b"]) for blk in params["blocks"]])    # (nb, n_ch, 1)
    g1w_full = _prep_w1(params["gff1_w"])                                     # (n_ch, n_ch*nb)
    g1w = jnp.stack([g1w_full[:, i * n_ch:(i + 1) * n_ch] for i in range(n_blocks)])
    g1b = _prep_b(params["gff1_b"])
    g2w = _prep_w3_seg(params["gff2_w"], [n_ch])                              # (c_in, 9*n_ch)
    g2b = _prep_b(params["gff2_b"])

    kernel = functools.partial(
        _global_residual_kernel,
        n_blocks=n_blocks, n_layer=n_layer, n_ch=n_ch, growth=growth, c_in=c_in,
        lead=lead, Wp=Wp, HWp=HWp, HWpad=HWpad, Lbuf=Lbuf)

    weights = [sfe1_w, sfe1_b, *dense_ws, lff_w, lff_b, g1w, g1b, g2w, g2b, mask]
    in_specs = [_batch_spec(c_in, Lbuf)] + [_full_spec(a.shape) for a in weights]

    out_flat = pl.pallas_call(
        kernel,
        out_shape=jax.ShapeDtypeStruct((B, c_in, HWpad), jnp.bfloat16),
        grid_spec=pltpu.PrefetchScalarGridSpec(
            num_scalar_prefetch=0,
            grid=(B,),
            in_specs=in_specs,
            out_specs=_batch_spec(c_in, HWpad),
            scratch_shapes=[
                pltpu.VMEM((cmax, Lbuf), jnp.bfloat16),                   # padded-flat features
                pltpu.VMEM((9 * max(cmax, c_in), HWpad), jnp.bfloat16),   # tap-stacked features
                pltpu.VMEM((n_ch, HWpad), jnp.float32),                   # online gff1 accumulator
            ]),
        compiler_params=pltpu.CompilerParams(
            dimension_semantics=("parallel",),
            vmem_limit_bytes=_VMEM_LIMIT),
    )(x_flat, *weights)

    out = out_flat[:, :, :HWp].reshape(B, c_in, H, Wp)[:, :, :, :W]
    return out.astype(jnp.float32)


# --------------------------------- reference ------------------------------------ #

def _bf16_round(v):
    return v.astype(jnp.bfloat16).astype(jnp.float32)


def _conv2d_ref(x, w, b=None, relu=False):
    out = jax.lax.conv_general_dilated(
        x, w, (1, 1), "SAME",
        dimension_numbers=("NCHW", "OIHW", "NCHW"),
        precision=jax.lax.Precision.HIGHEST)
    if b is not None:
        out = out + b.reshape(1, -1, 1, 1)
    if relu:
        out = jnp.maximum(out, 0.0)
    return out


def global_residual_forward_ref(x, params):
    """Pure-JAX (XLA conv) reference that mirrors the kernel's bf16 storage points."""
    p = jax.tree_util.tree_map(_bf16_round, params)
    xb = _bf16_round(x)
    h = _bf16_round(_conv2d_ref(xb, p["sfe1_w"], p["sfe1_b"]))
    feats = []
    for blk in p["blocks"]:
        t = h
        for wd in blk["dense_ws"]:
            c = _bf16_round(_conv2d_ref(t, wd, None, relu=True))
            t = jnp.concatenate([t, c], axis=1)
        h = _bf16_round(_conv2d_ref(t, blk["lff_w"], blk["lff_b"]) + h)
        feats.append(h)
    cat = jnp.concatenate(feats, axis=1)
    g = _bf16_round(_conv2d_ref(cat, p["gff1_w"], p["gff1_b"]))
    return _bf16_round(_conv2d_ref(g, p["gff2_w"], p["gff2_b"]) + xb)


# --------------------------------- init / main ---------------------------------- #

def init_params(key, in_channel, n_channel, n_blocks, growth_rate, n_layer=3):
    keys = iter(jax.random.split(key, 128))

    def nrm(shape, scale=0.05):
        return scale * jax.random.normal(next(keys), shape, jnp.float32)

    params = {
        "sfe1_w": nrm((n_channel, in_channel, 3, 3)),   # PyTorch OIHW layout
        "sfe1_b": nrm((n_channel,)),
        "blocks": [],
    }
    for _ in range(n_blocks):
        dense_ws = []
        for j in range(n_layer):
            cin = n_channel + growth_rate * j
            dense_ws.append(nrm((growth_rate, cin, 3, 3)))
        params["blocks"].append({
            "dense_ws": dense_ws,
            "lff_w": nrm((n_channel, n_channel + growth_rate * n_layer, 1, 1)),
            "lff_b": nrm((n_channel,)),
        })
    params["gff1_w"] = nrm((n_channel, n_channel * n_blocks, 1, 1))
    params["gff1_b"] = nrm((n_channel,))
    params["gff2_w"] = nrm((in_channel, n_channel, 3, 3))
    params["gff2_b"] = nrm((in_channel,))
    return params


if __name__ == "__main__":
    key = jax.random.PRNGKey(0)
    kx, kp = jax.random.split(key)

    # Small, module-consistent shapes (NCHW like the PyTorch module).
    B, in_channel, H, W = 2, 4, 16, 16
    n_channel, n_blocks, growth_rate = 8, 2, 8

    x = jax.random.normal(kx, (B, in_channel, H, W), jnp.float32)
    params = init_params(kp, in_channel, n_channel, n_blocks, growth_rate)

    fwd = jax.jit(global_residual_forward_pallas)
    out = jax.block_until_ready(fwd(x, params))
    assert out.shape == (B, in_channel, H, W)

    ref = jax.block_until_ready(global_residual_forward_ref(x, params))
    np.testing.assert_allclose(np.asarray(out), np.asarray(ref), rtol=1e-2, atol=1e-2)

    print("KERNEL_OK")
</pallas_src>

<mosaic_0001>
module attributes {stable_mosaic.version = 11 : i64} {
  func.func @_global_residual_kernel(%arg0: i32, %arg1: memref<1x4x640xbf16, #tpu.memory_space<vmem>>, %arg2: memref<8x36xbf16, #tpu.memory_space<vmem>>, %arg3: memref<8x1xbf16, #tpu.memory_space<vmem>>, %arg4: memref<2x8x72xbf16, #tpu.memory_space<vmem>>, %arg5: memref<2x8x144xbf16, #tpu.memory_space<vmem>>, %arg6: memref<2x8x216xbf16, #tpu.memory_space<vmem>>, %arg7: memref<2x8x32xbf16, #tpu.memory_space<vmem>>, %arg8: memref<2x8x1xbf16, #tpu.memory_space<vmem>>, %arg9: memref<2x8x8xbf16, #tpu.memory_space<vmem>>, %arg10: memref<8x1xbf16, #tpu.memory_space<vmem>>, %arg11: memref<4x72xbf16, #tpu.memory_space<vmem>>, %arg12: memref<4x1xbf16, #tpu.memory_space<vmem>>, %arg13: memref<1x384xf32, #tpu.memory_space<vmem>>, %arg14: memref<1x4x384xbf16, #tpu.memory_space<vmem>>, %arg15: memref<32x640xbf16, #tpu.memory_space<vmem>>, %arg16: memref<288x384xbf16, #tpu.memory_space<vmem>>, %arg17: memref<8x384xf32, #tpu.memory_space<vmem>>) attributes {dimension_semantics = [#tpu.dimension_semantics<parallel>], iteration_bounds = array<i64: 2>, scalar_prefetch = 0 : i64, scratch_operands = 3 : i64, tpu.core_type = #tpu.core_type<tc>, window_params = [{transform_indices = @transform_0, window_bounds = array<i64: 1, 4, 640>}, {pipeline_mode = #tpu.pipeline_mode<synchronous>, transform_indices = @transform_1, window_bounds = array<i64: 8, 36>}, {pipeline_mode = #tpu.pipeline_mode<synchronous>, transform_indices = @transform_2, window_bounds = array<i64: 8, 1>}, {pipeline_mode = #tpu.pipeline_mode<synchronous>, transform_indices = @transform_3, window_bounds = array<i64: 2, 8, 72>}, {pipeline_mode = #tpu.pipeline_mode<synchronous>, transform_indices = @transform_4, window_bounds = array<i64: 2, 8, 144>}, {pipeline_mode = #tpu.pipeline_mode<synchronous>, transform_indices = @transform_5, window_bounds = array<i64: 2, 8, 216>}, {pipeline_mode = #tpu.pipeline_mode<synchronous>, transform_indices = @transform_6, window_bounds = array<i64: 2, 8, 32>}, {pipeline_mode = #tpu.pipeline_mode<synchronous>, transform_indices = @transform_7, window_bounds = array<i64: 2, 8, 1>}, {pipeline_mode = #tpu.pipeline_mode<synchronous>, transform_indices = @transform_8, window_bounds = array<i64: 2, 8, 8>}, {pipeline_mode = #tpu.pipeline_mode<synchronous>, transform_indices = @transform_9, window_bounds = array<i64: 8, 1>}, {pipeline_mode = #tpu.pipeline_mode<synchronous>, transform_indices = @transform_10, window_bounds = array<i64: 4, 72>}, {pipeline_mode = #tpu.pipeline_mode<synchronous>, transform_indices = @transform_11, window_bounds = array<i64: 4, 1>}, {pipeline_mode = #tpu.pipeline_mode<synchronous>, transform_indices = @transform_12, window_bounds = array<i64: 1, 384>}, {transform_indices = @transform_13, window_bounds = array<i64: 1, 4, 384>}]} {
    %c0 = arith.constant 0 : index
    %c0_0 = arith.constant 0 : index
    %0 = vector.load %arg13[%c0, %c0_0] : memref<1x384xf32, #tpu.memory_space<vmem>>, vector<1x384xf32>
    %cst = arith.constant 0.000000e+00 : bf16
    %1 = vector.broadcast %cst : bf16 to vector<32x128xbf16>
    %c0_1 = arith.constant 0 : index
    %c0_2 = arith.constant 0 : index
    %2 = vector.load %arg15[%c0_1, %c0_2] : memref<32x640xbf16, #tpu.memory_space<vmem>>, vector<32x128xbf16>
    tpu.vector_store %arg15[%c0_1, %c0_2], %1 {strides = array<i32>} : memref<32x640xbf16, #tpu.memory_space<vmem>>, vector<32x128xbf16>,
    %cst_3 = arith.constant 0.000000e+00 : bf16
    %3 = vector.broadcast %cst_3 : bf16 to vector<32x128xbf16>
    %c0_4 = arith.constant 0 : index
    %c512 = arith.constant 512 : index
    %4 = vector.load %arg15[%c0_4, %c512] : memref<32x640xbf16, #tpu.memory_space<vmem>>, vector<32x128xbf16>
    tpu.vector_store %arg15[%c0_4, %c512], %3 {strides = array<i32>} : memref<32x640xbf16, #tpu.memory_space<vmem>>, vector<32x128xbf16>,
    %c0_5 = arith.constant 0 : index
    %c0_6 = arith.constant 0 : index
    %c109 = arith.constant 109 : index
    %5 = vector.load %arg1[%c0_5, %c0_6, %c109] : memref<1x4x640xbf16, #tpu.memory_space<vmem>>, vector<1x4x384xbf16>
    %6 = vector.shape_cast %5 : vector<1x4x384xbf16> to vector<4x384xbf16>
    %c0_7 = arith.constant 0 : index
    %c0_8 = arith.constant 0 : index
    %7 = vector.load %arg16[%c0_7, %c0_8] : memref<288x384xbf16, #tpu.memory_space<vmem>>, vector<4x384xbf16>
    tpu.vector_store %arg16[%c0_7, %c0_8], %6 {strides = array<i32>} : memref<288x384xbf16, #tpu.memory_space<vmem>>, vector<4x384xbf16>,
    %c0_9 = arith.constant 0 : index
    %c0_10 = arith.constant 0 : index
    %c110 = arith.constant 110 : index
    %8 = vector.load %arg1[%c0_9, %c0_10, %c110] : memref<1x4x640xbf16, #tpu.memory_space<vmem>>, vector<1x4x384xbf16>
    %9 = vector.shape_cast %8 : vector<1x4x384xbf16> to vector<4x384xbf16>
    %c4 = arith.constant 4 : index
    %c0_11 = arith.constant 0 : index
    %10 = vector.load %arg16[%c4, %c0_11] : memref<288x384xbf16, #tpu.memory_space<vmem>>, vector<4x384xbf16>
    tpu.vector_store %arg16[%c4, %c0_11], %9 {strides = array<i32>} : memref<288x384xbf16, #tpu.memory_space<vmem>>, vector<4x384xbf16>,
    %c0_12 = arith.constant 0 : index
    %c0_13 = arith.constant 0 : index
    %c111 = arith.constant 111 : index
    %11 = vector.load %arg1[%c0_12, %c0_13, %c111] : memref<1x4x640xbf16, #tpu.memory_space<vmem>>, vector<1x4x384xbf16>
    %12 = vector.shape_cast %11 : vector<1x4x384xbf16> to vector<4x384xbf16>
    %c8 = arith.constant 8 : index
    %c0_14 = arith.constant 0 : index
    %13 = vector.load %arg16[%c8, %c0_14] : memref<288x384xbf16, #tpu.memory_space<vmem>>, vector<4x384xbf16>
    tpu.vector_store %arg16[%c8, %c0_14], %12 {strides = array<i32>} : memref<288x384xbf16, #tpu.memory_space<vmem>>, vector<4x384xbf16>,
    %c0_15 = arith.constant 0 : index
    %c0_16 = arith.constant 0 : index
    %c127 = arith.constant 127 : index
    %14 = vector.load %arg1[%c0_15, %c0_16, %c127] : memref<1x4x640xbf16, #tpu.memory_space<vmem>>, vector<1x4x384xbf16>
    %15 = vector.shape_cast %14 : vector<1x4x384xbf16> to vector<4x384xbf16>
    %c12 = arith.constant 12 : index
    %c0_17 = arith.constant 0 : index
    %16 = vector.load %arg16[%c12, %c0_17] : memref<288x384xbf16, #tpu.memory_space<vmem>>, vector<4x384xbf16>
    tpu.vector_store %arg16[%c12, %c0_17], %15 {strides = array<i32>} : memref<288x384xbf16, #tpu.memory_space<vmem>>, vector<4x384xbf16>,
    %c0_18 = arith.constant 0 : index
    %c0_19 = arith.constant 0 : index
    %c128 = arith.constant 128 : index
    %17 = vector.load %arg1[%c0_18, %c0_19, %c128] : memref<1x4x640xbf16, #tpu.memory_space<vmem>>, vector<1x4x384xbf16>
    %18 = vector.shape_cast %17 : vector<1x4x384xbf16> to vector<4x384xbf16>
    %c16 = arith.constant 16 : index
    %c0_20 = arith.constant 0 : index
    %19 = vector.load %arg16[%c16, %c0_20] : memref<288x384xbf16, #tpu.memory_space<vmem>>, vector<4x384xbf16>
    tpu.vector_store %arg16[%c16, %c0_20], %18 {strides = array<i32>} : memref<288x384xbf16, #tpu.memory_space<vmem>>, vector<4x384xbf16>,
    %c0_21 = arith.constant 0 : index
    %c0_22 = arith.constant 0 : index
    %c129 = arith.constant 129 : index
    %20 = vector.load %arg1[%c0_21, %c0_22, %c129] : memref<1x4x640xbf16, #tpu.memory_space<vmem>>, vector<1x4x384xbf16>
    %21 = vector.shape_cast %20 : vector<1x4x384xbf16> to vector<4x384xbf16>
    %c20 = arith.constant 20 : index
    %c0_23 = arith.constant 0 : index
    %22 = vector.load %arg16[%c20, %c0_23] : memref<288x384xbf16, #tpu.memory_space<vmem>>, vector<4x384xbf16>
    tpu.vector_store %arg16[%c20, %c0_23], %21 {strides = array<i32>} : memref<288x384xbf16, #tpu.memory_space<vmem>>, vector<4x384xbf16>,
    %c0_24 = arith.constant 0 : index
    %c0_25 = arith.constant 0 : index
    %c145 = arith.constant 145 : index
    %23 = vector.load %arg1[%c0_24, %c0_25, %c145] : memref<1x4x640xbf16, #tpu.memory_space<vmem>>, vector<1x4x384xbf16>
    %24 = vector.shape_cast %23 : vector<1x4x384xbf16> to vector<4x384xbf16>
    %c24 = arith.constant 24 : index
    %c0_26 = arith.constant 0 : index
    %25 = vector.load %arg16[%c24, %c0_26] : memref<288x384xbf16, #tpu.memory_space<vmem>>, vector<4x384xbf16>
    tpu.vector_store %arg16[%c24, %c0_26], %24 {strides = array<i32>} : memref<288x384xbf16, #tpu.memory_space<vmem>>, vector<4x384xbf16>,
    %c0_27 = arith.constant 0 : index
    %c0_28 = arith.constant 0 : index
    %c146 = arith.constant 146 : index
    %26 = vector.load %arg1[%c0_27, %c0_28, %c146] : memref<1x4x640xbf16, #tpu.memory_space<vmem>>, vector<1x4x384xbf16>
    %27 = vector.shape_cast %26 : vector<1x4x384xbf16> to vector<4x384xbf16>
    %c28 = arith.constant 28 : index
    %c0_29 = arith.constant 0 : index
    %28 = vector.load %arg16[%c28, %c0_29] : memref<288x384xbf16, #tpu.memory_space<vmem>>, vector<4x384xbf16>
    tpu.vector_store %arg16[%c28, %c0_29], %27 {strides = array<i32>} : memref<288x384xbf16, #tpu.memory_space<vmem>>, vector<4x384xbf16>,
    %c0_30 = arith.constant 0 : index
    %c0_31 = arith.constant 0 : index
    %c147 = arith.constant 147 : index
    %29 = vector.load %arg1[%c0_30, %c0_31, %c147] : memref<1x4x640xbf16, #tpu.memory_space<vmem>>, vector<1x4x384xbf16>
    %30 = vector.shape_cast %29 : vector<1x4x384xbf16> to vector<4x384xbf16>
    %c32 = arith.constant 32 : index
    %c0_32 = arith.constant 0 : index
    %31 = vector.load %arg16[%c32, %c0_32] : memref<288x384xbf16, #tpu.memory_space<vmem>>, vector<4x384xbf16>
    tpu.vector_store %arg16[%c32, %c0_32], %30 {strides = array<i32>} : memref<288x384xbf16, #tpu.memory_space<vmem>>, vector<4x384xbf16>,
    %c0_33 = arith.constant 0 : index
    %c0_34 = arith.constant 0 : index
    %32 = vector.load %arg2[%c0_33, %c0_34] : memref<8x36xbf16, #tpu.memory_space<vmem>>, vector<8x36xbf16>
    %c0_35 = arith.constant 0 : index
    %c0_36 = arith.constant 0 : index
    %33 = vector.load %arg16[%c0_35, %c0_36] : memref<288x384xbf16, #tpu.memory_space<vmem>>, vector<36x384xbf16>
    %cst_37 = arith.constant dense<0.000000e+00> : vector<8x384xf32>
    %34 = tpu.matmul %32, %33, %cst_37 {dimension_numbers = #tpu.dot_dimension_numbers<[1], [0], [0], [1], [0, 0, 1, 1], [], []>} : vector<8x36xbf16>, vector<36x384xbf16>, vector<8x384xf32> -> vector<8x384xf32>
    %c0_38 = arith.constant 0 : index
    %c0_39 = arith.constant 0 : index
    %35 = vector.load %arg3[%c0_38, %c0_39] : memref<8x1xbf16, #tpu.memory_space<vmem>>, vector<8x1xbf16>
    %36 = arith.extf %35 : vector<8x1xbf16> to vector<8x1xf32>
    %37 = vector.broadcast %36 : vector<8x1xf32> to vector<8x384xf32>
    %38 = arith.addf %34, %37 : vector<8x384xf32>
    %39 = vector.broadcast %0 : vector<1x384xf32> to vector<8x384xf32>
    %40 = arith.mulf %38, %39 : vector<8x384xf32>
    %41 = arith.truncf %40 : vector<8x384xf32> to vector<8x384xbf16>
    %c0_40 = arith.constant 0 : index
    %c128_41 = arith.constant 128 : index
    %42 = vector.load %arg15[%c0_40, %c128_41] : memref<32x640xbf16, #tpu.memory_space<vmem>>, vector<8x384xbf16>
    tpu.vector_store %arg15[%c0_40, %c128_41], %41 {strides = array<i32>} : memref<32x640xbf16, #tpu.memory_space<vmem>>, vector<8x384xbf16>,
    %c0_42 = arith.constant 0 : index
    %c109_43 = arith.constant 109 : index
    %43 = vector.load %arg15[%c0_42, %c109_43] : memref<32x640xbf16, #tpu.memory_space<vmem>>, vector<8x384xbf16>
    %c0_44 = arith.constant 0 : index
    %c0_45 = arith.constant 0 : index
    %44 = vector.load %arg16[%c0_44, %c0_45] : memref<288x384xbf16, #tpu.memory_space<vmem>>, vector<8x384xbf16>
    tpu.vector_store %arg16[%c0_44, %c0_45], %43 {strides = array<i32>} : memref<288x384xbf16, #tpu.memory_space<vmem>>, vector<8x384xbf16>,
    %c0_46 = arith.constant 0 : index
    %c110_47 = arith.constant 110 : index
    %45 = vector.load %arg15[%c0_46, %c110_47] : memref<32x640xbf16, #tpu.memory_space<vmem>>, vector<8x384xbf16>
    %c8_48 = arith.constant 8 : index
    %c0_49 = arith.constant 0 : index
    %46 = vector.load %arg16[%c8_48, %c0_49] : memref<288x384xbf16, #tpu.memory_space<vmem>>, vector<8x384xbf16>
    tpu.vector_store %arg16[%c8_48, %c0_49], %45 {strides = array<i32>} : memref<288x384xbf16, #tpu.memory_space<vmem>>, vector<8x384xbf16>,
    %c0_50 = arith.constant 0 : index
    %c111_51 = arith.constant 111 : index
    %47 = vector.load %arg15[%c0_50, %c111_51] : memref<32x640xbf16, #tpu.memory_space<vmem>>, vector<8x384xbf16>
    %c16_52 = arith.constant 16 : index
    %c0_53 = arith.constant 0 : index
    %48 = vector.load %arg16[%c16_52, %c0_53] : memref<288x384xbf16, #tpu.memory_space<vmem>>, vector<8x384xbf16>
    tpu.vector_store %arg16[%c16_52, %c0_53], %47 {strides = array<i32>} : memref<288x384xbf16, #tpu.memory_space<vmem>>, vector<8x384xbf16>,
    %c0_54 = arith.constant 0 : index
    %c127_55 = arith.constant 127 : index
    %49 = vector.load %arg15[%c0_54, %c127_55] : memref<32x640xbf16, #tpu.memory_space<vmem>>, vector<8x384xbf16>
    %c24_56 = arith.constant 24 : index
    %c0_57 = arith.constant 0 : index
    %50 = vector.load %arg16[%c24_56, %c0_57] : memref<288x384xbf16, #tpu.memory_space<vmem>>, vector<8x384xbf16>
    tpu.vector_store %arg16[%c24_56, %c0_57], %49 {strides = array<i32>} : memref<288x384xbf16, #tpu.memory_space<vmem>>, vector<8x384xbf16>,
    %c0_58 = arith.constant 0 : index
    %c128_59 = arith.constant 128 : index
    %51 = vector.load %arg15[%c0_58, %c128_59] : memref<32x640xbf16, #tpu.memory_space<vmem>>, vector<8x384xbf16>
    %c32_60 = arith.constant 32 : index
    %c0_61 = arith.constant 0 : index
    %52 = vector.load %arg16[%c32_60, %c0_61] : memref<288x384xbf16, #tpu.memory_space<vmem>>, vector<8x384xbf16>
    tpu.vector_store %arg16[%c32_60, %c0_61], %51 {strides = array<i32>} : memref<288x384xbf16, #tpu.memory_space<vmem>>, vector<8x384xbf16>,
    %c0_62 = arith.constant 0 : index
    %c129_63 = arith.constant 129 : index
    %53 = vector.load %arg15[%c0_62, %c129_63] : memref<32x640xbf16, #tpu.memory_space<vmem>>, vector<8x384xbf16>
    %c40 = arith.constant 40 : index
    %c0_64 = arith.constant 0 : index
    %54 = vector.load %arg16[%c40, %c0_64] : memref<288x384xbf16, #tpu.memory_space<vmem>>, vector<8x384xbf16>
    tpu.vector_store %arg16[%c40, %c0_64], %53 {strides = array<i32>} : memref<288x384xbf16, #tpu.memory_space<vmem>>, vector<8x384xbf16>,
    %c0_65 = arith.constant 0 : index
    %c145_66 = arith.constant 145 : index
    %55 = vector.load %arg15[%c0_65, %c145_66] : memref<32x640xbf16, #tpu.memory_space<vmem>>, vector<8x384xbf16>
    %c48 = arith.constant 48 : index
    %c0_67 = arith.constant 0 : index
    %56 = vector.load %arg16[%c48, %c0_67] : memref<288x384xbf16, #tpu.memory_space<vmem>>, vector<8x384xbf16>
    tpu.vector_store %arg16[%c48, %c0_67], %55 {strides = array<i32>} : memref<288x384xbf16, #tpu.memory_space<vmem>>, vector<8x384xbf16>,
    %c0_68 = arith.constant 0 : index
    %c146_69 = arith.constant 146 : index
    %57 = vector.load %arg15[%c0_68, %c146_69] : memref<32x640xbf16, #tpu.memory_space<vmem>>, vector<8x384xbf16>
    %c56 = arith.constant 56 : index
    %c0_70 = arith.constant 0 : index
    %58 = vector.load %arg16[%c56, %c0_70] : memref<288x384xbf16, #tpu.memory_space<vmem>>, vector<8x384xbf16>
    tpu.vector_store %arg16[%c56, %c0_70], %57 {strides = array<i32>} : memref<288x384xbf16, #tpu.memory_space<vmem>>, vector<8x384xbf16>,
    %c0_71 = arith.constant 0 : index
    %c147_72 = arith.constant 147 : index
    %59 = vector.load %arg15[%c0_71, %c147_72] : memref<32x640xbf16, #tpu.memory_space<vmem>>, vector<8x384xbf16>
    %c64 = arith.constant 64 : index
    %c0_73 = arith.constant 0 : index
    %60 = vector.load %arg16[%c64, %c0_73] : memref<288x384xbf16, #tpu.memory_space<vmem>>, vector<8x384xbf16>
    tpu.vector_store %arg16[%c64, %c0_73], %59 {strides = array<i32>} : memref<288x384xbf16, #tpu.memory_space<vmem>>, vector<8x384xbf16>,
    %c0_74 = arith.constant 0 : index
    %c0_75 = arith.constant 0 : index
    %c0_76 = arith.constant 0 : index
    %61 = vector.load %arg4[%c0_74, %c0_75, %c0_76] : memref<2x8x72xbf16, #tpu.memory_space<vmem>>, vector<1x8x72xbf16>
    %62 = vector.shape_cast %61 : vector<1x8x72xbf16> to vector<8x72xbf16>
    %c0_77 = arith.constant 0 : index
    %c0_78 = arith.constant 0 : index
    %63 = vector.load %arg16[%c0_77, %c0_78] : memref<288x384xbf16, #tpu.memory_space<vmem>>, vector<72x384xbf16>
    %cst_79 = arith.constant dense<0.000000e+00> : vector<8x384xf32>
    %64 = tpu.matmul %62, %63, %cst_79 {dimension_numbers = #tpu.dot_dimension_numbers<[1], [0], [0], [1], [0, 0, 1, 1], [], []>} : vector<8x72xbf16>, vector<72x384xbf16>, vector<8x384xf32> -> vector<8x384xf32>
    %cst_80 = arith.constant 0.000000e+00 : f32
    %65 = vector.broadcast %cst_80 : f32 to vector<8x384xf32>
    %66 = arith.maximumf %64, %65 : vector<8x384xf32>
    %67 = vector.broadcast %0 : vector<1x384xf32> to vector<8x384xf32>
    %68 = arith.mulf %66, %67 : vector<8x384xf32>
    %69 = arith.truncf %68 : vector<8x384xf32> to vector<8x384xbf16>
    %c8_81 = arith.constant 8 : index
    %c128_82 = arith.constant 128 : index
    %70 = vector.load %arg15[%c8_81, %c128_82] : memref<32x640xbf16, #tpu.memory_space<vmem>>, vector<8x384xbf16>
    tpu.vector_store %arg15[%c8_81, %c128_82], %69 {strides = array<i32>} : memref<32x640xbf16, #tpu.memory_space<vmem>>, vector<8x384xbf16>,
    %c8_83 = arith.constant 8 : index
    %c109_84 = arith.constant 109 : index
    %71 = vector.load %arg15[%c8_83, %c109_84] : memref<32x640xbf16, #tpu.memory_space<vmem>>, vector<8x384xbf16>
    %c72 = arith.constant 72 : index
    %c0_85 = arith.constant 0 : index
    %72 = vector.load %arg16[%c72, %c0_85] : memref<288x384xbf16, #tpu.memory_space<vmem>>, vector<8x384xbf16>
    tpu.vector_store %arg16[%c72, %c0_85], %71 {strides = array<i32>} : memref<288x384xbf16, #tpu.memory_space<vmem>>, vector<8x384xbf16>,
    %c8_86 = arith.constant 8 : index
    %c110_87 = arith.constant 110 : index
    %73 = vector.load %arg15[%c8_86, %c110_87] : memref<32x640xbf16, #tpu.memory_space<vmem>>, vector<8x384xbf16>
    %c80 = arith.constant 80 : index
    %c0_88 = arith.constant 0 : index
    %74 = vector.load %arg16[%c80, %c0_88] : memref<288x384xbf16, #tpu.memory_space<vmem>>, vector<8x384xbf16>
    tpu.vector_store %arg16[%c80, %c0_88], %73 {strides = array<i32>} : memref<288x384xbf16, #tpu.memory_space<vmem>>, vector<8x384xbf16>,
    %c8_89 = arith.constant 8 : index
    %c111_90 = arith.constant 111 : index
    %75 = vector.load %arg15[%c8_89, %c111_90] : memref<32x640xbf16, #tpu.memory_space<vmem>>, vector<8x384xbf16>
    %c88 = arith.constant 88 : index
    %c0_91 = arith.constant 0 : index
    %76 = vector.load %arg16[%c88, %c0_91] : memref<288x384xbf16, #tpu.memory_space<vmem>>, vector<8x384xbf16>
    tpu.vector_store %arg16[%c88, %c0_91], %75 {strides = array<i32>} : memref<288x384xbf16, #tpu.memory_space<vmem>>, vector<8x384xbf16>,
    %c8_92 = arith.constant 8 : index
    %c127_93 = arith.constant 127 : index
    %77 = vector.load %arg15[%c8_92, %c127_93] : memref<32x640xbf16, #tpu.memory_space<vmem>>, vector<8x384xbf16>
    %c96 = arith.constant 96 : index
    %c0_94 = arith.constant 0 : index
    %78 = vector.load %arg16[%c96, %c0_94] : memref<288x384xbf16, #tpu.memory_space<vmem>>, vector<8x384xbf16>
    tpu.vector_store %arg16[%c96, %c0_94], %77 {strides = array<i32>} : memref<288x384xbf16, #tpu.memory_space<vmem>>, vector<8x384xbf16>,
    %c8_95 = arith.constant 8 : index
    %c128_96 = arith.constant 128 : index
    %79 = vector.load %arg15[%c8_95, %c128_96] : memref<32x640xbf16, #tpu.memory_space<vmem>>, vector<8x384xbf16>
    %c104 = arith.constant 104 : index
    %c0_97 = arith.constant 0 : index
    %80 = vector.load %arg16[%c104, %c0_97] : memref<288x384xbf16, #tpu.memory_space<vmem>>, vector<8x384xbf16>
    tpu.vector_store %arg16[%c104, %c0_97], %79 {strides = array<i32>} : memref<288x384xbf16, #tpu.memory_space<vmem>>, vector<8x384xbf16>,
    %c8_98 = arith.constant 8 : index
    %c129_99 = arith.constant 129 : index
    %81 = vector.load %arg15[%c8_98, %c129_99] : memref<32x640xbf16, #tpu.memory_space<vmem>>, vector<8x384xbf16>
    %c112 = arith.constant 112 : index
    %c0_100 = arith.constant 0 : index
    %82 = vector.load %arg16[%c112, %c0_100] : memref<288x384xbf16, #tpu.memory_space<vmem>>, vector<8x384xbf16>
    tpu.vector_store %arg16[%c112, %c0_100], %81 {strides = array<i32>} : memref<288x384xbf16, #tpu.memory_space<vmem>>, vector<8x384xbf16>,
    %c8_101 = arith.constant 8 : index
    %c145_102 = arith.constant 145 : index
    %83 = vector.load %arg15[%c8_101, %c145_102] : memref<32x640xbf16, #tpu.memory_space<vmem>>, vector<8x384xbf16>
    %c120 = arith.constant 120 : index
    %c0_103 = arith.constant 0 : index
    %84 = vector.load %arg16[%c120, %c0_103] : memref<288x384xbf16, #tpu.memory_space<vmem>>, vector<8x384xbf16>
    tpu.vector_store %arg16[%c120, %c0_103], %83 {strides = array<i32>} : memref<288x384xbf16, #tpu.memory_space<vmem>>, vector<8x384xbf16>,
    %c8_104 = arith.constant 8 : index
    %c146_105 = arith.constant 146 : index
    %85 = vector.load %arg15[%c8_104, %c146_105] : memref<32x640xbf16, #tpu.memory_space<vmem>>, vector<8x384xbf16>
    %c128_106 = arith.constant 128 : index
    %c0_107 = arith.constant 0 : index
    %86 = vector.load %arg16[%c128_106, %c0_107] : memref<288x384xbf16, #tpu.memory_space<vmem>>, vector<8x384xbf16>
    tpu.vector_store %arg16[%c128_106, %c0_107], %85 {strides = array<i32>} : memref<288x384xbf16, #tpu.memory_space<vmem>>, vector<8x384xbf16>,
    %c8_108 = arith.constant 8 : index
    %c147_109 = arith.constant 147 : index
    %87 = vector.load %arg15[%c8_108, %c147_109] : memref<32x640xbf16, #tpu.memory_space<vmem>>, vector<8x384xbf16>
    %c136 = arith.constant 136 : index
    %c0_110 = arith.constant 0 : index
    %88 = vector.load %arg16[%c136, %c0_110] : memref<288x384xbf16, #tpu.memory_space<vmem>>, vector<8x384xbf16>
    tpu.vector_store %arg16[%c136, %c0_110], %87 {strides = array<i32>} : memref<288x384xbf16, #tpu.memory_space<vmem>>, vector<8x384xbf16>,
    %c0_111 = arith.constant 0 : index
    %c0_112 = arith.constant 0 : index
    %c0_113 = arith.constant 0 : index
    %89 = vector.load %arg5[%c0_111, %c0_112, %c0_113] : memref<2x8x144xbf16, #tpu.memory_space<vmem>>, vector<1x8x144xbf16>
    %90 = vector.shape_cast %89 : vector<1x8x144xbf16> to vector<8x144xbf16>
    %c0_114 = arith.constant 0 : index
    %c0_115 = arith.constant 0 : index
    %91 = vector.load %arg16[%c0_114, %c0_115] : memref<288x384xbf16, #tpu.memory_space<vmem>>, vector<144x384xbf16>
    %cst_116 = arith.constant dense<0.000000e+00> : vector<8x384xf32>
    %92 = tpu.matmul %90, %91, %cst_116 {dimension_numbers = #tpu.dot_dimension_numbers<[1], [0], [0], [1], [0, 0, 1, 1], [], []>} : vector<8x144xbf16>, vector<144x384xbf16>, vector<8x384xf32> -> vector<8x384xf32>
    %cst_117 = arith.constant 0.000000e+00 : f32
    %93 = vector.broadcast %cst_117 : f32 to vector<8x384xf32>
    %94 = arith.maximumf %92, %93 : vector<8x384xf32>
    %95 = vector.broadcast %0 : vector<1x384xf32> to vector<8x384xf32>
    %96 = arith.mulf %94, %95 : vector<8x384xf32>
    %97 = arith.truncf %96 : vector<8x384xf32> to vector<8x384xbf16>
    %c16_118 = arith.constant 16 : index
    %c128_119 = arith.constant 128 : index
    %98 = vector.load %arg15[%c16_118, %c128_119] : memref<32x640xbf16, #tpu.memory_space<vmem>>, vector<8x384xbf16>
    tpu.vector_store %arg15[%c16_118, %c128_119], %97 {strides = array<i32>} : memref<32x640xbf16, #tpu.memory_space<vmem>>, vector<8x384xbf16>,
    %c16_120 = arith.constant 16 : index
    %c109_121 = arith.constant 109 : index
    %99 = vector.load %arg15[%c16_120, %c109_121] : memref<32x640xbf16, #tpu.memory_space<vmem>>, vector<8x384xbf16>
    %c144 = arith.constant 144 : index
    %c0_122 = arith.constant 0 : index
    %100 = vector.load %arg16[%c144, %c0_122] : memref<288x384xbf16, #tpu.memory_space<vmem>>, vector<8x384xbf16>
    tpu.vector_store %arg16[%c144, %c0_122], %99 {strides = array<i32>} : memref<288x384xbf16, #tpu.memory_space<vmem>>, vector<8x384xbf16>,
    %c16_123 = arith.constant 16 : index
    %c110_124 = arith.constant 110 : index
    %101 = vector.load %arg15[%c16_123, %c110_124] : memref<32x640xbf16, #tpu.memory_space<vmem>>, vector<8x384xbf16>
    %c152 = arith.constant 152 : index
    %c0_125 = arith.constant 0 : index
    %102 = vector.load %arg16[%c152, %c0_125] : memref<288x384xbf16, #tpu.memory_space<vmem>>, vector<8x384xbf16>
    tpu.vector_store %arg16[%c152, %c0_125], %101 {strides = array<i32>} : memref<288x384xbf16, #tpu.memory_space<vmem>>, vector<8x384xbf16>,
    %c16_126 = arith.constant 16 : index
    %c111_127 = arith.constant 111 : index
    %103 = vector.load %arg15[%c16_126, %c111_127] : memref<32x640xbf16, #tpu.memory_space<vmem>>, vector<8x384xbf16>
    %c160 = arith.constant 160 : index
    %c0_128 = arith.constant 0 : index
    %104 = vector.load %arg16[%c160, %c0_128] : memref<288x384xbf16, #tpu.memory_space<vmem>>, vector<8x384xbf16>
    tpu.vector_store %arg16[%c160, %c0_128], %103 {strides = array<i32>} : memref<288x384xbf16, #tpu.memory_space<vmem>>, vector<8x384xbf16>,
    %c16_129 = arith.constant 16 : index
    %c127_130 = arith.constant 127 : index
    %105 = vector.load %arg15[%c16_129, %c127_130] : memref<32x640xbf16, #tpu.memory_space<vmem>>, vector<8x384xbf16>
    %c168 = arith.constant 168 : index
    %c0_131 = arith.constant 0 : index
    %106 = vector.load %arg16[%c168, %c0_131] : memref<288x384xbf16, #tpu.memory_space<vmem>>, vector<8x384xbf16>
    tpu.vector_store %arg16[%c168, %c0_131], %105 {strides = array<i32>} : memref<288x384xbf16, #tpu.memory_space<vmem>>, vector<8x384xbf16>,
    %c16_132 = arith.constant 16 : index
    %c128_133 = arith.constant 128 : index
    %107 = vector.load %arg15[%c16_132, %c128_133] : memref<32x640xbf16, #tpu.memory_space<vmem>>, vector<8x384xbf16>
    %c176 = arith.constant 176 : index
    %c0_134 = arith.constant 0 : index
    %108 = vector.load %arg16[%c176, %c0_134] : memref<288x384xbf16, #tpu.memory_space<vmem>>, vector<8x384xbf16>
    tpu.vector_store %arg16[%c176, %c0_134], %107 {strides = array<i32>} : memref<288x384xbf16, #tpu.memory_space<vmem>>, vector<8x384xbf16>,
    %c16_135 = arith.constant 16 : index
    %c129_136 = arith.constant 129 : index
    %109 = vector.load %arg15[%c16_135, %c129_136] : memref<32x640xbf16, #tpu.memory_space<vmem>>, vector<8x384xbf16>
    %c184 = arith.constant 184 : index
    %c0_137 = arith.constant 0 : index
    %110 = vector.load %arg16[%c184, %c0_137] : memref<288x384xbf16, #tpu.memory_space<vmem>>, vector<8x384xbf16>
    tpu.vector_store %arg16[%c184, %c0_137], %109 {strides = array<i32>} : memref<288x384xbf16, #tpu.memory_space<vmem>>, vector<8x384xbf16>,
    %c16_138 = arith.constant 16 : index
    %c145_139 = arith.constant 145 : index
    %111 = vector.load %arg15[%c16_138, %c145_139] : memref<32x640xbf16, #tpu.memory_space<vmem>>, vector<8x384xbf16>
    %c192 = arith.constant 192 : index
    %c0_140 = arith.constant 0 : index
    %112 = vector.load %arg16[%c192, %c0_140] : memref<288x384xbf16, #tpu.memory_space<vmem>>, vector<8x384xbf16>
    tpu.vector_store %arg16[%c192, %c0_140], %111 {strides = array<i32>} : memref<288x384xbf16, #tpu.memory_space<vmem>>, vector<8x384xbf16>,
    %c16_141 = arith.constant 16 : index
    %c146_142 = arith.constant 146 : index
    %113 = vector.load %arg15[%c16_141, %c146_142] : memref<32x640xbf16, #tpu.memory_space<vmem>>, vector<8x384xbf16>
    %c200 = arith.constant 200 : index
    %c0_143 = arith.constant 0 : index
    %114 = vector.load %arg16[%c200, %c0_143] : memref<288x384xbf16, #tpu.memory_space<vmem>>, vector<8x384xbf16>
    tpu.vector_store %arg16[%c200, %c0_143], %113 {strides = array<i32>} : memref<288x384xbf16, #tpu.memory_space<vmem>>, vector<8x384xbf16>,
    %c16_144 = arith.constant 16 : index
    %c147_145 = arith.constant 147 : index
    %115 = vector.load %arg15[%c16_144, %c147_145] : memref<32x640xbf16, #tpu.memory_space<vmem>>, vector<8x384xbf16>
    %c208 = arith.constant 208 : index
    %c0_146 = arith.constant 0 : index
    %116 = vector.load %arg16[%c208, %c0_146] : memref<288x384xbf16, #tpu.memory_space<vmem>>, vector<8x384xbf16>
    tpu.vector_store %arg16[%c208, %c0_146], %115 {strides = array<i32>} : memref<288x384xbf16, #tpu.memory_space<vmem>>, vector<8x384xbf16>,
    %c0_147 = arith.constant 0 : index
    %c0_148 = arith.constant 0 : index
    %c0_149 = arith.constant 0 : index
    %117 = vector.load %arg6[%c0_147, %c0_148, %c0_149] : memref<2x8x216xbf16, #tpu.memory_space<vmem>>, vector<1x8x216xbf16>
    %118 = vector.shape_cast %117 : vector<1x8x216xbf16> to vector<8x216xbf16>
    %c0_150 = arith.constant 0 : index
    %c0_151 = arith.constant 0 : index
    %119 = vector.load %arg16[%c0_150, %c0_151] : memref<288x384xbf16, #tpu.memory_space<vmem>>, vector<216x384xbf16>
    %cst_152 = arith.constant dense<0.000000e+00> : vector<8x384xf32>
    %120 = tpu.matmul %118, %119, %cst_152 {dimension_numbers = #tpu.dot_dimension_numbers<[1], [0], [0], [1], [0, 0, 1, 1], [], []>} : vector<8x216xbf16>, vector<216x384xbf16>, vector<8x384xf32> -> vector<8x384xf32>
    %cst_153 = arith.constant 0.000000e+00 : f32
    %121 = vector.broadcast %cst_153 : f32 to vector<8x384xf32>
    %122 = arith.maximumf %120, %121 : vector<8x384xf32>
    %123 = vector.broadcast %0 : vector<1x384xf32> to vector<8x384xf32>
    %124 = arith.mulf %122, %123 : vector<8x384xf32>
    %125 = arith.truncf %124 : vector<8x384xf32> to vector<8x384xbf16>
    %c24_154 = arith.constant 24 : index
    %c128_155 = arith.constant 128 : index
    %126 = vector.load %arg15[%c24_154, %c128_155] : memref<32x640xbf16, #tpu.memory_space<vmem>>, vector<8x384xbf16>
    tpu.vector_store %arg15[%c24_154, %c128_155], %125 {strides = array<i32>} : memref<32x640xbf16, #tpu.memory_space<vmem>>, vector<8x384xbf16>,
    %c24_156 = arith.constant 24 : index
    %c109_157 = arith.constant 109 : index
    %127 = vector.load %arg15[%c24_156, %c109_157] : memref<32x640xbf16, #tpu.memory_space<vmem>>, vector<8x384xbf16>
    %c216 = arith.constant 216 : index
    %c0_158 = arith.constant 0 : index
    %128 = vector.load %arg16[%c216, %c0_158] : memref<288x384xbf16, #tpu.memory_space<vmem>>, vector<8x384xbf16>
    tpu.vector_store %arg16[%c216, %c0_158], %127 {strides = array<i32>} : memref<288x384xbf16, #tpu.memory_space<vmem>>, vector<8x384xbf16>,
    %c24_159 = arith.constant 24 : index
    %c110_160 = arith.constant 110 : index
    %129 = vector.load %arg15[%c24_159, %c110_160] : memref<32x640xbf16, #tpu.memory_space<vmem>>, vector<8x384xbf16>
    %c224 = arith.constant 224 : index
    %c0_161 = arith.constant 0 : index
    %130 = vector.load %arg16[%c224, %c0_161] : memref<288x384xbf16, #tpu.memory_space<vmem>>, vector<8x384xbf16>
    tpu.vector_store %arg16[%c224, %c0_161], %129 {strides = array<i32>} : memref<288x384xbf16, #tpu.memory_space<vmem>>, vector<8x384xbf16>,
    %c24_162 = arith.constant 24 : index
    %c111_163 = arith.constant 111 : index
    %131 = vector.load %arg15[%c24_162, %c111_163] : memref<32x640xbf16, #tpu.memory_space<vmem>>, vector<8x384xbf16>
    %c232 = arith.constant 232 : index
    %c0_164 = arith.constant 0 : index
    %132 = vector.load %arg16[%c232, %c0_164] : memref<288x384xbf16, #tpu.memory_space<vmem>>, vector<8x384xbf16>
    tpu.vector_store %arg16[%c232, %c0_164], %131 {strides = array<i32>} : memref<288x384xbf16, #tpu.memory_space<vmem>>, vector<8x384xbf16>,
    %c24_165 = arith.constant 24 : index
    %c127_166 = arith.constant 127 : index
    %133 = vector.load %arg15[%c24_165, %c127_166] : memref<32x640xbf16, #tpu.memory_space<vmem>>, vector<8x384xbf16>
    %c240 = arith.constant 240 : index
    %c0_167 = arith.constant 0 : index
    %134 = vector.load %arg16[%c240, %c0_167] : memref<288x384xbf16, #tpu.memory_space<vmem>>, vector<8x384xbf16>
    tpu.vector_store %arg16[%c240, %c0_167], %133 {strides = array<i32>} : memref<288x384xbf16, #tpu.memory_space<vmem>>, vector<8x384xbf16>,
    %c24_168 = arith.constant 24 : index
    %c128_169 = arith.constant 128 : index
    %135 = vector.load %arg15[%c24_168, %c128_169] : memref<32x640xbf16, #tpu.memory_space<vmem>>, vector<8x384xbf16>
    %c248 = arith.constant 248 : index
    %c0_170 = arith.constant 0 : index
    %136 = vector.load %arg16[%c248, %c0_170] : memref<288x384xbf16, #tpu.memory_space<vmem>>, vector<8x384xbf16>
    tpu.vector_store %arg16[%c248, %c0_170], %135 {strides = array<i32>} : memref<288x384xbf16, #tpu.memory_space<vmem>>, vector<8x384xbf16>,
    %c24_171 = arith.constant 24 : index
    %c129_172 = arith.constant 129 : index
    %137 = vector.load %arg15[%c24_171, %c129_172] : memref<32x640xbf16, #tpu.memory_space<vmem>>, vector<8x384xbf16>
    %c256 = arith.constant 256 : index
    %c0_173 = arith.constant 0 : index
    %138 = vector.load %arg16[%c256, %c0_173] : memref<288x384xbf16, #tpu.memory_space<vmem>>, vector<8x384xbf16>
    tpu.vector_store %arg16[%c256, %c0_173], %137 {strides = array<i32>} : memref<288x384xbf16, #tpu.memory_space<vmem>>, vector<8x384xbf16>,
    %c24_174 = arith.constant 24 : index
    %c145_175 = arith.constant 145 : index
    %139 = vector.load %arg15[%c24_174, %c145_175] : memref<32x640xbf16, #tpu.memory_space<vmem>>, vector<8x384xbf16>
    %c264 = arith.constant 264 : index
    %c0_176 = arith.constant 0 : index
    %140 = vector.load %arg16[%c264, %c0_176] : memref<288x384xbf16, #tpu.memory_space<vmem>>, vector<8x384xbf16>
    tpu.vector_store %arg16[%c264, %c0_176], %139 {strides = array<i32>} : memref<288x384xbf16, #tpu.memory_space<vmem>>, vector<8x384xbf16>,
    %c24_177 = arith.constant 24 : index
    %c146_178 = arith.constant 146 : index
    %141 = vector.load %arg15[%c24_177, %c146_178] : memref<32x640xbf16, #tpu.memory_space<vmem>>, vector<8x384xbf16>
    %c272 = arith.constant 272 : index
    %c0_179 = arith.constant 0 : index
    %142 = vector.load %arg16[%c272, %c0_179] : memref<288x384xbf16, #tpu.memory_space<vmem>>, vector<8x384xbf16>
    tpu.vector_store %arg16[%c272, %c0_179], %141 {strides = array<i32>} : memref<288x384xbf16, #tpu.memory_space<vmem>>, vector<8x384xbf16>,
    %c24_180 = arith.constant 24 : index
    %c147_181 = arith.constant 147 : index
    %143 = vector.load %arg15[%c24_180, %c147_181] : memref<32x640xbf16, #tpu.memory_space<vmem>>, vector<8x384xbf16>
    %c280 = arith.constant 280 : index
    %c0_182 = arith.constant 0 : index
    %144 = vector.load %arg16[%c280, %c0_182] : memref<288x384xbf16, #tpu.memory_space<vmem>>, vector<8x384xbf16>
    tpu.vector_store %arg16[%c280, %c0_182], %143 {strides = array<i32>} : memref<288x384xbf16, #tpu.memory_space<vmem>>, vector<8x384xbf16>,
    %c0_183 = arith.constant 0 : index
    %c128_184 = arith.constant 128 : index
    %145 = vector.load %arg15[%c0_183, %c128_184] : memref<32x640xbf16, #tpu.memory_space<vmem>>, vector<32x384xbf16>
    %c0_185 = arith.constant 0 : index
    %c0_186 = arith.constant 0 : index
    %c0_187 = arith.constant 0 : index
    %146 = vector.load %arg7[%c0_185, %c0_186, %c0_187] : memref<2x8x32xbf16, #tpu.memory_space<vmem>>, vector<1x8x32xbf16>
    %147 = vector.shape_cast %146 : vector<1x8x32xbf16> to vector<8x32xbf16>
    %cst_188 = arith.constant dense<0.000000e+00> : vector<8x384xf32>
    %148 = tpu.matmul %147, %145, %cst_188 {dimension_numbers = #tpu.dot_dimension_numbers<[1], [0], [0], [1], [0, 0, 1, 1], [], []>} : vector<8x32xbf16>, vector<32x384xbf16>, vector<8x384xf32> -> vector<8x384xf32>
    %c0_189 = arith.constant 0 : index
    %c0_190 = arith.constant 0 : index
    %c0_191 = arith.constant 0 : index
    %149 = vector.load %arg8[%c0_189, %c0_190, %c0_191] : memref<2x8x1xbf16, #tpu.memory_space<vmem>>, vector<1x8x1xbf16>
    %150 = vector.shape_cast %149 : vector<1x8x1xbf16> to vector<8x1xbf16>
    %151 = arith.extf %150 : vector<8x1xbf16> to vector<8x1xf32>
    %152 = vector.broadcast %151 : vector<8x1xf32> to vector<8x384xf32>
    %153 = arith.addf %148, %152 : vector<8x384xf32>
    %154 = vector.extract_strided_slice %145 {offsets = [0, 0], sizes = [8, 384], strides = [1, 1]} : vector<32x384xbf16> to vector<8x384xbf16>
    %155 = arith.extf %154 : vector<8x384xbf16> to vector<8x384xf32>
    %156 = arith.addf %153, %155 : vector<8x384xf32>
    %157 = vector.broadcast %0 : vector<1x384xf32> to vector<8x384xf32>
    %158 = arith.mulf %156, %157 : vector<8x384xf32>
    %159 = arith.truncf %158 : vector<8x384xf32> to vector<8x384xbf16>
    %c0_192 = arith.constant 0 : index
    %c128_193 = arith.constant 128 : index
    %160 = vector.load %arg15[%c0_192, %c128_193] : memref<32x640xbf16, #tpu.memory_space<vmem>>, vector<8x384xbf16>
    tpu.vector_store %arg15[%c0_192, %c128_193], %159 {strides = array<i32>} : memref<32x640xbf16, #tpu.memory_space<vmem>>, vector<8x384xbf16>,
    %c0_194 = arith.constant 0 : index
    %c128_195 = arith.constant 128 : index
    %161 = vector.load %arg15[%c0_194, %c128_195] : memref<32x640xbf16, #tpu.memory_space<vmem>>, vector<8x384xbf16>
    %c0_196 = arith.constant 0 : index
    %c0_197 = arith.constant 0 : index
    %c0_198 = arith.constant 0 : index
    %162 = vector.load %arg9[%c0_196, %c0_197, %c0_198] : memref<2x8x8xbf16, #tpu.memory_space<vmem>>, vector<1x8x8xbf16>
    %163 = vector.shape_cast %162 : vector<1x8x8xbf16> to vector<8x8xbf16>
    %cst_199 = arith.constant dense<0.000000e+00> : vector<8x384xf32>
    %164 = tpu.matmul %163, %161, %cst_199 {dimension_numbers = #tpu.dot_dimension_numbers<[1], [0], [0], [1], [0, 0, 1, 1], [], []>} : vector<8x8xbf16>, vector<8x384xbf16>, vector<8x384xf32> -> vector<8x384xf32>
    %c0_200 = arith.constant 0 : index
    %c0_201 = arith.constant 0 : index
    %165 = vector.load %arg17[%c0_200, %c0_201] : memref<8x384xf32, #tpu.memory_space<vmem>>, vector<8x384xf32>
    tpu.vector_store %arg17[%c0_200, %c0_201], %164 {strides = array<i32>} : memref<8x384xf32, #tpu.memory_space<vmem>>, vector<8x384xf32>,
    %c0_202 = arith.constant 0 : index
    %c109_203 = arith.constant 109 : index
    %166 = vector.load %arg15[%c0_202, %c109_203] : memref<32x640xbf16, #tpu.memory_space<vmem>>, vector<8x384xbf16>
    %c0_204 = arith.constant 0 : index
    %c0_205 = arith.constant 0 : index
    %167 = vector.load %arg16[%c0_204, %c0_205] : memref<288x384xbf16, #tpu.memory_space<vmem>>, vector<8x384xbf16>
    tpu.vector_store %arg16[%c0_204, %c0_205], %166 {strides = array<i32>} : memref<288x384xbf16, #tpu.memory_space<vmem>>, vector<8x384xbf16>,
    %c0_206 = arith.constant 0 : index
    %c110_207 = arith.constant 110 : index
    %168 = vector.load %arg15[%c0_206, %c110_207] : memref<32x640xbf16, #tpu.memory_space<vmem>>, vector<8x384xbf16>
    %c8_208 = arith.constant 8 : index
    %c0_209 = arith.constant 0 : index
    %169 = vector.load %arg16[%c8_208, %c0_209] : memref<288x384xbf16, #tpu.memory_space<vmem>>, vector<8x384xbf16>
    tpu.vector_store %arg16[%c8_208, %c0_209], %168 {strides = array<i32>} : memref<288x384xbf16, #tpu.memory_space<vmem>>, vector<8x384xbf16>,
    %c0_210 = arith.constant 0 : index
    %c111_211 = arith.constant 111 : index
    %170 = vector.load %arg15[%c0_210, %c111_211] : memref<32x640xbf16, #tpu.memory_space<vmem>>, vector<8x384xbf16>
    %c16_212 = arith.constant 16 : index
    %c0_213 = arith.constant 0 : index
    %171 = vector.load %arg16[%c16_212, %c0_213] : memref<288x384xbf16, #tpu.memory_space<vmem>>, vector<8x384xbf16>
    tpu.vector_store %arg16[%c16_212, %c0_213], %170 {strides = array<i32>} : memref<288x384xbf16, #tpu.memory_space<vmem>>, vector<8x384xbf16>,
    %c0_214 = arith.constant 0 : index
    %c127_215 = arith.constant 127 : index
    %172 = vector.load %arg15[%c0_214, %c127_215] : memref<32x640xbf16, #tpu.memory_space<vmem>>, vector<8x384xbf16>
    %c24_216 = arith.constant 24 : index
    %c0_217 = arith.constant 0 : index
    %173 = vector.load %arg16[%c24_216, %c0_217] : memref<288x384xbf16, #tpu.memory_space<vmem>>, vector<8x384xbf16>
    tpu.vector_store %arg16[%c24_216, %c0_217], %172 {strides = array<i32>} : memref<288x384xbf16, #tpu.memory_space<vmem>>, vector<8x384xbf16>,
    %c0_218 = arith.constant 0 : index
    %c128_219 = arith.constant 128 : index
    %174 = vector.load %arg15[%c0_218, %c128_219] : memref<32x640xbf16, #tpu.memory_space<vmem>>, vector<8x384xbf16>
    %c32_220 = arith.constant 32 : index
    %c0_221 = arith.constant 0 : index
    %175 = vector.load %arg16[%c32_220, %c0_221] : memref<288x384xbf16, #tpu.memory_space<vmem>>, vector<8x384xbf16>
    tpu.vector_store %arg16[%c32_220, %c0_221], %174 {strides = array<i32>} : memref<288x384xbf16, #tpu.memory_space<vmem>>, vector<8x384xbf16>,
    %c0_222 = arith.constant 0 : index
    %c129_223 = arith.constant 129 : index
    %176 = vector.load %arg15[%c0_222, %c129_223] : memref<32x640xbf16, #tpu.memory_space<vmem>>, vector<8x384xbf16>
    %c40_224 = arith.constant 40 : index
    %c0_225 = arith.constant 0 : index
    %177 = vector.load %arg16[%c40_224, %c0_225] : memref<288x384xbf16, #tpu.memory_space<vmem>>, vector<8x384xbf16>
    tpu.vector_store %arg16[%c40_224, %c0_225], %176 {strides = array<i32>} : memref<288x384xbf16, #tpu.memory_space<vmem>>, vector<8x384xbf16>,
    %c0_226 = arith.constant 0 : index
    %c145_227 = arith.constant 145 : index
    %178 = vector.load %arg15[%c0_226, %c145_227] : memref<32x640xbf16, #tpu.memory_space<vmem>>, vector<8x384xbf16>
    %c48_228 = arith.constant 48 : index
    %c0_229 = arith.constant 0 : index
    %179 = vector.load %arg16[%c48_228, %c0_229] : memref<288x384xbf16, #tpu.memory_space<vmem>>, vector<8x384xbf16>
    tpu.vector_store %arg16[%c48_228, %c0_229], %178 {strides = array<i32>} : memref<288x384xbf16, #tpu.memory_space<vmem>>, vector<8x384xbf16>,
    %c0_230 = arith.constant 0 : index
    %c146_231 = arith.constant 146 : index
    %180 = vector.load %arg15[%c0_230, %c146_231] : memref<32x640xbf16, #tpu.memory_space<vmem>>, vector<8x384xbf16>
    %c56_232 = arith.constant 56 : index
    %c0_233 = arith.constant 0 : index
    %181 = vector.load %arg16[%c56_232, %c0_233] : memref<288x384xbf16, #tpu.memory_space<vmem>>, vector<8x384xbf16>
    tpu.vector_store %arg16[%c56_232, %c0_233], %180 {strides = array<i32>} : memref<288x384xbf16, #tpu.memory_space<vmem>>, vector<8x384xbf16>,
    %c0_234 = arith.constant 0 : index
    %c147_235 = arith.constant 147 : index
    %182 = vector.load %arg15[%c0_234, %c147_235] : memref<32x640xbf16, #tpu.memory_space<vmem>>, vector<8x384xbf16>
    %c64_236 = arith.constant 64 : index
    %c0_237 = arith.constant 0 : index
    %183 = vector.load %arg16[%c64_236, %c0_237] : memref<288x384xbf16, #tpu.memory_space<vmem>>, vector<8x384xbf16>
    tpu.vector_store %arg16[%c64_236, %c0_237], %182 {strides = array<i32>} : memref<288x384xbf16, #tpu.memory_space<vmem>>, vector<8x384xbf16>,
    %c1 = arith.constant 1 : index
    %c0_238 = arith.constant 0 : index
    %c0_239 = arith.constant 0 : index
    %184 = vector.load %arg4[%c1, %c0_238, %c0_239] : memref<2x8x72xbf16, #tpu.memory_space<vmem>>, vector<1x8x72xbf16>
    %185 = vector.shape_cast %184 : vector<1x8x72xbf16> to vector<8x72xbf16>
    %c0_240 = arith.constant 0 : index
    %c0_241 = arith.constant 0 : index
    %186 = vector.load %arg16[%c0_240, %c0_241] : memref<288x384xbf16, #tpu.memory_space<vmem>>, vector<72x384xbf16>
    %cst_242 = arith.constant dense<0.000000e+00> : vector<8x384xf32>
    %187 = tpu.matmul %185, %186, %cst_242 {dimension_numbers = #tpu.dot_dimension_numbers<[1], [0], [0], [1], [0, 0, 1, 1], [], []>} : vector<8x72xbf16>, vector<72x384xbf16>, vector<8x384xf32> -> vector<8x384xf32>
    %cst_243 = arith.constant 0.000000e+00 : f32
    %188 = vector.broadcast %cst_243 : f32 to vector<8x384xf32>
    %189 = arith.maximumf %187, %188 : vector<8x384xf32>
    %190 = vector.broadcast %0 : vector<1x384xf32> to vector<8x384xf32>
    %191 = arith.mulf %189, %190 : vector<8x384xf32>
    %192 = arith.truncf %191 : vector<8x384xf32> to vector<8x384xbf16>
    %c8_244 = arith.constant 8 : index
    %c128_245 = arith.constant 128 : index
    %193 = vector.load %arg15[%c8_244, %c128_245] : memref<32x640xbf16, #tpu.memory_space<vmem>>, vector<8x384xbf16>
    tpu.vector_store %arg15[%c8_244, %c128_245], %192 {strides = array<i32>} : memref<32x640xbf16, #tpu.memory_space<vmem>>, vector<8x384xbf16>,
    %c8_246 = arith.constant 8 : index
    %c109_247 = arith.constant 109 : index
    %194 = vector.load %arg15[%c8_246, %c109_247] : memref<32x640xbf16, #tpu.memory_space<vmem>>, vector<8x384xbf16>
    %c72_248 = arith.constant 72 : index
    %c0_249 = arith.constant 0 : index
    %195 = vector.load %arg16[%c72_248, %c0_249] : memref<288x384xbf16, #tpu.memory_space<vmem>>, vector<8x384xbf16>
    tpu.vector_store %arg16[%c72_248, %c0_249], %194 {strides = array<i32>} : memref<288x384xbf16, #tpu.memory_space<vmem>>, vector<8x384xbf16>,
    %c8_250 = arith.constant 8 : index
    %c110_251 = arith.constant 110 : index
    %196 = vector.load %arg15[%c8_250, %c110_251] : memref<32x640xbf16, #tpu.memory_space<vmem>>, vector<8x384xbf16>
    %c80_252 = arith.constant 80 : index
    %c0_253 = arith.constant 0 : index
    %197 = vector.load %arg16[%c80_252, %c0_253] : memref<288x384xbf16, #tpu.memory_space<vmem>>, vector<8x384xbf16>
    tpu.vector_store %arg16[%c80_252, %c0_253], %196 {strides = array<i32>} : memref<288x384xbf16, #tpu.memory_space<vmem>>, vector<8x384xbf16>,
    %c8_254 = arith.constant 8 : index
    %c111_255 = arith.constant 111 : index
    %198 = vector.load %arg15[%c8_254, %c111_255] : memref<32x640xbf16, #tpu.memory_space<vmem>>, vector<8x384xbf16>
    %c88_256 = arith.constant 88 : index
    %c0_257 = arith.constant 0 : index
    %199 = vector.load %arg16[%c88_256, %c0_257] : memref<288x384xbf16, #tpu.memory_space<vmem>>, vector<8x384xbf16>
    tpu.vector_store %arg16[%c88_256, %c0_257], %198 {strides = array<i32>} : memref<288x384xbf16, #tpu.memory_space<vmem>>, vector<8x384xbf16>,
    %c8_258 = arith.constant 8 : index
    %c127_259 = arith.constant 127 : index
    %200 = vector.load %arg15[%c8_258, %c127_259] : memref<32x640xbf16, #tpu.memory_space<vmem>>, vector<8x384xbf16>
    %c96_260 = arith.constant 96 : index
    %c0_261 = arith.constant 0 : index
    %201 = vector.load %arg16[%c96_260, %c0_261] : memref<288x384xbf16, #tpu.memory_space<vmem>>, vector<8x384xbf16>
    tpu.vector_store %arg16[%c96_260, %c0_261], %200 {strides = array<i32>} : memref<288x384xbf16, #tpu.memory_space<vmem>>, vector<8x384xbf16>,
    %c8_262 = arith.constant 8 : index
    %c128_263 = arith.constant 128 : index
    %202 = vector.load %arg15[%c8_262, %c128_263] : memref<32x640xbf16, #tpu.memory_space<vmem>>, vector<8x384xbf16>
    %c104_264 = arith.constant 104 : index
    %c0_265 = arith.constant 0 : index
    %203 = vector.load %arg16[%c104_264, %c0_265] : memref<288x384xbf16, #tpu.memory_space<vmem>>, vector<8x384xbf16>
    tpu.vector_store %arg16[%c104_264, %c0_265], %202 {strides = array<i32>} : memref<288x384xbf16, #tpu.memory_space<vmem>>, vector<8x384xbf16>,
    %c8_266 = arith.constant 8 : index
    %c129_267 = arith.constant 129 : index
    %204 = vector.load %arg15[%c8_266, %c129_267] : memref<32x640xbf16, #tpu.memory_space<vmem>>, vector<8x384xbf16>
    %c112_268 = arith.constant 112 : index
    %c0_269 = arith.constant 0 : index
    %205 = vector.load %arg16[%c112_268, %c0_269] : memref<288x384xbf16, #tpu.memory_space<vmem>>, vector<8x384xbf16>
    tpu.vector_store %arg16[%c112_268, %c0_269], %204 {strides = array<i32>} : memref<288x384xbf16, #tpu.memory_space<vmem>>, vector<8x384xbf16>,
    %c8_270 = arith.constant 8 : index
    %c145_271 = arith.constant 145 : index
    %206 = vector.load %arg15[%c8_270, %c145_271] : memref<32x640xbf16, #tpu.memory_space<vmem>>, vector<8x384xbf16>
    %c120_272 = arith.constant 120 : index
    %c0_273 = arith.constant 0 : index
    %207 = vector.load %arg16[%c120_272, %c0_273] : memref<288x384xbf16, #tpu.memory_space<vmem>>, vector<8x384xbf16>
    tpu.vector_store %arg16[%c120_272, %c0_273], %206 {strides = array<i32>} : memref<288x384xbf16, #tpu.memory_space<vmem>>, vector<8x384xbf16>,
    %c8_274 = arith.constant 8 : index
    %c146_275 = arith.constant 146 : index
    %208 = vector.load %arg15[%c8_274, %c146_275] : memref<32x640xbf16, #tpu.memory_space<vmem>>, vector<8x384xbf16>
    %c128_276 = arith.constant 128 : index
    %c0_277 = arith.constant 0 : index
    %209 = vector.load %arg16[%c128_276, %c0_277] : memref<288x384xbf16, #tpu.memory_space<vmem>>, vector<8x384xbf16>
    tpu.vector_store %arg16[%c128_276, %c0_277], %208 {strides = array<i32>} : memref<288x384xbf16, #tpu.memory_space<vmem>>, vector<8x384xbf16>,
    %c8_278 = arith.constant 8 : index
    %c147_279 = arith.constant 147 : index
    %210 = vector.load %arg15[%c8_278, %c147_279] : memref<32x640xbf16, #tpu.memory_space<vmem>>, vector<8x384xbf16>
    %c136_280 = arith.constant 136 : index
    %c0_281 = arith.constant 0 : index
    %211 = vector.load %arg16[%c136_280, %c0_281] : memref<288x384xbf16, #tpu.memory_space<vmem>>, vector<8x384xbf16>
    tpu.vector_store %arg16[%c136_280, %c0_281], %210 {strides = array<i32>} : memref<288x384xbf16, #tpu.memory_space<vmem>>, vector<8x384xbf16>,
    %c1_282 = arith.constant 1 : index
    %c0_283 = arith.constant 0 : index
    %c0_284 = arith.constant 0 : index
    %212 = vector.load %arg5[%c1_282, %c0_283, %c0_284] : memref<2x8x144xbf16, #tpu.memory_space<vmem>>, vector<1x8x144xbf16>
    %213 = vector.shape_cast %212 : vector<1x8x144xbf16> to vector<8x144xbf16>
    %c0_285 = arith.constant 0 : index
    %c0_286 = arith.constant 0 : index
    %214 = vector.load %arg16[%c0_285, %c0_286] : memref<288x384xbf16, #tpu.memory_space<vmem>>, vector<144x384xbf16>
    %cst_287 = arith.constant dense<0.000000e+00> : vector<8x384xf32>
    %215 = tpu.matmul %213, %214, %cst_287 {dimension_numbers = #tpu.dot_dimension_numbers<[1], [0], [0], [1], [0, 0, 1, 1], [], []>} : vector<8x144xbf16>, vector<144x384xbf16>, vector<8x384xf32> -> vector<8x384xf32>
    %cst_288 = arith.constant 0.000000e+00 : f32
    %216 = vector.broadcast %cst_288 : f32 to vector<8x384xf32>
    %217 = arith.maximumf %215, %216 : vector<8x384xf32>
    %218 = vector.broadcast %0 : vector<1x384xf32> to vector<8x384xf32>
    %219 = arith.mulf %217, %218 : vector<8x384xf32>
    %220 = arith.truncf %219 : vector<8x384xf32> to vector<8x384xbf16>
    %c16_289 = arith.constant 16 : index
    %c128_290 = arith.constant 128 : index
    %221 = vector.load %arg15[%c16_289, %c128_290] : memref<32x640xbf16, #tpu.memory_space<vmem>>, vector<8x384xbf16>
    tpu.vector_store %arg15[%c16_289, %c128_290], %220 {strides = array<i32>} : memref<32x640xbf16, #tpu.memory_space<vmem>>, vector<8x384xbf16>,
    %c16_291 = arith.constant 16 : index
    %c109_292 = arith.constant 109 : index
    %222 = vector.load %arg15[%c16_291, %c109_292] : memref<32x640xbf16, #tpu.memory_space<vmem>>, vector<8x384xbf16>
    %c144_293 = arith.constant 144 : index
    %c0_294 = arith.constant 0 : index
    %223 = vector.load %arg16[%c144_293, %c0_294] : memref<288x384xbf16, #tpu.memory_space<vmem>>, vector<8x384xbf16>
    tpu.vector_store %arg16[%c144_293, %c0_294], %222 {strides = array<i32>} : memref<288x384xbf16, #tpu.memory_space<vmem>>, vector<8x384xbf16>,
    %c16_295 = arith.constant 16 : index
    %c110_296 = arith.constant 110 : index
    %224 = vector.load %arg15[%c16_295, %c110_296] : memref<32x640xbf16, #tpu.memory_space<vmem>>, vector<8x384xbf16>
    %c152_297 = arith.constant 152 : index
    %c0_298 = arith.constant 0 : index
    %225 = vector.load %arg16[%c152_297, %c0_298] : memref<288x384xbf16, #tpu.memory_space<vmem>>, vector<8x384xbf16>
    tpu.vector_store %arg16[%c152_297, %c0_298], %224 {strides = array<i32>} : memref<288x384xbf16, #tpu.memory_space<vmem>>, vector<8x384xbf16>,
    %c16_299 = arith.constant 16 : index
    %c111_300 = arith.constant 111 : index
    %226 = vector.load %arg15[%c16_299, %c111_300] : memref<32x640xbf16, #tpu.memory_space<vmem>>, vector<8x384xbf16>
    %c160_301 = arith.constant 160 : index
    %c0_302 = arith.constant 0 : index
    %227 = vector.load %arg16[%c160_301, %c0_302] : memref<288x384xbf16, #tpu.memory_space<vmem>>, vector<8x384xbf16>
    tpu.vector_store %arg16[%c160_301, %c0_302], %226 {strides = array<i32>} : memref<288x384xbf16, #tpu.memory_space<vmem>>, vector<8x384xbf16>,
    %c16_303 = arith.constant 16 : index
    %c127_304 = arith.constant 127 : index
    %228 = vector.load %arg15[%c16_303, %c127_304] : memref<32x640xbf16, #tpu.memory_space<vmem>>, vector<8x384xbf16>
    %c168_305 = arith.constant 168 : index
    %c0_306 = arith.constant 0 : index
    %229 = vector.load %arg16[%c168_305, %c0_306] : memref<288x384xbf16, #tpu.memory_space<vmem>>, vector<8x384xbf16>
    tpu.vector_store %arg16[%c168_305, %c0_306], %228 {strides = array<i32>} : memref<288x384xbf16, #tpu.memory_space<vmem>>, vector<8x384xbf16>,
    %c16_307 = arith.constant 16 : index
    %c128_308 = arith.constant 128 : index
    %230 = vector.load %arg15[%c16_307, %c128_308] : memref<32x640xbf16, #tpu.memory_space<vmem>>, vector<8x384xbf16>
    %c176_309 = arith.constant 176 : index
    %c0_310 = arith.constant 0 : index
    %231 = vector.load %arg16[%c176_309, %c0_310] : memref<288x384xbf16, #tpu.memory_space<vmem>>, vector<8x384xbf16>
    tpu.vector_store %arg16[%c176_309, %c0_310], %230 {strides = array<i32>} : memref<288x384xbf16, #tpu.memory_space<vmem>>, vector<8x384xbf16>,
    %c16_311 = arith.constant 16 : index
    %c129_312 = arith.constant 129 : index
    %232 = vector.load %arg15[%c16_311, %c129_312] : memref<32x640xbf16, #tpu.memory_space<vmem>>, vector<8x384xbf16>
    %c184_313 = arith.constant 184 : index
    %c0_314 = arith.constant 0 : index
    %233 = vector.load %arg16[%c184_313, %c0_314] : memref<288x384xbf16, #tpu.memory_space<vmem>>, vector<8x384xbf16>
    tpu.vector_store %arg16[%c184_313, %c0_314], %232 {strides = array<i32>} : memref<288x384xbf16, #tpu.memory_space<vmem>>, vector<8x384xbf16>,
    %c16_315 = arith.constant 16 : index
    %c145_316 = arith.constant 145 : index
    %234 = vector.load %arg15[%c16_315, %c145_316] : memref<32x640xbf16, #tpu.memory_space<vmem>>, vector<8x384xbf16>
    %c192_317 = arith.constant 192 : index
    %c0_318 = arith.constant 0 : index
    %235 = vector.load %arg16[%c192_317, %c0_318] : memref<288x384xbf16, #tpu.memory_space<vmem>>, vector<8x384xbf16>
    tpu.vector_store %arg16[%c192_317, %c0_318], %234 {strides = array<i32>} : memref<288x384xbf16, #tpu.memory_space<vmem>>, vector<8x384xbf16>,
    %c16_319 = arith.constant 16 : index
    %c146_320 = arith.constant 146 : index
    %236 = vector.load %arg15[%c16_319, %c146_320] : memref<32x640xbf16, #tpu.memory_space<vmem>>, vector<8x384xbf16>
    %c200_321 = arith.constant 200 : index
    %c0_322 = arith.constant 0 : index
    %237 = vector.load %arg16[%c200_321, %c0_322] : memref<288x384xbf16, #tpu.memory_space<vmem>>, vector<8x384xbf16>
    tpu.vector_store %arg16[%c200_321, %c0_322], %236 {strides = array<i32>} : memref<288x384xbf16, #tpu.memory_space<vmem>>, vector<8x384xbf16>,
    %c16_323 = arith.constant 16 : index
    %c147_324 = arith.constant 147 : index
    %238 = vector.load %arg15[%c16_323, %c147_324] : memref<32x640xbf16, #tpu.memory_space<vmem>>, vector<8x384xbf16>
    %c208_325 = arith.constant 208 : index
    %c0_326 = arith.constant 0 : index
    %239 = vector.load %arg16[%c208_325, %c0_326] : memref<288x384xbf16, #tpu.memory_space<vmem>>, vector<8x384xbf16>
    tpu.vector_store %arg16[%c208_325, %c0_326], %238 {strides = array<i32>} : memref<288x384xbf16, #tpu.memory_space<vmem>>, vector<8x384xbf16>,
    %c1_327 = arith.constant 1 : index
    %c0_328 = arith.constant 0 : index
    %c0_329 = arith.constant 0 : index
    %240 = vector.load %arg6[%c1_327, %c0_328, %c0_329] : memref<2x8x216xbf16, #tpu.memory_space<vmem>>, vector<1x8x216xbf16>
    %241 = vector.shape_cast %240 : vector<1x8x216xbf16> to vector<8x216xbf16>
    %c0_330 = arith.constant 0 : index
    %c0_331 = arith.constant 0 : index
    %242 = vector.load %arg16[%c0_330, %c0_331] : memref<288x384xbf16, #tpu.memory_space<vmem>>, vector<216x384xbf16>
    %cst_332 = arith.constant dense<0.000000e+00> : vector<8x384xf32>
    %243 = tpu.matmul %241, %242, %cst_332 {dimension_numbers = #tpu.dot_dimension_numbers<[1], [0], [0], [1], [0, 0, 1, 1], [], []>} : vector<8x216xbf16>, vector<216x384xbf16>, vector<8x384xf32> -> vector<8x384xf32>
    %cst_333 = arith.constant 0.000000e+00 : f32
    %244 = vector.broadcast %cst_333 : f32 to vector<8x384xf32>
    %245 = arith.maximumf %243, %244 : vector<8x384xf32>
    %246 = vector.broadcast %0 : vector<1x384xf32> to vector<8x384xf32>
    %247 = arith.mulf %245, %246 : vector<8x384xf32>
    %248 = arith.truncf %247 : vector<8x384xf32> to vector<8x384xbf16>
    %c24_334 = arith.constant 24 : index
    %c128_335 = arith.constant 128 : index
    %249 = vector.load %arg15[%c24_334, %c128_335] : memref<32x640xbf16, #tpu.memory_space<vmem>>, vector<8x384xbf16>
    tpu.vector_store %arg15[%c24_334, %c128_335], %248 {strides = array<i32>} : memref<32x640xbf16, #tpu.memory_space<vmem>>, vector<8x384xbf16>,
    %c24_336 = arith.constant 24 : index
    %c109_337 = arith.constant 109 : index
    %250 = vector.load %arg15[%c24_336, %c109_337] : memref<32x640xbf16, #tpu.memory_space<vmem>>, vector<8x384xbf16>
    %c216_338 = arith.constant 216 : index
    %c0_339 = arith.constant 0 : index
    %251 = vector.load %arg16[%c216_338, %c0_339] : memref<288x384xbf16, #tpu.memory_space<vmem>>, vector<8x384xbf16>
    tpu.vector_store %arg16[%c216_338, %c0_339], %250 {strides = array<i32>} : memref<288x384xbf16, #tpu.memory_space<vmem>>, vector<8x384xbf16>,
    %c24_340 = arith.constant 24 : index
    %c110_341 = arith.constant 110 : index
    %252 = vector.load %arg15[%c24_340, %c110_341] : memref<32x640xbf16, #tpu.memory_space<vmem>>, vector<8x384xbf16>
    %c224_342 = arith.constant 224 : index
    %c0_343 = arith.constant 0 : index
    %253 = vector.load %arg16[%c224_342, %c0_343] : memref<288x384xbf16, #tpu.memory_space<vmem>>, vector<8x384xbf16>
    tpu.vector_store %arg16[%c224_342, %c0_343], %252 {strides = array<i32>} : memref<288x384xbf16, #tpu.memory_space<vmem>>, vector<8x384xbf16>,
    %c24_344 = arith.constant 24 : index
    %c111_345 = arith.constant 111 : index
    %254 = vector.load %arg15[%c24_344, %c111_345] : memref<32x640xbf16, #tpu.memory_space<vmem>>, vector<8x384xbf16>
    %c232_346 = arith.constant 232 : index
    %c0_347 = arith.constant 0 : index
    %255 = vector.load %arg16[%c232_346, %c0_347] : memref<288x384xbf16, #tpu.memory_space<vmem>>, vector<8x384xbf16>
    tpu.vector_store %arg16[%c232_346, %c0_347], %254 {strides = array<i32>} : memref<288x384xbf16, #tpu.memory_space<vmem>>, vector<8x384xbf16>,
    %c24_348 = arith.constant 24 : index
    %c127_349 = arith.constant 127 : index
    %256 = vector.load %arg15[%c24_348, %c127_349] : memref<32x640xbf16, #tpu.memory_space<vmem>>, vector<8x384xbf16>
    %c240_350 = arith.constant 240 : index
    %c0_351 = arith.constant 0 : index
    %257 = vector.load %arg16[%c240_350, %c0_351] : memref<288x384xbf16, #tpu.memory_space<vmem>>, vector<8x384xbf16>
    tpu.vector_store %arg16[%c240_350, %c0_351], %256 {strides = array<i32>} : memref<288x384xbf16, #tpu.memory_space<vmem>>, vector<8x384xbf16>,
    %c24_352 = arith.constant 24 : index
    %c128_353 = arith.constant 128 : index
    %258 = vector.load %arg15[%c24_352, %c128_353] : memref<32x640xbf16, #tpu.memory_space<vmem>>, vector<8x384xbf16>
    %c248_354 = arith.constant 248 : index
    %c0_355 = arith.constant 0 : index
    %259 = vector.load %arg16[%c248_354, %c0_355] : memref<288x384xbf16, #tpu.memory_space<vmem>>, vector<8x384xbf16>
    tpu.vector_store %arg16[%c248_354, %c0_355], %258 {strides = array<i32>} : memref<288x384xbf16, #tpu.memory_space<vmem>>, vector<8x384xbf16>,
    %c24_356 = arith.constant 24 : index
    %c129_357 = arith.constant 129 : index
    %260 = vector.load %arg15[%c24_356, %c129_357] : memref<32x640xbf16, #tpu.memory_space<vmem>>, vector<8x384xbf16>
    %c256_358 = arith.constant 256 : index
    %c0_359 = arith.constant 0 : index
    %261 = vector.load %arg16[%c256_358, %c0_359] : memref<288x384xbf16, #tpu.memory_space<vmem>>, vector<8x384xbf16>
    tpu.vector_store %arg16[%c256_358, %c0_359], %260 {strides = array<i32>} : memref<288x384xbf16, #tpu.memory_space<vmem>>, vector<8x384xbf16>,
    %c24_360 = arith.constant 24 : index
    %c145_361 = arith.constant 145 : index
    %262 = vector.load %arg15[%c24_360, %c145_361] : memref<32x640xbf16, #tpu.memory_space<vmem>>, vector<8x384xbf16>
    %c264_362 = arith.constant 264 : index
    %c0_363 = arith.constant 0 : index
    %263 = vector.load %arg16[%c264_362, %c0_363] : memref<288x384xbf16, #tpu.memory_space<vmem>>, vector<8x384xbf16>
    tpu.vector_store %arg16[%c264_362, %c0_363], %262 {strides = array<i32>} : memref<288x384xbf16, #tpu.memory_space<vmem>>, vector<8x384xbf16>,
    %c24_364 = arith.constant 24 : index
    %c146_365 = arith.constant 146 : index
    %264 = vector.load %arg15[%c24_364, %c146_365] : memref<32x640xbf16, #tpu.memory_space<vmem>>, vector<8x384xbf16>
    %c272_366 = arith.constant 272 : index
    %c0_367 = arith.constant 0 : index
    %265 = vector.load %arg16[%c272_366, %c0_367] : memref<288x384xbf16, #tpu.memory_space<vmem>>, vector<8x384xbf16>
    tpu.vector_store %arg16[%c272_366, %c0_367], %264 {strides = array<i32>} : memref<288x384xbf16, #tpu.memory_space<vmem>>, vector<8x384xbf16>,
    %c24_368 = arith.constant 24 : index
    %c147_369 = arith.constant 147 : index
    %266 = vector.load %arg15[%c24_368, %c147_369] : memref<32x640xbf16, #tpu.memory_space<vmem>>, vector<8x384xbf16>
    %c280_370 = arith.constant 280 : index
    %c0_371 = arith.constant 0 : index
    %267 = vector.load %arg16[%c280_370, %c0_371] : memref<288x384xbf16, #tpu.memory_space<vmem>>, vector<8x384xbf16>
    tpu.vector_store %arg16[%c280_370, %c0_371], %266 {strides = array<i32>} : memref<288x384xbf16, #tpu.memory_space<vmem>>, vector<8x384xbf16>,
    %c0_372 = arith.constant 0 : index
    %c128_373 = arith.constant 128 : index
    %268 = vector.load %arg15[%c0_372, %c128_373] : memref<32x640xbf16, #tpu.memory_space<vmem>>, vector<32x384xbf16>
    %c1_374 = arith.constant 1 : index
    %c0_375 = arith.constant 0 : index
    %c0_376 = arith.constant 0 : index
    %269 = vector.load %arg7[%c1_374, %c0_375, %c0_376] : memref<2x8x32xbf16, #tpu.memory_space<vmem>>, vector<1x8x32xbf16>
    %270 = vector.shape_cast %269 : vector<1x8x32xbf16> to vector<8x32xbf16>
    %cst_377 = arith.constant dense<0.000000e+00> : vector<8x384xf32>
    %271 = tpu.matmul %270, %268, %cst_377 {dimension_numbers = #tpu.dot_dimension_numbers<[1], [0], [0], [1], [0, 0, 1, 1], [], []>} : vector<8x32xbf16>, vector<32x384xbf16>, vector<8x384xf32> -> vector<8x384xf32>
    %c1_378 = arith.constant 1 : index
    %c0_379 = arith.constant 0 : index
    %c0_380 = arith.constant 0 : index
    %272 = vector.load %arg8[%c1_378, %c0_379, %c0_380] : memref<2x8x1xbf16, #tpu.memory_space<vmem>>, vector<1x8x1xbf16>
    %273 = vector.shape_cast %272 : vector<1x8x1xbf16> to vector<8x1xbf16>
    %274 = arith.extf %273 : vector<8x1xbf16> to vector<8x1xf32>
    %275 = vector.broadcast %274 : vector<8x1xf32> to vector<8x384xf32>
    %276 = arith.addf %271, %275 : vector<8x384xf32>
    %277 = vector.extract_strided_slice %268 {offsets = [0, 0], sizes = [8, 384], strides = [1, 1]} : vector<32x384xbf16> to vector<8x384xbf16>
    %278 = arith.extf %277 : vector<8x384xbf16> to vector<8x384xf32>
    %279 = arith.addf %276, %278 : vector<8x384xf32>
    %280 = vector.broadcast %0 : vector<1x384xf32> to vector<8x384xf32>
    %281 = arith.mulf %279, %280 : vector<8x384xf32>
    %282 = arith.truncf %281 : vector<8x384xf32> to vector<8x384xbf16>
    %c0_381 = arith.constant 0 : index
    %c128_382 = arith.constant 128 : index
    %283 = vector.load %arg15[%c0_381, %c128_382] : memref<32x640xbf16, #tpu.memory_space<vmem>>, vector<8x384xbf16>
    tpu.vector_store %arg15[%c0_381, %c128_382], %282 {strides = array<i32>} : memref<32x640xbf16, #tpu.memory_space<vmem>>, vector<8x384xbf16>,
    %c0_383 = arith.constant 0 : index
    %c128_384 = arith.constant 128 : index
    %284 = vector.load %arg15[%c0_383, %c128_384] : memref<32x640xbf16, #tpu.memory_space<vmem>>, vector<8x384xbf16>
    %c1_385 = arith.constant 1 : index
    %c0_386 = arith.constant 0 : index
    %c0_387 = arith.constant 0 : index
    %285 = vector.load %arg9[%c1_385, %c0_386, %c0_387] : memref<2x8x8xbf16, #tpu.memory_space<vmem>>, vector<1x8x8xbf16>
    %286 = vector.shape_cast %285 : vector<1x8x8xbf16> to vector<8x8xbf16>
    %cst_388 = arith.constant dense<0.000000e+00> : vector<8x384xf32>
    %287 = tpu.matmul %286, %284, %cst_388 {dimension_numbers = #tpu.dot_dimension_numbers<[1], [0], [0], [1], [0, 0, 1, 1], [], []>} : vector<8x8xbf16>, vector<8x384xbf16>, vector<8x384xf32> -> vector<8x384xf32>
    %c0_389 = arith.constant 0 : index
    %c0_390 = arith.constant 0 : index
    %288 = vector.load %arg17[%c0_389, %c0_390] : memref<8x384xf32, #tpu.memory_space<vmem>>, vector<8x384xf32>
    %289 = arith.addf %288, %287 : vector<8x384xf32>
    %c0_391 = arith.constant 0 : index
    %c0_392 = arith.constant 0 : index
    %290 = vector.load %arg17[%c0_391, %c0_392] : memref<8x384xf32, #tpu.memory_space<vmem>>, vector<8x384xf32>
    tpu.vector_store %arg17[%c0_391, %c0_392], %289 {strides = array<i32>} : memref<8x384xf32, #tpu.memory_space<vmem>>, vector<8x384xf32>,
    %c0_393 = arith.constant 0 : index
    %c0_394 = arith.constant 0 : index
    %291 = vector.load %arg17[%c0_393, %c0_394] : memref<8x384xf32, #tpu.memory_space<vmem>>, vector<8x384xf32>
    %c0_395 = arith.constant 0 : index
    %c0_396 = arith.constant 0 : index
    %292 = vector.load %arg10[%c0_395, %c0_396] : memref<8x1xbf16, #tpu.memory_space<vmem>>, vector<8x1xbf16>
    %293 = arith.extf %292 : vector<8x1xbf16> to vector<8x1xf32>
    %294 = vector.broadcast %293 : vector<8x1xf32> to vector<8x384xf32>
    %295 = arith.addf %291, %294 : vector<8x384xf32>
    %296 = vector.broadcast %0 : vector<1x384xf32> to vector<8x384xf32>
    %297 = arith.mulf %295, %296 : vector<8x384xf32>
    %298 = arith.truncf %297 : vector<8x384xf32> to vector<8x384xbf16>
    %c0_397 = arith.constant 0 : index
    %c128_398 = arith.constant 128 : index
    %299 = vector.load %arg15[%c0_397, %c128_398] : memref<32x640xbf16, #tpu.memory_space<vmem>>, vector<8x384xbf16>
    tpu.vector_store %arg15[%c0_397, %c128_398], %298 {strides = array<i32>} : memref<32x640xbf16, #tpu.memory_space<vmem>>, vector<8x384xbf16>,
    %c0_399 = arith.constant 0 : index
    %c109_400 = arith.constant 109 : index
    %300 = vector.load %arg15[%c0_399, %c109_400] : memref<32x640xbf16, #tpu.memory_space<vmem>>, vector<8x384xbf16>
    %c0_401 = arith.constant 0 : index
    %c0_402 = arith.constant 0 : index
    %301 = vector.load %arg16[%c0_401, %c0_402] : memref<288x384xbf16, #tpu.memory_space<vmem>>, vector<8x384xbf16>
    tpu.vector_store %arg16[%c0_401, %c0_402], %300 {strides = array<i32>} : memref<288x384xbf16, #tpu.memory_space<vmem>>, vector<8x384xbf16>,
    %c0_403 = arith.constant 0 : index
    %c110_404 = arith.constant 110 : index
    %302 = vector.load %arg15[%c0_403, %c110_404] : memref<32x640xbf16, #tpu.memory_space<vmem>>, vector<8x384xbf16>
    %c8_405 = arith.constant 8 : index
    %c0_406 = arith.constant 0 : index
    %303 = vector.load %arg16[%c8_405, %c0_406] : memref<288x384xbf16, #tpu.memory_space<vmem>>, vector<8x384xbf16>
    tpu.vector_store %arg16[%c8_405, %c0_406], %302 {strides = array<i32>} : memref<288x384xbf16, #tpu.memory_space<vmem>>, vector<8x384xbf16>,
    %c0_407 = arith.constant 0 : index
    %c111_408 = arith.constant 111 : index
    %304 = vector.load %arg15[%c0_407, %c111_408] : memref<32x640xbf16, #tpu.memory_space<vmem>>, vector<8x384xbf16>
    %c16_409 = arith.constant 16 : index
    %c0_410 = arith.constant 0 : index
    %305 = vector.load %arg16[%c16_409, %c0_410] : memref<288x384xbf16, #tpu.memory_space<vmem>>, vector<8x384xbf16>
    tpu.vector_store %arg16[%c16_409, %c0_410], %304 {strides = array<i32>} : memref<288x384xbf16, #tpu.memory_space<vmem>>, vector<8x384xbf16>,
    %c0_411 = arith.constant 0 : index
    %c127_412 = arith.constant 127 : index
    %306 = vector.load %arg15[%c0_411, %c127_412] : memref<32x640xbf16, #tpu.memory_space<vmem>>, vector<8x384xbf16>
    %c24_413 = arith.constant 24 : index
    %c0_414 = arith.constant 0 : index
    %307 = vector.load %arg16[%c24_413, %c0_414] : memref<288x384xbf16, #tpu.memory_space<vmem>>, vector<8x384xbf16>
    tpu.vector_store %arg16[%c24_413, %c0_414], %306 {strides = array<i32>} : memref<288x384xbf16, #tpu.memory_space<vmem>>, vector<8x384xbf16>,
    %c0_415 = arith.constant 0 : index
    %c128_416 = arith.constant 128 : index
    %308 = vector.load %arg15[%c0_415, %c128_416] : memref<32x640xbf16, #tpu.memory_space<vmem>>, vector<8x384xbf16>
    %c32_417 = arith.constant 32 : index
    %c0_418 = arith.constant 0 : index
    %309 = vector.load %arg16[%c32_417, %c0_418] : memref<288x384xbf16, #tpu.memory_space<vmem>>, vector<8x384xbf16>
    tpu.vector_store %arg16[%c32_417, %c0_418], %308 {strides = array<i32>} : memref<288x384xbf16, #tpu.memory_space<vmem>>, vector<8x384xbf16>,
    %c0_419 = arith.constant 0 : index
    %c129_420 = arith.constant 129 : index
    %310 = vector.load %arg15[%c0_419, %c129_420] : memref<32x640xbf16, #tpu.memory_space<vmem>>, vector<8x384xbf16>
    %c40_421 = arith.constant 40 : index
    %c0_422 = arith.constant 0 : index
    %311 = vector.load %arg16[%c40_421, %c0_422] : memref<288x384xbf16, #tpu.memory_space<vmem>>, vector<8x384xbf16>
    tpu.vector_store %arg16[%c40_421, %c0_422], %310 {strides = array<i32>} : memref<288x384xbf16, #tpu.memory_space<vmem>>, vector<8x384xbf16>,
    %c0_423 = arith.constant 0 : index
    %c145_424 = arith.constant 145 : index
    %312 = vector.load %arg15[%c0_423, %c145_424] : memref<32x640xbf16, #tpu.memory_space<vmem>>, vector<8x384xbf16>
    %c48_425 = arith.constant 48 : index
    %c0_426 = arith.constant 0 : index
    %313 = vector.load %arg16[%c48_425, %c0_426] : memref<288x384xbf16, #tpu.memory_space<vmem>>, vector<8x384xbf16>
    tpu.vector_store %arg16[%c48_425, %c0_426], %312 {strides = array<i32>} : memref<288x384xbf16, #tpu.memory_space<vmem>>, vector<8x384xbf16>,
    %c0_427 = arith.constant 0 : index
    %c146_428 = arith.constant 146 : index
    %314 = vector.load %arg15[%c0_427, %c146_428] : memref<32x640xbf16, #tpu.memory_space<vmem>>, vector<8x384xbf16>
    %c56_429 = arith.constant 56 : index
    %c0_430 = arith.constant 0 : index
    %315 = vector.load %arg16[%c56_429, %c0_430] : memref<288x384xbf16, #tpu.memory_space<vmem>>, vector<8x384xbf16>
    tpu.vector_store %arg16[%c56_429, %c0_430], %314 {strides = array<i32>} : memref<288x384xbf16, #tpu.memory_space<vmem>>, vector<8x384xbf16>,
    %c0_431 = arith.constant 0 : index
    %c147_432 = arith.constant 147 : index
    %316 = vector.load %arg15[%c0_431, %c147_432] : memref<32x640xbf16, #tpu.memory_space<vmem>>, vector<8x384xbf16>
    %c64_433 = arith.constant 64 : index
    %c0_434 = arith.constant 0 : index
    %317 = vector.load %arg16[%c64_433, %c0_434] : memref<288x384xbf16, #tpu.memory_space<vmem>>, vector<8x384xbf16>
    tpu.vector_store %arg16[%c64_433, %c0_434], %316 {strides = array<i32>} : memref<288x384xbf16, #tpu.memory_space<vmem>>, vector<8x384xbf16>,
    %c0_435 = arith.constant 0 : index
    %c0_436 = arith.constant 0 : index
    %318 = vector.load %arg11[%c0_435, %c0_436] : memref<4x72xbf16, #tpu.memory_space<vmem>>, vector<4x72xbf16>
    %c0_437 = arith.constant 0 : index
    %c0_438 = arith.constant 0 : index
    %319 = vector.load %arg16[%c0_437, %c0_438] : memref<288x384xbf16, #tpu.memory_space<vmem>>, vector<72x384xbf16>
    %cst_439 = arith.constant dense<0.000000e+00> : vector<4x384xf32>
    %320 = tpu.matmul %318, %319, %cst_439 {dimension_numbers = #tpu.dot_dimension_numbers<[1], [0], [0], [1], [0, 0, 1, 1], [], []>} : vector<4x72xbf16>, vector<72x384xbf16>, vector<4x384xf32> -> vector<4x384xf32>
    %c0_440 = arith.constant 0 : index
    %c0_441 = arith.constant 0 : index
    %321 = vector.load %arg12[%c0_440, %c0_441] : memref<4x1xbf16, #tpu.memory_space<vmem>>, vector<4x1xbf16>
    %322 = arith.extf %321 : vector<4x1xbf16> to vector<4x1xf32>
    %323 = vector.broadcast %322 : vector<4x1xf32> to vector<4x384xf32>
    %324 = arith.addf %320, %323 : vector<4x384xf32>
    %c0_442 = arith.constant 0 : index
    %c0_443 = arith.constant 0 : index
    %c128_444 = arith.constant 128 : index
    %325 = vector.load %arg1[%c0_442, %c0_443, %c128_444] : memref<1x4x640xbf16, #tpu.memory_space<vmem>>, vector<1x4x384xbf16>
    %326 = vector.shape_cast %325 : vector<1x4x384xbf16> to vector<4x384xbf16>
    %327 = arith.extf %326 : vector<4x384xbf16> to vector<4x384xf32>
    %328 = arith.addf %324, %327 : vector<4x384xf32>
    %329 = vector.broadcast %0 : vector<1x384xf32> to vector<4x384xf32>
    %330 = arith.mulf %328, %329 : vector<4x384xf32>
    %331 = arith.truncf %330 : vector<4x384xf32> to vector<4x384xbf16>
    %c0_445 = arith.constant 0 : index
    %c0_446 = arith.constant 0 : index
    %c0_447 = arith.constant 0 : index
    %332 = vector.load %arg14[%c0_445, %c0_446, %c0_447] : memref<1x4x384xbf16, #tpu.memory_space<vmem>>, vector<1x4x384xbf16>
    %333 = vector.shape_cast %332 : vector<1x4x384xbf16> to vector<4x384xbf16>
    %334 = vector.shape_cast %331 : vector<4x384xbf16> to vector<1x4x384xbf16>
    tpu.vector_store %arg14[%c0_445, %c0_446, %c0_447], %334 {strides = array<i32>} : memref<1x4x384xbf16, #tpu.memory_space<vmem>>, vector<1x4x384xbf16>,
    return
  }
  func.func @transform_0(%arg0: i32) -> (i32, i32, i32) {
    %c0_i32 = arith.constant 0 : i32
    %c0_i32_0 = arith.constant 0 : i32
    %c0_i32_1 = arith.constant 0 : i32
    return %arg0, %c0_i32, %c0_i32_0 : i32, i32, i32
  }
  func.func @transform_1(%arg0: i32) -> (i32, i32) {
    %c0_i32 = arith.constant 0 : i32
    %c0_i32_0 = arith.constant 0 : i32
    %c0_i32_1 = arith.constant 0 : i32
    return %c0_i32, %c0_i32_0 : i32, i32
  }
  func.func @transform_2(%arg0: i32) -> (i32, i32) {
    %c0_i32 = arith.constant 0 : i32
    %c0_i32_0 = arith.constant 0 : i32
    %c0_i32_1 = arith.constant 0 : i32
    return %c0_i32, %c0_i32_0 : i32, i32
  }
  func.func @transform_3(%arg0: i32) -> (i32, i32, i32) {
    %c0_i32 = arith.constant 0 : i32
    %c0_i32_0 = arith.constant 0 : i32
    %c0_i32_1 = arith.constant 0 : i32
    %c0_i32_2 = arith.constant 0 : i32
    return %c0_i32, %c0_i32_0, %c0_i32_1 : i32, i32, i32
  }
  func.func @transform_4(%arg0: i32) -> (i32, i32, i32) {
    %c0_i32 = arith.constant 0 : i32
    %c0_i32_0 = arith.constant 0 : i32
    %c0_i32_1 = arith.constant 0 : i32
    %c0_i32_2 = arith.constant 0 : i32
    return %c0_i32, %c0_i32_0, %c0_i32_1 : i32, i32, i32
  }
  func.func @transform_5(%arg0: i32) -> (i32, i32, i32) {
    %c0_i32 = arith.constant 0 : i32
    %c0_i32_0 = arith.constant 0 : i32
    %c0_i32_1 = arith.constant 0 : i32
    %c0_i32_2 = arith.constant 0 : i32
    return %c0_i32, %c0_i32_0, %c0_i32_1 : i32, i32, i32
  }
  func.func @transform_6(%arg0: i32) -> (i32, i32, i32) {
    %c0_i32 = arith.constant 0 : i32
    %c0_i32_0 = arith.constant 0 : i32
    %c0_i32_1 = arith.constant 0 : i32
    %c0_i32_2 = arith.constant 0 : i32
    return %c0_i32, %c0_i32_0, %c0_i32_1 : i32, i32, i32
  }
  func.func @transform_7(%arg0: i32) -> (i32, i32, i32) {
    %c0_i32 = arith.constant 0 : i32
    %c0_i32_0 = arith.constant 0 : i32
    %c0_i32_1 = arith.constant 0 : i32
    %c0_i32_2 = arith.constant 0 : i32
    return %c0_i32, %c0_i32_0, %c0_i32_1 : i32, i32, i32
  }
  func.func @transform_8(%arg0: i32) -> (i32, i32, i32) {
    %c0_i32 = arith.constant 0 : i32
    %c0_i32_0 = arith.constant 0 : i32
    %c0_i32_1 = arith.constant 0 : i32
    %c0_i32_2 = arith.constant 0 : i32
    return %c0_i32, %c0_i32_0, %c0_i32_1 : i32, i32, i32
  }
  func.func @transform_9(%arg0: i32) -> (i32, i32) {
    %c0_i32 = arith.constant 0 : i32
    %c0_i32_0 = arith.constant 0 : i32
    %c0_i32_1 = arith.constant 0 : i32
    return %c0_i32, %c0_i32_0 : i32, i32
  }
  func.func @transform_10(%arg0: i32) -> (i32, i32) {
    %c0_i32 = arith.constant 0 : i32
    %c0_i32_0 = arith.constant 0 : i32
    %c0_i32_1 = arith.constant 0 : i32
    return %c0_i32, %c0_i32_0 : i32, i32
  }
  func.func @transform_11(%arg0: i32) -> (i32, i32) {
    %c0_i32 = arith.constant 0 : i32
    %c0_i32_0 = arith.constant 0 : i32
    %c0_i32_1 = arith.constant 0 : i32
    return %c0_i32, %c0_i32_0 : i32, i32
  }
  func.func @transform_12(%arg0: i32) -> (i32, i32) {
    %c0_i32 = arith.constant 0 : i32
    %c0_i32_0 = arith.constant 0 : i32
    %c0_i32_1 = arith.constant 0 : i32
    return %c0_i32, %c0_i32_0 : i32, i32
  }
  func.func @transform_13(%arg0: i32) -> (i32, i32, i32) {
    %c0_i32 = arith.constant 0 : i32
    %c0_i32_0 = arith.constant 0 : i32
    %c0_i32_1 = arith.constant 0 : i32
    return %arg0, %c0_i32, %c0_i32_0 : i32, i32, i32
  }
}

</mosaic_0001>

<llo_original>
// kernel: global_residual_forward_pallas.1
$region0: #{global_residual_forward_pallas.1}
  #allocation0 [shape = 'u32[]', space=smem, size = 0x4, offset = 0x4, fixed_abs, tag = 'smem constant byte address 0x4 - core index']
  #allocation1 [shape = 'u32[144,128]{1,0:T(1,128)}', space=vmem, size = 0x12000, scoped, tag = 'internal scratch']
  #allocation2 [shape = 'bf16[32,640]{1,0:T(16,128)(2,1)}', space=vmem, size = 0xa000, scoped, tag = 'scratch operand']
  #allocation3 [shape = 'bf16[288,384]{1,0:T(16,128)(2,1)}', space=vmem, size = 0x36000, scoped, tag = 'scratch operand']
  #allocation4 [shape = 'f32[8,384]{1,0:T(8,128)}', space=vmem, size = 0x3000, scoped, tag = 'scratch operand']
  %s0 = inlined_call_operand.hbm [shape: bf16[2,4,640], index: 0, kind: input, shape index: {}]
  %s1 = inlined_call_operand.hbm [shape: bf16[8,36], index: 1, kind: input, shape index: {}]
  %s2 = inlined_call_operand.hbm [shape: bf16[8,1], index: 2, kind: input, shape index: {}]
  %s3 = inlined_call_operand.hbm [shape: bf16[2,8,72], index: 3, kind: input, shape index: {}]
  %s4 = inlined_call_operand.hbm [shape: bf16[2,8,144], index: 4, kind: input, shape index: {}]
  %s5 = inlined_call_operand.hbm [shape: bf16[2,8,216], index: 5, kind: input, shape index: {}]
  %s6 = inlined_call_operand.hbm [shape: bf16[2,8,32], index: 6, kind: input, shape index: {}]
  %s7 = inlined_call_operand.hbm [shape: bf16[2,8,1], index: 7, kind: input, shape index: {}]
  %s8 = inlined_call_operand.hbm [shape: bf16[2,8,8], index: 8, kind: input, shape index: {}]
  %s9 = inlined_call_operand.hbm [shape: bf16[8,1], index: 9, kind: input, shape index: {}]
  %s10 = inlined_call_operand.hbm [shape: bf16[4,72], index: 10, kind: input, shape index: {}]
  %s11 = inlined_call_operand.hbm [shape: bf16[4,1], index: 11, kind: input, shape index: {}]
  %s12 = inlined_call_operand.hbm [shape: f32[1,384], index: 12, kind: input, shape index: {}]
  %s13 = inlined_call_operand.hbm [shape: bf16[2,4,384], index: 13, kind: output, shape index: {}]
  %s14 = sld [smem:[#allocation0]]
  $region137: #{global_residual_forward_pallas.1} parent=0
    _
  %s16 = ssub.s32 1, %s14
  %s17 = scalar_select 0, %s16, %s14
  $region1: #{global_residual_forward_pallas.1} parent=0
    #allocation5 [shape = 'u8[10240]{0}', space=vmem, size = 0x2800, scoped, tag = 'input window, operand 0']
    #allocation6 [shape = 's32[2]{0}', space=sflag, size = 0x8, scoped, tag = 'scoped memory for global_residual_forward_pallas.1']
    #allocation7 [shape = 's32[2]{0}', space=sflag, size = 0x8, scoped, tag = 'scoped memory for global_residual_forward_pallas.1']
    #allocation8 [shape = 'u8[2048]{0}', space=vmem, size = 0x800, scoped, tag = 'input window, operand 1, single buffered']
    #allocation9 [shape = 's32[1]{0}', space=sflag, size = 0x4, scoped, tag = 'scoped memory for global_residual_forward_pallas.1']
    #allocation10 [shape = 'u8[2048]{0}', space=vmem, size = 0x800, scoped, tag = 'input window, operand 2, single buffered']
    #allocation11 [shape = 'u8[4096]{0}', space=vmem, size = 0x1000, scoped, tag = 'input window, operand 3, single buffered']
    #allocation12 [shape = 's32[1]{0}', space=sflag, size = 0x4, scoped, tag = 'scoped memory for global_residual_forward_pallas.1']
    #allocation13 [shape = 'u8[8192]{0}', space=vmem, size = 0x2000, scoped, tag = 'input window, operand 4, single buffered']
    #allocation14 [shape = 'u8[8192]{0}', space=vmem, size = 0x2000, scoped, tag = 'input window, operand 5, single buffered']
    #allocation15 [shape = 's32[1]{0}', space=sflag, size = 0x4, scoped, tag = 'scoped memory for global_residual_forward_pallas.1']
    #allocation16 [shape = 'u8[4096]{0}', space=vmem, size = 0x1000, scoped, tag = 'input window, operand 6, single buffered']
    #allocation17 [shape = 'u8[4096]{0}', space=vmem, size = 0x1000, scoped, tag = 'input window, operand 7, single buffered']
    #allocation18 [shape = 's32[1]{0}', space=sflag, size = 0x4, scoped, tag = 'scoped memory for global_residual_forward_pallas.1']
    #allocation19 [shape = 'u8[4096]{0}', space=vmem, size = 0x1000, scoped, tag = 'input window, operand 8, single buffered']
    #allocation20 [shape = 'u8[2048]{0}', space=vmem, size = 0x800, scoped, tag = 'input window, operand 9, single buffered']
    #allocation21 [shape = 's32[1]{0}', space=sflag, size = 0x4, scoped, tag = 'scoped memory for global_residual_forward_pallas.1']
    #allocation22 [shape = 'u8[1024]{0}', space=vmem, size = 0x400, scoped, tag = 'input window, operand 10, single buffered']
    #allocation23 [shape = 'u8[1024]{0}', space=vmem, size = 0x400, scoped, tag = 'input window, operand 11, single buffered']
    #allocation24 [shape = 's32[1]{0}', space=sflag, size = 0x4, scoped, tag = 'scoped memory for global_residual_forward_pallas.1']
    #allocation25 [shape = 'u8[1536]{0}', space=vmem, size = 0x800, scoped, tag = 'input window, operand 12, single buffered']
    #allocation26 [shape = 'u8[6144]{0}', space=vmem, size = 0x1800, scoped, tag = 'output window, operand 0']
    %18 = vsyncpa [#allocation6], 0
    %s19 = scalar_lea.sflag [#allocation6], 1
    %20 = vsyncpa %s19, 0
    %21 = vsyncpa [#allocation9], 0
    %22 = vsyncpa [#allocation12], 0
    %23 = vsyncpa [#allocation15], 0
    %24 = vsyncpa [#allocation18], 0
    %25 = vsyncpa [#allocation21], 0
    %26 = vsyncpa [#allocation24], 0
    %27 = vsyncpa [#allocation7], 0
    %s28 = scalar_lea.sflag [#allocation7], 1
    %29 = vsyncpa %s28, 0
    loop: start=0, step=1, limit=4
    $region2: #{global_residual_forward_pallas.1} parent=1 // loop_pre_header
      _
    $region3: #{global_residual_forward_pallas.1} parent=1 // loop_header
      %s31 = sphi 0, %s35
      %p32 = scmp.ge.s32.totalorder %s31, 4
      %s41 = sphi 0, %s43
      %s44 = sphi 0, %s41
      %s45 = sphi 0, %s44
      %s61 = sphi 0, %s45
      %s65 = sphi 0, %s65
      %s67 = sphi 0, %s65
      %s68 = sphi 0, %s67
      %s82 = sphi 0, %s68
      %s86 = sphi 0, %s86
      %s88 = sphi 0, %s86
      %s89 = sphi 0, %s88
      %s103 = sphi 0, %s89
      %s107 = sphi 0, %s107
      %s109 = sphi 0, %s107
      %s110 = sphi 0, %s109
      %s124 = sphi 0, %s110
      %s128 = sphi 0, %s128
      %s130 = sphi 0, %s128
      %s131 = sphi 0, %s130
      %s145 = sphi 0, %s131
      %s149 = sphi 0, %s149
      %s151 = sphi 0, %s149
      %s152 = sphi 0, %s151
      %s166 = sphi 0, %s152
      %s170 = sphi 0, %s170
      %s172 = sphi 0, %s170
      %s173 = sphi 0, %s172
      %s187 = sphi 0, %s173
      %s191 = sphi 0, %s191
      %s193 = sphi 0, %s191
      %s194 = sphi 0, %s193
      %s208 = sphi 0, %s194
      %s212 = sphi 0, %s212
      %s214 = sphi 0, %s212
      %s215 = sphi 0, %s214
      %s229 = sphi 0, %s215
      %s233 = sphi 0, %s233
      %s235 = sphi 0, %s233
      %s236 = sphi 0, %s235
      %s250 = sphi 0, %s236
      %s254 = sphi 0, %s254
      %s256 = sphi 0, %s254
      %s257 = sphi 0, %s256
      %s271 = sphi 0, %s257
      %s275 = sphi 0, %s275
      %s277 = sphi 0, %s275
      %s278 = sphi 0, %s277
      %s292 = sphi 0, %s278
      %s296 = sphi 0, %s296
      %s298 = sphi 0, %s296
      %s299 = sphi 0, %s298
      %s313 = sphi 0, %s299
      %s319 = sphi 0, %s321
      %s322 = sphi 0, %s319
      %s323 = sphi 0, %s322
      %s339 = sphi 0, %s323
    $region4: #{global_residual_forward_pallas.1} parent=1 // loop_header_branch
      %34 = sbr.rel (%p32) target = $region8
    $region5: #{global_residual_forward_pallas.1} parent=1 // loop_body
      %s36 = ssub.s32 %s31, 1
      %s37 = ssub.s32 %s31, 2
      %s38 = sadd.s32 %s31, 1
      %s39 = ssub.s32 %s31, %s38
      %p40 = scmp.eq.s32.totalorder %s39, 0
      %s42 = sadd.s32 %s41, 1
      %s43 = scalar_select %p40, %s41, %s42
      %p46 = pneg %p40
      %p47 = scmp.eq.s32.totalorder %s31, 1
      %p48 = por %p46, %p47
      %p49 = scmp.ne.s32.totalorder %s41, %s44
      %p50 = scmp.eq.s32.totalorder %s31, 0
      %p51 = por %p49, %p50
      %p52 = scmp.ne.s32.totalorder %s41, %s44
      %p53 = scmp.eq.s32.totalorder %s36, 1
      %p54 = por %p52, %p53
      %p55 = scmp.ne.s32.totalorder %s44, %s45
      %p56 = scmp.eq.s32.totalorder %s36, 0
      %p57 = por %p55, %p56
      %p58 = scmp.ne.s32.totalorder %s44, %s45
      %p59 = scmp.eq.s32.totalorder %s37, 1
      %p60 = por %p58, %p59
      %p62 = scmp.ne.s32.totalorder %s45, %s61
      %p63 = scmp.eq.s32.totalorder %s37, 0
      %p64 = por %p62, %p63
      %s66 = sadd.s32 %s65, 1
      %p69 = scmp.eq.s32.totalorder %s31, 1
      %p70 = scmp.ne.s32.totalorder %s65, %s67
      %p71 = scmp.eq.s32.totalorder %s31, 0
      %p72 = por %p70, %p71
      %p73 = scmp.ne.s32.totalorder %s65, %s67
      %p74 = scmp.eq.s32.totalorder %s36, 1
      %p75 = por %p73, %p74
      %p76 = scmp.ne.s32.totalorder %s67, %s68
      %p77 = scmp.eq.s32.totalorder %s36, 0
      %p78 = por %p76, %p77
      %p79 = scmp.ne.s32.totalorder %s67, %s68
      %p80 = scmp.eq.s32.totalorder %s37, 1
      %p81 = por %p79, %p80
      %p83 = scmp.ne.s32.totalorder %s68, %s82
      %p84 = scmp.eq.s32.totalorder %s37, 0
      %p85 = por %p83, %p84
      %s87 = sadd.s32 %s86, 1
      %p90 = scmp.eq.s32.totalorder %s31, 1
      %p91 = scmp.ne.s32.totalorder %s86, %s88
      %p92 = scmp.eq.s32.totalorder %s31, 0
      %p93 = por %p91, %p92
      %p94 = scmp.ne.s32.totalorder %s86, %s88
      %p95 = scmp.eq.s32.totalorder %s36, 1
      %p96 = por %p94, %p95
      %p97 = scmp.ne.s32.totalorder %s88, %s89
      %p98 = scmp.eq.s32.totalorder %s36, 0
      %p99 = por %p97, %p98
      %p100 = scmp.ne.s32.totalorder %s88, %s89
      %p101 = scmp.eq.s32.totalorder %s37, 1
      %p102 = por %p100, %p101
      %p104 = scmp.ne.s32.totalorder %s89, %s103
      %p105 = scmp.eq.s32.totalorder %s37, 0
      %p106 = por %p104, %p105
      %s108 = sadd.s32 %s107, 1
      %p111 = scmp.eq.s32.totalorder %s31, 1
      %p112 = scmp.ne.s32.totalorder %s107, %s109
      %p113 = scmp.eq.s32.totalorder %s31, 0
      %p114 = por %p112, %p113
      %p115 = scmp.ne.s32.totalorder %s107, %s109
      %p116 = scmp.eq.s32.totalorder %s36, 1
      %p117 = por %p115, %p116
      %p118 = scmp.ne.s32.totalorder %s109, %s110
      %p119 = scmp.eq.s32.totalorder %s36, 0
      %p120 = por %p118, %p119
      %p121 = scmp.ne.s32.totalorder %s109, %s110
      %p122 = scmp.eq.s32.totalorder %s37, 1
      %p123 = por %p121, %p122
      %p125 = scmp.ne.s32.totalorder %s110, %s124
      %p126 = scmp.eq.s32.totalorder %s37, 0
      %p127 = por %p125, %p126
      %s129 = sadd.s32 %s128, 1
      %p132 = scmp.eq.s32.totalorder %s31, 1
      %p133 = scmp.ne.s32.totalorder %s128, %s130
      %p134 = scmp.eq.s32.totalorder %s31, 0
      %p135 = por %p133, %p134
      %p136 = scmp.ne.s32.totalorder %s128, %s130
      %p137 = scmp.eq.s32.totalorder %s36, 1
      %p138 = por %p136, %p137
      %p139 = scmp.ne.s32.totalorder %s130, %s131
      %p140 = scmp.eq.s32.totalorder %s36, 0
      %p141 = por %p139, %p140
      %p142 = scmp.ne.s32.totalorder %s130, %s131
      %p143 = scmp.eq.s32.totalorder %s37, 1
      %p144 = por %p142, %p143
      %p146 = scmp.ne.s32.totalorder %s131, %s145
      %p147 = scmp.eq.s32.totalorder %s37, 0
      %p148 = por %p146, %p147
      %s150 = sadd.s32 %s149, 1
      %p153 = scmp.eq.s32.totalorder %s31, 1
      %p154 = scmp.ne.s32.totalorder %s149, %s151
      %p155 = scmp.eq.s32.totalorder %s31, 0
      %p156 = por %p154, %p155
      %p157 = scmp.ne.s32.totalorder %s149, %s151
      %p158 = scmp.eq.s32.totalorder %s36, 1
      %p159 = por %p157, %p158
      %p160 = scmp.ne.s32.totalorder %s151, %s152
      %p161 = scmp.eq.s32.totalorder %s36, 0
      %p162 = por %p160, %p161
      %p163 = scmp.ne.s32.totalorder %s151, %s152
      %p164 = scmp.eq.s32.totalorder %s37, 1
      %p165 = por %p163, %p164
      %p167 = scmp.ne.s32.totalorder %s152, %s166
      %p168 = scmp.eq.s32.totalorder %s37, 0
      %p169 = por %p167, %p168
      %s171 = sadd.s32 %s170, 1
      %p174 = scmp.eq.s32.totalorder %s31, 1
      %p175 = scmp.ne.s32.totalorder %s170, %s172
      %p176 = scmp.eq.s32.totalorder %s31, 0
      %p177 = por %p175, %p176
      %p178 = scmp.ne.s32.totalorder %s170, %s172
      %p179 = scmp.eq.s32.totalorder %s36, 1
      %p180 = por %p178, %p179
      %p181 = scmp.ne.s32.totalorder %s172, %s173
      %p182 = scmp.eq.s32.totalorder %s36, 0
      %p183 = por %p181, %p182
      %p184 = scmp.ne.s32.totalorder %s172, %s173
      %p185 = scmp.eq.s32.totalorder %s37, 1
      %p186 = por %p184, %p185
      %p188 = scmp.ne.s32.totalorder %s173, %s187
      %p189 = scmp.eq.s32.totalorder %s37, 0
      %p190 = por %p188, %p189
      %s192 = sadd.s32 %s191, 1
      %p195 = scmp.eq.s32.totalorder %s31, 1
      %p196 = scmp.ne.s32.totalorder %s191, %s193
      %p197 = scmp.eq.s32.totalorder %s31, 0
      %p198 = por %p196, %p197
      %p199 = scmp.ne.s32.totalorder %s191, %s193
      %p200 = scmp.eq.s32.totalorder %s36, 1
      %p201 = por %p199, %p200
      %p202 = scmp.ne.s32.totalorder %s193, %s194
      %p203 = scmp.eq.s32.totalorder %s36, 0
      %p204 = por %p202, %p203
      %p205 = scmp.ne.s32.totalorder %s193, %s194
      %p206 = scmp.eq.s32.totalorder %s37, 1
      %p207 = por %p205, %p206
      %p209 = scmp.ne.s32.totalorder %s194, %s208
      %p210 = scmp.eq.s32.totalorder %s37, 0
      %p211 = por %p209, %p210
      %s213 = sadd.s32 %s212, 1
      %p216 = scmp.eq.s32.totalorder %s31, 1
      %p217 = scmp.ne.s32.totalorder %s212, %s214
      %p218 = scmp.eq.s32.totalorder %s31, 0
      %p219 = por %p217, %p218
      %p220 = scmp.ne.s32.totalorder %s212, %s214
      %p221 = scmp.eq.s32.totalorder %s36, 1
      %p222 = por %p220, %p221
      %p223 = scmp.ne.s32.totalorder %s214, %s215
      %p224 = scmp.eq.s32.totalorder %s36, 0
      %p225 = por %p223, %p224
      %p226 = scmp.ne.s32.totalorder %s214, %s215
      %p227 = scmp.eq.s32.totalorder %s37, 1
      %p228 = por %p226, %p227
      %p230 = scmp.ne.s32.totalorder %s215, %s229
      %p231 = scmp.eq.s32.totalorder %s37, 0
      %p232 = por %p230, %p231
      %s234 = sadd.s32 %s233, 1
      %p237 = scmp.eq.s32.totalorder %s31, 1
      %p238 = scmp.ne.s32.totalorder %s233, %s235
      %p239 = scmp.eq.s32.totalorder %s31, 0
      %p240 = por %p238, %p239
      %p241 = scmp.ne.s32.totalorder %s233, %s235
      %p242 = scmp.eq.s32.totalorder %s36, 1
      %p243 = por %p241, %p242
      %p244 = scmp.ne.s32.totalorder %s235, %s236
      %p245 = scmp.eq.s32.totalorder %s36, 0
      %p246 = por %p244, %p245
      %p247 = scmp.ne.s32.totalorder %s235, %s236
      %p248 = scmp.eq.s32.totalorder %s37, 1
      %p249 = por %p247, %p248
      %p251 = scmp.ne.s32.totalorder %s236, %s250
      %p252 = scmp.eq.s32.totalorder %s37, 0
      %p253 = por %p251, %p252
      %s255 = sadd.s32 %s254, 1
      %p258 = scmp.eq.s32.totalorder %s31, 1
      %p259 = scmp.ne.s32.totalorder %s254, %s256
      %p260 = scmp.eq.s32.totalorder %s31, 0
      %p261 = por %p259, %p260
      %p262 = scmp.ne.s32.totalorder %s254, %s256
      %p263 = scmp.eq.s32.totalorder %s36, 1
      %p264 = por %p262, %p263
      %p265 = scmp.ne.s32.totalorder %s256, %s257
      %p266 = scmp.eq.s32.totalorder %s36, 0
      %p267 = por %p265, %p266
      %p268 = scmp.ne.s32.totalorder %s256, %s257
      %p269 = scmp.eq.s32.totalorder %s37, 1
      %p270 = por %p268, %p269
      %p272 = scmp.ne.s32.totalorder %s257, %s271
      %p273 = scmp.eq.s32.totalorder %s37, 0
      %p274 = por %p272, %p273
      %s276 = sadd.s32 %s275, 1
      %p279 = scmp.eq.s32.totalorder %s31, 1
      %p280 = scmp.ne.s32.totalorder %s275, %s277
      %p281 = scmp.eq.s32.totalorder %s31, 0
      %p282 = por %p280, %p281
      %p283 = scmp.ne.s32.totalorder %s275, %s277
      %p284 = scmp.eq.s32.totalorder %s36, 1
      %p285 = por %p283, %p284
      %p286 = scmp.ne.s32.totalorder %s277, %s278
      %p287 = scmp.eq.s32.totalorder %s36, 0
      %p288 = por %p286, %p287
      %p289 = scmp.ne.s32.totalorder %s277, %s278
      %p290 = scmp.eq.s32.totalorder %s37, 1
      %p291 = por %p289, %p290
      %p293 = scmp.ne.s32.totalorder %s278, %s292
      %p294 = scmp.eq.s32.totalorder %s37, 0
      %p295 = por %p293, %p294
      %s297 = sadd.s32 %s296, 1
      %p300 = scmp.eq.s32.totalorder %s31, 1
      %p301 = scmp.ne.s32.totalorder %s296, %s298
      %p302 = scmp.eq.s32.totalorder %s31, 0
      %p303 = por %p301, %p302
      %p304 = scmp.ne.s32.totalorder %s296, %s298
      %p305 = scmp.eq.s32.totalorder %s36, 1
      %p306 = por %p304, %p305
      %p307 = scmp.ne.s32.totalorder %s298, %s299
      %p308 = scmp.eq.s32.totalorder %s36, 0
      %p309 = por %p307, %p308
      %p310 = scmp.ne.s32.totalorder %s298, %s299
      %p311 = scmp.eq.s32.totalorder %s37, 1
      %p312 = por %p310, %p311
      %p314 = scmp.ne.s32.totalorder %s299, %s313
      %p315 = scmp.eq.s32.totalorder %s37, 0
      %p316 = por %p314, %p315
      %s317 = ssub.s32 %s31, %s38
      %p318 = scmp.eq.s32.totalorder %s317, 0
      %s320 = sadd.s32 %s319, 1
      %s321 = scalar_select %p318, %s319, %s320
      %p324 = pneg %p318
      %p325 = scmp.eq.s32.totalorder %s31, 1
      %p326 = por %p324, %p325
      %p327 = scmp.ne.s32.totalorder %s319, %s322
      %p328 = scmp.eq.s32.totalorder %s31, 0
      %p329 = por %p327, %p328
      %p330 = scmp.ne.s32.totalorder %s319, %s322
      %p331 = scmp.eq.s32.totalorder %s36, 1
      %p332 = por %p330, %p331
      %p333 = scmp.ne.s32.totalorder %s322, %s323
      %p334 = scmp.eq.s32.totalorder %s36, 0
      %p335 = por %p333, %p334
      %p336 = scmp.ne.s32.totalorder %s322, %s323
      %p337 = scmp.eq.s32.totalorder %s37, 1
      %p338 = por %p336, %p337
      %p340 = scmp.ne.s32.totalorder %s323, %s339
      %p341 = scmp.eq.s32.totalorder %s37, 0
      %p342 = por %p340, %p341
      %p343 = scmp.le.s32.totalorder 1, %s31
      %p344 = scmp.lt.s32.totalorder %s31, 3
      %p345 = pnand %p343, %p344
      %p346 = pneg %p345
      // Predicated region
      $region9: #{global_residual_forward_pallas.1} parent=5 // pred_check
        _
      $region10: #{global_residual_forward_pallas.1} parent=5 // pred_check_branch
        %348 = sbr.rel (%p345) target = $region12
      $region11: #{global_residual_forward_pallas.1} parent=5 // pred_region
        %s349 = ssub.s32 %s31, 1
        // Predicated region
        $region13: #{global_residual_forward_pallas.1} parent=11 // pred_check
          %p350 = pneg %p78
        $region14: #{global_residual_forward_pallas.1} parent=11 // pred_check_branch
          %352 = sbr.rel (%p350) target = $region16
        $region15: #{global_residual_forward_pallas.1} parent=11 // pred_region
          %s354 = ssub.s32 64, 64
          %355 = vsyncadd [#allocation9], %s354
          %s357 = sshll.u32 [#allocation8], 4
          %s358 = int_to_ptr.vmem [resolvable:$true] %s357
          %360 = dma.hbm_to_vmem [thread:$0]  %s1, 64, %s358, [#allocation9]
        $region16: #{global_residual_forward_pallas.1} parent=11 // pred_fallthru
          _
        // Predicated region
        $region17: #{global_residual_forward_pallas.1} parent=11 // pred_check
          %p361 = pneg %p99
        $region18: #{global_residual_forward_pallas.1} parent=11 // pred_check_branch
          %363 = sbr.rel (%p361) target = $region20
        $region19: #{global_residual_forward_pallas.1} parent=11 // pred_region
          %s365 = ssub.s32 64, 64
          %366 = vsyncadd [#allocation9], %s365
          %s368 = sshll.u32 [#allocation10], 4
          %s369 = int_to_ptr.vmem [resolvable:$true] %s368
          %371 = dma.hbm_to_vmem [thread:$0]  %s2, 64, %s369, [#allocation9]
        $region20: #{global_residual_forward_pallas.1} parent=11 // pred_fallthru
          _
        // Predicated region
        $region21: #{global_residual_forward_pallas.1} parent=11 // pred_check
          %p372 = pneg %p120
        $region22: #{global_residual_forward_pallas.1} parent=11 // pred_check_branch
          %374 = sbr.rel (%p372) target = $region24
        $region23: #{global_residual_forward_pallas.1} parent=11 // pred_region
          %s376 = ssub.s32 128, 128
          %377 = vsyncadd [#allocation12], %s376
          %s378 = sshll.u32 [#allocation11], 4
          %s379 = int_to_ptr.vmem [resolvable:$true] %s378
          %384 = dma.hbm_to_vmem [thread:$0]  %s3, 128, %s379, [#allocation12], 64, 64, 4
        $region24: #{global_residual_forward_pallas.1} parent=11 // pred_fallthru
          _
        // Predicated region
        $region25: #{global_residual_forward_pallas.1} parent=11 // pred_check
          %p385 = pneg %p141
        $region26: #{global_residual_forward_pallas.1} parent=11 // pred_check_branch
          %387 = sbr.rel (%p385) target = $region28
        $region27: #{global_residual_forward_pallas.1} parent=11 // pred_region
          %s389 = ssub.s32 256, 256
          %390 = vsyncadd [#allocation12], %s389
          %s391 = sshll.u32 [#allocation13], 4
          %s392 = int_to_ptr.vmem [resolvable:$true] %s391
          %397 = dma.hbm_to_vmem [thread:$0]  %s4, 256, %s392, [#allocation12], 128, 128, 8
        $region28: #{global_residual_forward_pallas.1} parent=11 // pred_fallthru
          _
        // Predicated region
        $region29: #{global_residual_forward_pallas.1} parent=11 // pred_check
          %p398 = pneg %p162
        $region30: #{global_residual_forward_pallas.1} parent=11 // pred_check_branch
          %400 = sbr.rel (%p398) target = $region32
        $region31: #{global_residual_forward_pallas.1} parent=11 // pred_region
          %s402 = ssub.s32 256, 256
          %403 = vsyncadd [#allocation15], %s402
          %s404 = sshll.u32 [#allocation14], 4
          %s405 = int_to_ptr.vmem [resolvable:$true] %s404
          %410 = dma.hbm_to_vmem [thread:$0]  %s5, 256, %s405, [#allocation15], 128, 128, 8
        $region32: #{global_residual_forward_pallas.1} parent=11 // pred_fallthru
          _
        // Predicated region
        $region33: #{global_residual_forward_pallas.1} parent=11 // pred_check
          %p411 = pneg %p183
        $region34: #{global_residual_forward_pallas.1} parent=11 // pred_check_branch
          %413 = sbr.rel (%p411) target = $region36
        $region35: #{global_residual_forward_pallas.1} parent=11 // pred_region
          %s415 = ssub.s32 128, 128
          %416 = vsyncadd [#allocation15], %s415
          %s417 = sshll.u32 [#allocation16], 4
          %s418 = int_to_ptr.vmem [resolvable:$true] %s417
          %423 = dma.hbm_to_vmem [thread:$0]  %s6, 128, %s418, [#allocation15], 64, 64, 4
        $region36: #{global_residual_forward_pallas.1} parent=11 // pred_fallthru
          _
        // Predicated region
        $region37: #{global_residual_forward_pallas.1} parent=11 // pred_check
          %p424 = pneg %p204
        $region38: #{global_residual_forward_pallas.1} parent=11 // pred_check_branch
          %426 = sbr.rel (%p424) target = $region40
        $region39: #{global_residual_forward_pallas.1} parent=11 // pred_region
          %s428 = ssub.s32 128, 128
          %429 = vsyncadd [#allocation18], %s428
          %s430 = sshll.u32 [#allocation17], 4
          %s431 = int_to_ptr.vmem [resolvable:$true] %s430
          %436 = dma.hbm_to_vmem [thread:$0]  %s7, 128, %s431, [#allocation18], 64, 64, 4
        $region40: #{global_residual_forward_pallas.1} parent=11 // pred_fallthru
          _
        // Predicated region
        $region41: #{global_residual_forward_pallas.1} parent=11 // pred_check
          %p437 = pneg %p225
        $region42: #{global_residual_forward_pallas.1} parent=11 // pred_check_branch
          %439 = sbr.rel (%p437) target = $region44
        $region43: #{global_residual_forward_pallas.1} parent=11 // pred_region
          %s441 = ssub.s32 128, 128
          %442 = vsyncadd [#allocation18], %s441
          %s443 = sshll.u32 [#allocation19], 4
          %s444 = int_to_ptr.vmem [resolvable:$true] %s443
          %449 = dma.hbm_to_vmem [thread:$0]  %s8, 128, %s444, [#allocation18], 64, 64, 4
        $region44: #{global_residual_forward_pallas.1} parent=11 // pred_fallthru
          _
        // Predicated region
        $region45: #{global_residual_forward_pallas.1} parent=11 // pred_check
          %p450 = pneg %p246
        $region46: #{global_residual_forward_pallas.1} parent=11 // pred_check_branch
          %452 = sbr.rel (%p450) target = $region48
        $region47: #{global_residual_forward_pallas.1} parent=11 // pred_region
          %s454 = ssub.s32 64, 64
          %455 = vsyncadd [#allocation21], %s454
          %s457 = sshll.u32 [#allocation20], 4
          %s458 = int_to_ptr.vmem [resolvable:$true] %s457
          %460 = dma.hbm_to_vmem [thread:$0]  %s9, 64, %s458, [#allocation21]
        $region48: #{global_residual_forward_pallas.1} parent=11 // pred_fallthru
          _
        // Predicated region
        $region49: #{global_residual_forward_pallas.1} parent=11 // pred_check
          %p461 = pneg %p267
        $region50: #{global_residual_forward_pallas.1} parent=11 // pred_check_branch
          %463 = sbr.rel (%p461) target = $region52
        $region51: #{global_residual_forward_pallas.1} parent=11 // pred_region
          %s465 = ssub.s32 32, 32
          %466 = vsyncadd [#allocation21], %s465
          %s468 = sshll.u32 [#allocation22], 4
          %s469 = int_to_ptr.vmem [resolvable:$true] %s468
          %471 = dma.hbm_to_vmem [thread:$0]  %s10, 32, %s469, [#allocation21]
        $region52: #{global_residual_forward_pallas.1} parent=11 // pred_fallthru
          _
        // Predicated region
        $region53: #{global_residual_forward_pallas.1} parent=11 // pred_check
          %p472 = pneg %p288
        $region54: #{global_residual_forward_pallas.1} parent=11 // pred_check_branch
          %474 = sbr.rel (%p472) target = $region56
        $region55: #{global_residual_forward_pallas.1} parent=11 // pred_region
          %s476 = ssub.s32 32, 32
          %477 = vsyncadd [#allocation24], %s476
          %s479 = sshll.u32 [#allocation23], 4
          %s480 = int_to_ptr.vmem [resolvable:$true] %s479
          %482 = dma.hbm_to_vmem [thread:$0]  %s11, 32, %s480, [#allocation24]
        $region56: #{global_residual_forward_pallas.1} parent=11 // pred_fallthru
          _
        // Predicated region
        $region57: #{global_residual_forward_pallas.1} parent=11 // pred_check
          %p483 = pneg %p309
        $region58: #{global_residual_forward_pallas.1} parent=11 // pred_check_branch
          %485 = sbr.rel (%p483) target = $region60
        $region59: #{global_residual_forward_pallas.1} parent=11 // pred_region
          %s487 = ssub.s32 48, 48
          %488 = vsyncadd [#allocation24], %s487
          %s490 = sshll.u32 [#allocation25], 4
          %s491 = int_to_ptr.vmem [resolvable:$true] %s490
          %493 = dma.hbm_to_vmem [thread:$0]  %s12, 48, %s491, [#allocation24]
        $region60: #{global_residual_forward_pallas.1} parent=11 // pred_fallthru
          _
      $region12: #{global_residual_forward_pallas.1} parent=5 // pred_fallthru
        _
      %p494 = scmp.lt.s32.totalorder %s31, 2
      // Predicated region
      $region61: #{global_residual_forward_pallas.1} parent=5 // pred_check
        %p495 = pneg %p494
      $region62: #{global_residual_forward_pallas.1} parent=5 // pred_check_branch
        %497 = sbr.rel (%p495) target = $region64
      $region63: #{global_residual_forward_pallas.1} parent=5 // pred_region
        // Predicated region
        $region65: #{global_residual_forward_pallas.1} parent=63 // pred_check
          %p498 = pneg %p51
        $region66: #{global_residual_forward_pallas.1} parent=63 // pred_check_branch
          %500 = sbr.rel (%p498) target = $region68
        $region67: #{global_residual_forward_pallas.1} parent=63 // pred_region
          %s501 = sand.u32 %s41, 1
          %s502 = scalar_lea.sflag [#allocation6], %s501
          %s503 = sand.u32 %s41, 1
          %s504 = smul.addr %s503, 10
          %s505 = scalar_lea.vmem [#allocation5], %s504
          %s507 = ssub.s32 160, 160
          %508 = vsyncadd %s502, %s507
          %s509 = smul.addr %s31, 5
          %s510 = smul.addr %s509, 32
          %s511 = scalar_lea.hbm %s0, %s510
          %s513 = sshll.u32 %s505, 4
          %s514 = int_to_ptr.vmem [resolvable:$true] %s513
          %516 = dma.hbm_to_vmem [thread:$0]  %s511, 160, %s514, %s502
        $region68: #{global_residual_forward_pallas.1} parent=63 // pred_fallthru
          _
      $region64: #{global_residual_forward_pallas.1} parent=5 // pred_fallthru
        _
      %p517 = scmp.le.s32.totalorder 1, %s31
      %p518 = scmp.lt.s32.totalorder %s31, 3
      %p519 = pnand %p517, %p518
      %p520 = pneg %p519
      // Predicated region
      $region69: #{global_residual_forward_pallas.1} parent=5 // pred_check
        _
      $region70: #{global_residual_forward_pallas.1} parent=5 // pred_check_branch
        %522 = sbr.rel (%p519) target = $region72
      $region71: #{global_residual_forward_pallas.1} parent=5 // pred_region
        %s523 = ssub.s32 %s31, 1
        %s524 = sand.u32 %s44, 1
        %s525 = scalar_lea.sflag [#allocation6], %s524
        %s526 = sand.u32 %s44, 1
        %s527 = smul.addr %s526, 10
        %s528 = scalar_lea.vmem [#allocation5], %s527
        // Predicated region
        $region73: #{global_residual_forward_pallas.1} parent=71 // pred_check
          %p529 = pneg %p57
        $region74: #{global_residual_forward_pallas.1} parent=71 // pred_check_branch
          %531 = sbr.rel (%p529) target = $region76
        $region75: #{global_residual_forward_pallas.1} parent=71 // pred_region
          %532 = dma.done %s525, 160
        $region76: #{global_residual_forward_pallas.1} parent=71 // pred_fallthru
          _
        // Predicated region
        $region77: #{global_residual_forward_pallas.1} parent=71 // pred_check
          %p533 = pneg %p78
        $region78: #{global_residual_forward_pallas.1} parent=71 // pred_check_branch
          %535 = sbr.rel (%p533) target = $region80
        $region79: #{global_residual_forward_pallas.1} parent=71 // pred_region
          %536 = dma.done [#allocation9], 64
        $region80: #{global_residual_forward_pallas.1} parent=71 // pred_fallthru
          _
        // Predicated region
        $region81: #{global_residual_forward_pallas.1} parent=71 // pred_check
          %p537 = pneg %p99
        $region82: #{global_residual_forward_pallas.1} parent=71 // pred_check_branch
          %539 = sbr.rel (%p537) target = $region84
        $region83: #{global_residual_forward_pallas.1} parent=71 // pred_region
          %540 = dma.done [#allocation9], 64
        $region84: #{global_residual_forward_pallas.1} parent=71 // pred_fallthru
          _
        // Predicated region
        $region85: #{global_residual_forward_pallas.1} parent=71 // pred_check
          %p541 = pneg %p120
        $region86: #{global_residual_forward_pallas.1} parent=71 // pred_check_branch
          %543 = sbr.rel (%p541) target = $region88
        $region87: #{global_residual_forward_pallas.1} parent=71 // pred_region
          %544 = dma.done [#allocation12], 128
        $region88: #{global_residual_forward_pallas.1} parent=71 // pred_fallthru
          _
        // Predicated region
        $region89: #{global_residual_forward_pallas.1} parent=71 // pred_check
          %p545 = pneg %p141
        $region90: #{global_residual_forward_pallas.1} parent=71 // pred_check_branch
          %547 = sbr.rel (%p545) target = $region92
        $region91: #{global_residual_forward_pallas.1} parent=71 // pred_region
          %548 = dma.done [#allocation12], 256
        $region92: #{global_residual_forward_pallas.1} parent=71 // pred_fallthru
          _
        // Predicated region
        $region93: #{global_residual_forward_pallas.1} parent=71 // pred_check
          %p549 = pneg %p162
        $region94: #{global_residual_forward_pallas.1} parent=71 // pred_check_branch
          %551 = sbr.rel (%p549) target = $region96
        $region95: #{global_residual_forward_pallas.1} parent=71 // pred_region
          %552 = dma.done [#allocation15], 256
        $region96: #{global_residual_forward_pallas.1} parent=71 // pred_fallthru
          _
        // Predicated region
        $region97: #{global_residual_forward_pallas.1} parent=71 // pred_check
          %p553 = pneg %p183
        $region98: #{global_residual_forward_pallas.1} parent=71 // pred_check_branch
          %555 = sbr.rel (%p553) target = $region100
        $region99: #{global_residual_forward_pallas.1} parent=71 // pred_region
          %556 = dma.done [#allocation15], 128
        $region100: #{global_residual_forward_pallas.1} parent=71 // pred_fallthru
          _
        // Predicated region
        $region101: #{global_residual_forward_pallas.1} parent=71 // pred_check
          %p557 = pneg %p204
        $region102: #{global_residual_forward_pallas.1} parent=71 // pred_check_branch
          %559 = sbr.rel (%p557) target = $region104
        $region103: #{global_residual_forward_pallas.1} parent=71 // pred_region
          %560 = dma.done [#allocation18], 128
        $region104: #{global_residual_forward_pallas.1} parent=71 // pred_fallthru
          _
        // Predicated region
        $region105: #{global_residual_forward_pallas.1} parent=71 // pred_check
          %p561 = pneg %p225
        $region106: #{global_residual_forward_pallas.1} parent=71 // pred_check_branch
          %563 = sbr.rel (%p561) target = $region108
        $region107: #{global_residual_forward_pallas.1} parent=71 // pred_region
          %564 = dma.done [#allocation18], 128
        $region108: #{global_residual_forward_pallas.1} parent=71 // pred_fallthru
          _
        // Predicated region
        $region109: #{global_residual_forward_pallas.1} parent=71 // pred_check
          %p565 = pneg %p246
        $region110: #{global_residual_forward_pallas.1} parent=71 // pred_check_branch
          %567 = sbr.rel (%p565) target = $region112
        $region111: #{global_residual_forward_pallas.1} parent=71 // pred_region
          %568 = dma.done [#allocation21], 64
        $region112: #{global_residual_forward_pallas.1} parent=71 // pred_fallthru
          _
        // Predicated region
        $region113: #{global_residual_forward_pallas.1} parent=71 // pred_check
          %p569 = pneg %p267
        $region114: #{global_residual_forward_pallas.1} parent=71 // pred_check_branch
          %571 = sbr.rel (%p569) target = $region116
        $region115: #{global_residual_forward_pallas.1} parent=71 // pred_region
          %572 = dma.done [#allocation21], 32
        $region116: #{global_residual_forward_pallas.1} parent=71 // pred_fallthru
          _
        // Predicated region
        $region117: #{global_residual_forward_pallas.1} parent=71 // pred_check
          %p573 = pneg %p288
        $region118: #{global_residual_forward_pallas.1} parent=71 // pred_check_branch
          %575 = sbr.rel (%p573) target = $region120
        $region119: #{global_residual_forward_pallas.1} parent=71 // pred_region
          %576 = dma.done [#allocation24], 32
        $region120: #{global_residual_forward_pallas.1} parent=71 // pred_fallthru
          _
        // Predicated region
        $region121: #{global_residual_forward_pallas.1} parent=71 // pred_check
          %p577 = pneg %p309
        $region122: #{global_residual_forward_pallas.1} parent=71 // pred_check_branch
          %579 = sbr.rel (%p577) target = $region124
        $region123: #{global_residual_forward_pallas.1} parent=71 // pred_region
          %580 = dma.done [#allocation24], 48
        $region124: #{global_residual_forward_pallas.1} parent=71 // pred_fallthru
          _
        %s581 = sand.u32 %s44, 1
        %s582 = scalar_lea.sflag [#allocation6], %s581
        %s583 = sand.u32 %s44, 1
        %s584 = smul.addr %s583, 10
        %s585 = scalar_lea.vmem [#allocation5], %s584
        %p586 = pneg %p57
        %p587 = pneg %p54
        %p588 = pneg %p78
        %p589 = pneg %p75
        %p590 = pneg %p99
        %p591 = pneg %p96
        %p592 = pneg %p120
        %p593 = pneg %p117
        %p594 = pneg %p141
        %p595 = pneg %p138
        %p596 = pneg %p162
        %p597 = pneg %p159
        %p598 = pneg %p183
        %p599 = pneg %p180
        %p600 = pneg %p204
        %p601 = pneg %p201
        %p602 = pneg %p225
        %p603 = pneg %p222
        %p604 = pneg %p246
        %p605 = pneg %p243
        %p606 = pneg %p267
        %p607 = pneg %p264
        %p608 = pneg %p288
        %p609 = pneg %p285
        %p610 = pneg %p309
        %p611 = pneg %p306
        %p612 = pneg %p335
        %p613 = pneg %p332
        %s614 = sand.u32 %s322, 1
        %s615 = scalar_lea.sflag [#allocation7], %s614
        %s616 = sand.u32 %s322, 1
        %s617 = smul.addr %s616, 6
        %s618 = scalar_lea.vmem [#allocation26], %s617
        %v620 = vld [vmem:[#allocation25] sm:$0x7]
        %621 = vst [vmem:[#allocation2] sm:$0xff] 0
        %622 = vst [vmem:[#allocation2 + $0x28] sm:$0xff] 0
        %623 = vst [vmem:[#allocation2 + $0x20] sm:$0xff] 0
        %624 = vst [vmem:[#allocation2 + $0x48] sm:$0xff] 0
        %v625 = vld [vmem:[%s528] sm:$0xff]
        %v627 = vcombine.high %v625, %v625
        %v629 = vunpack.c.l.s4 1983009808
        %v630 = vunpack.c.0.s8 %v629
        %v631 = vlaneseq
        %v632 = vshrl.u32 %v631, 7
        %v633 = vsub.s32 %v630, %v632
        %v634 = vrot.slane %v625, %v633
        %v636 = vunpack.c.l.s4 1983009808
        %v637 = vunpack.c.0.s8 %v636
        %v638 = vlaneseq
        %v639 = vshrl.u32 %v638, 7
        %v640 = vsub.s32 %v637, %v639
        %v641 = vrot.slane %v627, %v640
        %v642 = vcombine.high %v634, %v634
        %v643 = vcombine.high %v641, %v641
        %644 = vrot.lane.b32.xlu0 %v634, 19
        %v645 = vpop.permute.xlu0 %644
        %646 = vrot.lane.b32.xlu0 %v642, 19
        %v647 = vpop.permute.xlu0 %646
        %648 = vrot.lane.b32.xlu0 %v641, 19
        %v649 = vpop.permute.xlu0 %648
        %650 = vrot.lane.b32.xlu0 %v643, 19
        %v651 = vpop.permute.xlu0 %650
        %vm652 = vcmask 154624
        %v653 = vsel %vm652, %v645, %v647
        %v654 = vsel %vm652, %v647, %v649
        %v655 = vsel %vm652, %v649, %v651
        %659 = vst [vmem:[#allocation3] sm:$0x3] %v653
        %660 = vst [vmem:[#allocation3 + $0x8] sm:$0x3] %v654
        %661 = vst [vmem:[#allocation3 + $0x10] sm:$0x3] %v655
        %v662 = vld [vmem:[%s528] sm:$0xff]
        %v664 = vcombine.low %v662, %v662
        %v666 = vunpack.c.l.s4 1983009808
        %v667 = vunpack.c.0.s8 %v666
        %v668 = vlaneseq
        %v669 = vshrl.u32 %v668, 7
        %v670 = vsub.s32 %v667, %v669
        %v671 = vrot.slane %v664, %v670
        %v673 = vunpack.c.l.s4 1983009808
        %v674 = vunpack.c.0.s8 %v673
        %v675 = vlaneseq
        %v676 = vshrl.u32 %v675, 7
        %v677 = vsub.s32 %v674, %v676
        %v678 = vrot.slane %v662, %v677
        %v679 = vcombine.high %v671, %v671
        %v680 = vcombine.high %v678, %v678
        %681 = vrot.lane.b32.xlu0 %v671, 18
        %v682 = vpop.permute.xlu0 %681
        %683 = vrot.lane.b32.xlu0 %v679, 18
        %v684 = vpop.permute.xlu0 %683
        %685 = vrot.lane.b32.xlu0 %v678, 18
        %v686 = vpop.permute.xlu0 %685
        %687 = vrot.lane.b32.xlu0 %v680, 18
        %v688 = vpop.permute.xlu0 %687
        %vm689 = vcmask 146432
        %v690 = vsel %vm689, %v682, %v684
        %v691 = vsel %vm689, %v684, %v686
        %v692 = vsel %vm689, %v686, %v688
        %696 = vst [vmem:[#allocation3] sm:$0xc] %v690
        %697 = vst [vmem:[#allocation3 + $0x8] sm:$0xc] %v691
        %698 = vst [vmem:[#allocation3 + $0x10] sm:$0xc] %v692
        %v699 = vld [vmem:[%s528] sm:$0xff]
        %v701 = vcombine.high %v699, %v699
        %v703 = vunpack.c.l.s4 1983009808
        %v704 = vunpack.c.0.s8 %v703
        %v705 = vlaneseq
        %v706 = vshrl.u32 %v705, 7
        %v707 = vsub.s32 %v704, %v706
        %v708 = vrot.slane %v699, %v707
        %v710 = vunpack.c.l.s4 1983009808
        %v711 = vunpack.c.0.s8 %v710
        %v712 = vlaneseq
        %v713 = vshrl.u32 %v712, 7
        %v714 = vsub.s32 %v711, %v713
        %v715 = vrot.slane %v701, %v714
        %v716 = vcombine.low %v708, %v708
        %v717 = vcombine.low %v715, %v715
        %718 = vrot.lane.b32.xlu0 %v716, 17
        %v719 = vpop.permute.xlu0 %718
        %720 = vrot.lane.b32.xlu0 %v708, 17
        %v721 = vpop.permute.xlu0 %720
        %722 = vrot.lane.b32.xlu0 %v717, 17
        %v723 = vpop.permute.xlu0 %722
        %724 = vrot.lane.b32.xlu0 %v715, 17
        %v725 = vpop.permute.xlu0 %724
        %vm726 = vcmask 138240
        %v727 = vsel %vm726, %v719, %v721
        %v728 = vsel %vm726, %v721, %v723
        %v729 = vsel %vm726, %v723, %v725
        %733 = vst [vmem:[#allocation3] sm:$0x30] %v727
        %734 = vst [vmem:[#allocation3 + $0x8] sm:$0x30] %v728
        %735 = vst [vmem:[#allocation3 + $0x10] sm:$0x30] %v729
        %v736 = vld [vmem:[%s528] sm:$0xff]
        %v738 = vcombine.low %v736, %v736
        %v740 = vunpack.c.l.s4 1983009808
        %v741 = vunpack.c.0.s8 %v740
        %v742 = vlaneseq
        %v743 = vshrl.u32 %v742, 7
        %v744 = vsub.s32 %v741, %v743
        %v745 = vrot.slane %v738, %v744
        %v747 = vunpack.c.l.s4 1983009808
        %v748 = vunpack.c.0.s8 %v747
        %v749 = vlaneseq
        %v750 = vshrl.u32 %v749, 7
        %v751 = vsub.s32 %v748, %v750
        %v752 = vrot.slane %v736, %v751
        %v753 = vcombine.low %v745, %v745
        %v754 = vcombine.low %v752, %v752
        %755 = vrot.lane.b32.xlu0 %v753, 1
        %v756 = vpop.permute.xlu0 %755
        %757 = vrot.lane.b32.xlu0 %v745, 1
        %v758 = vpop.permute.xlu0 %757
        %759 = vrot.lane.b32.xlu0 %v754, 1
        %v760 = vpop.permute.xlu0 %759
        %761 = vrot.lane.b32.xlu0 %v752, 1
        %v762 = vpop.permute.xlu0 %761
        %vm763 = vcmask 7168
        %v764 = vsel %vm763, %v756, %v758
        %v765 = vsel %vm763, %v758, %v760
        %v766 = vsel %vm763, %v760, %v762
        %770 = vst [vmem:[#allocation3] sm:$0xc0] %v764
        %771 = vst [vmem:[#allocation3 + $0x8] sm:$0xc0] %v765
        %772 = vst [vmem:[#allocation3 + $0x10] sm:$0xc0] %v766
        %v773 = vld [vmem:[%s528 + $0x2] sm:$0x3f]
        %v775 = vcombine.high %v773, %v773
        %v777 = vunpack.c.l.s4 1983009808
        %v778 = vunpack.c.0.s8 %v777
        %v779 = vlaneseq
        %v780 = vshrl.u32 %v779, 7
        %v781 = vsub.s32 %v778, %v780
        %v782 = vrot.slane %v773, %v781
        %v784 = vunpack.c.l.s4 1983009808
        %v785 = vunpack.c.0.s8 %v784
        %v786 = vlaneseq
        %v787 = vshrl.u32 %v786, 7
        %v788 = vsub.s32 %v785, %v787
        %v789 = vrot.slane %v775, %v788
        %v790 = vcombine.high %v782, %v782
        %794 = vst [vmem:[#allocation3 + $0x18] sm:$0x3] %v782
        %795 = vst [vmem:[#allocation3 + $0x20] sm:$0x3] %v790
        %796 = vst [vmem:[#allocation3 + $0x28] sm:$0x3] %v789
        %v797 = vld [vmem:[%s528 + $0x2] sm:$0xff]
        %v799 = vcombine.low %v797, %v797
        %v801 = vunpack.c.l.s4 1983009808
        %v802 = vunpack.c.0.s8 %v801
        %v803 = vlaneseq
        %v804 = vshrl.u32 %v803, 7
        %v805 = vsub.s32 %v802, %v804
        %v806 = vrot.slane %v799, %v805
        %v808 = vunpack.c.l.s4 1983009808
        %v809 = vunpack.c.0.s8 %v808
        %v810 = vlaneseq
        %v811 = vshrl.u32 %v810, 7
        %v812 = vsub.s32 %v809, %v811
        %v813 = vrot.slane %v797, %v812
        %v814 = vcombine.high %v806, %v806
        %v815 = vcombine.high %v813, %v813
        %816 = vrot.lane.b32.xlu0 %v806, 127
        %v817 = vpop.permute.xlu0 %816
        %818 = vrot.lane.b32.xlu0 %v814, 127
        %v819 = vpop.permute.xlu0 %818
        %820 = vrot.lane.b32.xlu0 %v813, 127
        %v821 = vpop.permute.xlu0 %820
        %822 = vrot.lane.b32.xlu0 %v815, 127
        %v823 = vpop.permute.xlu0 %822
        %vm824 = vcmask 1039360
        %v825 = vsel %vm824, %v817, %v819
        %v826 = vsel %vm824, %v819, %v821
        %v827 = vsel %vm824, %v821, %v823
        %831 = vst [vmem:[#allocation3 + $0x18] sm:$0xc] %v825
        %832 = vst [vmem:[#allocation3 + $0x20] sm:$0xc] %v826
        %833 = vst [vmem:[#allocation3 + $0x28] sm:$0xc] %v827
        %v834 = vld [vmem:[%s528 + $0x2] sm:$0xff]
        %v836 = vcombine.high %v834, %v834
        %v838 = vunpack.c.l.s4 1983009808
        %v839 = vunpack.c.0.s8 %v838
        %v840 = vlaneseq
        %v841 = vshrl.u32 %v840, 7
        %v842 = vsub.s32 %v839, %v841
        %v843 = vrot.slane %v834, %v842
        %v845 = vunpack.c.l.s4 1983009808
        %v846 = vunpack.c.0.s8 %v845
        %v847 = vlaneseq
        %v848 = vshrl.u32 %v847, 7
        %v849 = vsub.s32 %v846, %v848
        %v850 = vrot.slane %v836, %v849
        %v851 = vcombine.low %v843, %v843
        %v852 = vcombine.low %v850, %v850
        %853 = vrot.lane.b32.xlu0 %v851, 111
        %v854 = vpop.permute.xlu0 %853
        %855 = vrot.lane.b32.xlu0 %v843, 111
        %v856 = vpop.permute.xlu0 %855
        %857 = vrot.lane.b32.xlu0 %v852, 111
        %v858 = vpop.permute.xlu0 %857
        %859 = vrot.lane.b32.xlu0 %v850, 111
        %v860 = vpop.permute.xlu0 %859
        %vm861 = vcmask 908288
        %v862 = vsel %vm861, %v854, %v856
        %v863 = vsel %vm861, %v856, %v858
        %v864 = vsel %vm861, %v858, %v860
        %868 = vst [vmem:[#allocation3 + $0x18] sm:$0x30] %v862
        %869 = vst [vmem:[#allocation3 + $0x20] sm:$0x30] %v863
        %870 = vst [vmem:[#allocation3 + $0x28] sm:$0x30] %v864
        %v871 = vld [vmem:[%s528 + $0x2] sm:$0xff]
        %v873 = vcombine.low %v871, %v871
        %v875 = vunpack.c.l.s4 1983009808
        %v876 = vunpack.c.0.s8 %v875
        %v877 = vlaneseq
        %v878 = vshrl.u32 %v877, 7
        %v879 = vsub.s32 %v876, %v878
        %v880 = vrot.slane %v873, %v879
        %v882 = vunpack.c.l.s4 1983009808
        %v883 = vunpack.c.0.s8 %v882
        %v884 = vlaneseq
        %v885 = vshrl.u32 %v884, 7
        %v886 = vsub.s32 %v883, %v885
        %v887 = vrot.slane %v871, %v886
        %v888 = vcombine.low %v880, %v880
        %v889 = vcombine.low %v887, %v887
        %890 = vrot.lane.b32.xlu0 %v888, 110
        %v891 = vpop.permute.xlu0 %890
        %892 = vrot.lane.b32.xlu0 %v880, 110
        %v893 = vpop.permute.xlu0 %892
        %894 = vrot.lane.b32.xlu0 %v889, 110
        %v895 = vpop.permute.xlu0 %894
        %896 = vrot.lane.b32.xlu0 %v887, 110
        %v897 = vpop.permute.xlu0 %896
        %vm898 = vcmask 900096
        %v899 = vsel %vm898, %v891, %v893
        %v900 = vsel %vm898, %v893, %v895
        %v901 = vsel %vm898, %v895, %v897
        %905 = vst [vmem:[#allocation3 + $0x18] sm:$0xc0] %v899
        %906 = vst [vmem:[#allocation3 + $0x20] sm:$0xc0] %v900
        %907 = vst [vmem:[#allocation3 + $0x28] sm:$0xc0] %v901
        %v908 = vld [vmem:[%s528 + $0x2] sm:$0xff]
        %v910 = vcombine.high %v908, %v908
        %v912 = vunpack.c.l.s4 1983009808
        %v913 = vunpack.c.0.s8 %v912
        %v914 = vlaneseq
        %v915 = vshrl.u32 %v914, 7
        %v916 = vsub.s32 %v913, %v915
        %v917 = vrot.slane %v908, %v916
        %v919 = vunpack.c.l.s4 1983009808
        %v920 = vunpack.c.0.s8 %v919
        %v921 = vlaneseq
        %v922 = vshrl.u32 %v921, 7
        %v923 = vsub.s32 %v920, %v922
        %v924 = vrot.slane %v910, %v923
        %v925 = vcombine.high %v917, %v917
        %v926 = vcombine.high %v924, %v924
        %927 = vrot.lane.b32.xlu0 %v917, 109
        %v928 = vpop.permute.xlu0 %927
        %929 = vrot.lane.b32.xlu0 %v925, 109
        %v930 = vpop.permute.xlu0 %929
        %931 = vrot.lane.b32.xlu0 %v924, 109
        %v932 = vpop.permute.xlu0 %931
        %933 = vrot.lane.b32.xlu0 %v926, 109
        %v934 = vpop.permute.xlu0 %933
        %vm935 = vcmask 891904
        %v936 = vsel %vm935, %v928, %v930
        %v937 = vsel %vm935, %v930, %v932
        %v938 = vsel %vm935, %v932, %v934
        %942 = vst [vmem:[#allocation3 + $0x30] sm:$0x3] %v936
        %943 = vst [vmem:[#allocation3 + $0x38] sm:$0x3] %v937
        %944 = vst [vmem:[#allocation3 + $0x40] sm:$0x3] %v938
        %v945 = vld [vmem:[#allocation8] sm:$0xf]
        %v946 = vld [vmem:[#allocation3] sm:$0xff]
        %v947 = vld [vmem:[#allocation3 + $0x8] sm:$0xff]
        %v948 = vld [vmem:[#allocation3 + $0x10] sm:$0xff]
        %v949 = vld [vmem:[#allocation3 + $0x18] sm:$0xff]
        %v950 = vld [vmem:[#allocation3 + $0x20] sm:$0xff]
        %v951 = vld [vmem:[#allocation3 + $0x28] sm:$0xff]
        %v952 = vld [vmem:[#allocation3 + $0x30] sm:$0x3]
        %v953 = vld [vmem:[#allocation3 + $0x38] sm:$0x3]
        %v954 = vld [vmem:[#allocation3 + $0x40] sm:$0x3]
        %v955 = vld [vmem:[#allocation10] sm:$0xf]
        %v956 = vunpack.c.l.bf16 %v955
        %958 = vset.pattern.permute.xlu0 0
        %959 = vperm.xlu0 %958, %v956
        %v960 = vpop.permute.xlu0 %959
        %vm962 = vcmask 293888
        %v964 = vsel %vm962, %v945, 0
        %vm966 = vcmask 1041408
        %v968 = vsel %vm966, %v952, 0
        %v971 = vsel %vm966, %v953, 0
        %v974 = vsel %vm966, %v954, 0
        %976 = vmatprep.subr.bf16.mxu0 %v947
        %977 = vmatpush1.bf16.msra.mxu0 %v946
        %978 = vmatprep.subr.bf16.mxu0 %v950
        %979 = vmatpush1.bf16.msra.mxu0 %v949
        %980 = vmatprep.subr.bf16.mxu0 %v971
        %981 = vmatpush1.bf16.msra.mxu0 %v968
        %982 = vmatprep.subr.bf16.mxu0 0
        %983 = vmatpush1.bf16.msra.mxu0 0
        %984 = vmatprep.subr.bf16.mxu0 0
        %985 = vmatpush1.bf16.msra.mxu0 0
        %986 = vmatprep.subr.bf16.mxu0 0
        %987 = vmatpush1.bf16.msra.mxu0 0
        %988 = vmatprep.subr.bf16.mxu0 0
        %989 = vmatpush1.bf16.msra.mxu0 0
        %990 = vmatprep.subr.bf16.mxu0 0
        %991 = vmatpush1.bf16.msra.mxu0 0
        %992 = vmatprep.subr.bf16.mxu0 0
        %993 = vmatpush1.bf16.msra.mxu0 0
        %994 = vmatprep.subr.bf16.mxu0 0
        %995 = vmatpush1.bf16.msra.mxu0 0
        %996 = vmatprep.subr.bf16.mxu0 0
        %997 = vmatpush1.bf16.msra.mxu0 0
        %998 = vmatprep.subr.bf16.mxu0 0
        %999 = vmatpush1.bf16.msra.mxu0 0
        %1000 = vmatprep.subr.bf16.mxu0 0
        %1001 = vmatpush1.bf16.msra.mxu0 0
        %1002 = vmatprep.subr.bf16.mxu0 0
        %1003 = vmatpush1.bf16.msra.mxu0 0
        %1004 = vmatprep.subr.bf16.mxu0 0
        %1005 = vmatpush1.bf16.msra.mxu0 0
        %1006 = vmatprep.subr.bf16.mxu0 0
        %1007 = vmatpush1.bf16.msra.mxu0 0
        %1008 = vmatprep.mubr.bf16.mxu0 0
        %1009 = vmatmul.mubr.bf16.gmra.mrb[0].mxu0 %v964
        %v1010 = vpop.f32.mrb[0].mxu0
        %v1011 = vadd.f32 %v960, %v1010
        %v1012 = vpop.f32.mrb[0].mxu0
        %v1013 = vadd.f32 %v960, %v1012
        %v1014 = vpop.f32.mrb[0].mxu0
        %v1015 = vpop.f32.mrb[0].mxu0
        %1016 = vdwg.mxu0
        %1017 = vmatprep.subr.bf16.mxu0 0
        %1018 = vmatpush1.bf16.msra.mxu0 %v948
        %1019 = vmatprep.subr.bf16.mxu0 0
        %1020 = vmatpush1.bf16.msra.mxu0 %v951
        %1021 = vmatprep.subr.bf16.mxu0 0
        %1022 = vmatpush1.bf16.msra.mxu0 %v974
        %1023 = vmatprep.subr.bf16.mxu0 0
        %1024 = vmatpush1.bf16.msra.mxu0 0
        %1025 = vmatprep.subr.bf16.mxu0 0
        %1026 = vmatpush1.bf16.msra.mxu0 0
        %1027 = vmatprep.subr.bf16.mxu0 0
        %1028 = vmatpush1.bf16.msra.mxu0 0
        %1029 = vmatprep.subr.bf16.mxu0 0
        %1030 = vmatpush1.bf16.msra.mxu0 0
        %1031 = vmatprep.subr.bf16.mxu0 0
        %1032 = vmatpush1.bf16.msra.mxu0 0
        %1033 = vmatprep.subr.bf16.mxu0 0
        %1034 = vmatpush1.bf16.msra.mxu0 0
        %1035 = vmatprep.subr.bf16.mxu0 0
        %1036 = vmatpush1.bf16.msra.mxu0 0
        %1037 = vmatprep.subr.bf16.mxu0 0
        %1038 = vmatpush1.bf16.msra.mxu0 0
        %1039 = vmatprep.subr.bf16.mxu0 0
        %1040 = vmatpush1.bf16.msra.mxu0 0
        %1041 = vmatprep.subr.bf16.mxu0 0
        %1042 = vmatpush1.bf16.msra.mxu0 0
        %1043 = vmatprep.subr.bf16.mxu0 0
        %1044 = vmatpush1.bf16.msra.mxu0 0
        %1045 = vmatprep.subr.bf16.mxu0 0
        %1046 = vmatpush1.bf16.msra.mxu0 0
        %1047 = vmatprep.subr.bf16.mxu0 0
        %1048 = vmatpush1.bf16.msra.mxu0 0
        %1049 = vmatprep.mubr.bf16.mxu0 0
        %1050 = vmatmul.mubr.bf16.gmra.mrb[0].mxu0 %v964
        %v1051 = vpop.f32.mrb[0].mxu0
        %v1052 = vadd.f32 %v960, %v1051
        %v1053 = vpop.f32.mrb[0].mxu0
        %v1054 = vpop.f32.mrb[0].mxu0
        %v1055 = vpop.f32.mrb[0].mxu0
        %1056 = vdwg.mxu0
        %v1058 = vlaneseq
        %v1059 = vshrl.u32 %v1058, 7
        %v1060 = vsub.s32 0, %v1059
        %v1061 = vrot.slane %v620, %v1060
        %v1062 = vlaneseq
        %v1063 = vshrl.u32 %v1062, 7
        %v1064 = vsub.s32 1, %v1063
        %v1065 = vrot.slane %v620, %v1064
        %v1066 = vlaneseq
        %v1067 = vshrl.u32 %v1066, 7
        %v1068 = vsub.s32 2, %v1067
        %v1069 = vrot.slane %v620, %v1068
        %v1073 = vmul.f32 %v1011, %v1061
        %v1074 = vmul.f32 %v1013, %v1065
        %v1075 = vmul.f32 %v1052, %v1069
        %v1076 = vpack.c.bf16 %v1073, %v1073
        %v1077 = vpack.c.bf16 %v1074, %v1074
        %v1078 = vpack.c.bf16 %v1075, %v1075
        %1079 = vst [vmem:[#allocation2 + $0x8] sm:$0xf] %v1076
        %1080 = vst [vmem:[#allocation2 + $0x10] sm:$0xf] %v1077
        %1081 = vst [vmem:[#allocation2 + $0x18] sm:$0xf] %v1078
        %v1082 = vld [vmem:[#allocation2] sm:$0xf]
        %v1083 = vld [vmem:[#allocation2 + $0x8] sm:$0xf]
        %v1084 = vld [vmem:[#allocation2 + $0x10] sm:$0xf]
        %v1085 = vld [vmem:[#allocation2 + $0x18] sm:$0xf]
        %1090 = vrot.lane.b32.xlu0 %v1082, 19
        %v1091 = vpop.permute.xlu0 %1090
        %1092 = vrot.lane.b32.xlu0 %v1083, 19
        %v1093 = vpop.permute.xlu0 %1092
        %1094 = vrot.lane.b32.xlu0 %v1084, 19
        %v1095 = vpop.permute.xlu0 %1094
        %1096 = vrot.lane.b32.xlu0 %v1085, 19
        %v1097 = vpop.permute.xlu0 %1096
        %v1098 = vsel %vm652, %v1091, %v1093
        %v1099 = vsel %vm652, %v1093, %v1095
        %v1100 = vsel %vm652, %v1095, %v1097
        %1104 = vst [vmem:[#allocation3] sm:$0xf] %v1098
        %1105 = vst [vmem:[#allocation3 + $0x8] sm:$0xf] %v1099
        %1106 = vst [vmem:[#allocation3 + $0x10] sm:$0xf] %v1100
        %v1107 = vld [vmem:[#allocation2] sm:$0xf]
        %v1108 = vld [vmem:[#allocation2 + $0x8] sm:$0xf]
        %v1109 = vld [vmem:[#allocation2 + $0x10] sm:$0xf]
        %v1110 = vld [vmem:[#allocation2 + $0x18] sm:$0xf]
        %v1115 = vrot.slane %v1107, 4
        %v1116 = vrot.slane %v1108, 4
        %v1117 = vrot.slane %v1109, 4
        %v1118 = vrot.slane %v1110, 4
        %1119 = vrot.lane.b32.xlu0 %v1115, 18
        %v1120 = vpop.permute.xlu0 %1119
        %1121 = vrot.lane.b32.xlu0 %v1116, 18
        %v1122 = vpop.permute.xlu0 %1121
        %1123 = vrot.lane.b32.xlu0 %v1117, 18
        %v1124 = vpop.permute.xlu0 %1123
        %1125 = vrot.lane.b32.xlu0 %v1118, 18
        %v1126 = vpop.permute.xlu0 %1125
        %v1127 = vsel %vm689, %v1120, %v1122
        %v1128 = vsel %vm689, %v1122, %v1124
        %v1129 = vsel %vm689, %v1124, %v1126
        %1133 = vst [vmem:[#allocation3] sm:$0xf0] %v1127
        %1134 = vst [vmem:[#allocation3 + $0x8] sm:$0xf0] %v1128
        %1135 = vst [vmem:[#allocation3 + $0x10] sm:$0xf0] %v1129
        %v1136 = vld [vmem:[#allocation2] sm:$0xf]
        %v1137 = vld [vmem:[#allocation2 + $0x8] sm:$0xf]
        %v1138 = vld [vmem:[#allocation2 + $0x10] sm:$0xf]
        %v1139 = vld [vmem:[#allocation2 + $0x18] sm:$0xf]
        %1144 = vrot.lane.b32.xlu0 %v1136, 17
        %v1145 = vpop.permute.xlu0 %1144
        %1146 = vrot.lane.b32.xlu0 %v1137, 17
        %v1147 = vpop.permute.xlu0 %1146
        %1148 = vrot.lane.b32.xlu0 %v1138, 17
        %v1149 = vpop.permute.xlu0 %1148
        %1150 = vrot.lane.b32.xlu0 %v1139, 17
        %v1151 = vpop.permute.xlu0 %1150
        %v1152 = vsel %vm726, %v1145, %v1147
        %v1153 = vsel %vm726, %v1147, %v1149
        %v1154 = vsel %vm726, %v1149, %v1151
        %1158 = vst [vmem:[#allocation3 + $0x18] sm:$0xf] %v1152
        %1159 = vst [vmem:[#allocation3 + $0x20] sm:$0xf] %v1153
        %1160 = vst [vmem:[#allocation3 + $0x28] sm:$0xf] %v1154
        %v1161 = vld [vmem:[#allocation2] sm:$0xf]
        %v1162 = vld [vmem:[#allocation2 + $0x8] sm:$0xf]
        %v1163 = vld [vmem:[#allocation2 + $0x10] sm:$0xf]
        %v1164 = vld [vmem:[#allocation2 + $0x18] sm:$0xf]
        %v1169 = vrot.slane %v1161, 4
        %v1170 = vrot.slane %v1162, 4
        %v1171 = vrot.slane %v1163, 4
        %v1172 = vrot.slane %v1164, 4
        %1173 = vrot.lane.b32.xlu0 %v1169, 1
        %v1174 = vpop.permute.xlu0 %1173
        %1175 = vrot.lane.b32.xlu0 %v1170, 1
        %v1176 = vpop.permute.xlu0 %1175
        %1177 = vrot.lane.b32.xlu0 %v1171, 1
        %v1178 = vpop.permute.xlu0 %1177
        %1179 = vrot.lane.b32.xlu0 %v1172, 1
        %v1180 = vpop.permute.xlu0 %1179
        %v1181 = vsel %vm763, %v1174, %v1176
        %v1182 = vsel %vm763, %v1176, %v1178
        %v1183 = vsel %vm763, %v1178, %v1180
        %1187 = vst [vmem:[#allocation3 + $0x18] sm:$0xf0] %v1181
        %1188 = vst [vmem:[#allocation3 + $0x20] sm:$0xf0] %v1182
        %1189 = vst [vmem:[#allocation3 + $0x28] sm:$0xf0] %v1183
        %v1190 = vld [vmem:[#allocation2 + $0x8] sm:$0xf]
        %v1191 = vld [vmem:[#allocation2 + $0x10] sm:$0xf]
        %v1192 = vld [vmem:[#allocation2 + $0x18] sm:$0xf]
        %1193 = vst [vmem:[#allocation3 + $0x30] sm:$0xf] %v1190
        %1194 = vst [vmem:[#allocation3 + $0x38] sm:$0xf] %v1191
        %1195 = vst [vmem:[#allocation3 + $0x40] sm:$0xf] %v1192
        %v1196 = vld [vmem:[#allocation2 + $0x8] sm:$0xf]
        %v1197 = vld [vmem:[#allocation2 + $0x10] sm:$0xf]
        %v1198 = vld [vmem:[#allocation2 + $0x18] sm:$0xf]
        %v1199 = vld [vmem:[#allocation2 + $0x20] sm:$0xf]
        %v1204 = vrot.slane %v1196, 4
        %v1205 = vrot.slane %v1197, 4
        %v1206 = vrot.slane %v1198, 4
        %v1207 = vrot.slane %v1199, 4
        %1208 = vrot.lane.b32.xlu0 %v1204, 127
        %v1209 = vpop.permute.xlu0 %1208
        %1210 = vrot.lane.b32.xlu0 %v1205, 127
        %v1211 = vpop.permute.xlu0 %1210
        %1212 = vrot.lane.b32.xlu0 %v1206, 127
        %v1213 = vpop.permute.xlu0 %1212
        %1214 = vrot.lane.b32.xlu0 %v1207, 127
        %v1215 = vpop.permute.xlu0 %1214
        %v1216 = vsel %vm824, %v1209, %v1211
        %v1217 = vsel %vm824, %v1211, %v1213
        %v1218 = vsel %vm824, %v1213, %v1215
        %1222 = vst [vmem:[#allocation3 + $0x30] sm:$0xf0] %v1216
        %1223 = vst [vmem:[#allocation3 + $0x38] sm:$0xf0] %v1217
        %1224 = vst [vmem:[#allocation3 + $0x40] sm:$0xf0] %v1218
        %v1225 = vld [vmem:[#allocation2 + $0x8] sm:$0xf]
        %v1226 = vld [vmem:[#allocation2 + $0x10] sm:$0xf]
        %v1227 = vld [vmem:[#allocation2 + $0x18] sm:$0xf]
        %v1228 = vld [vmem:[#allocation2 + $0x20] sm:$0xf]
        %1233 = vrot.lane.b32.xlu0 %v1225, 111
        %v1234 = vpop.permute.xlu0 %1233
        %1235 = vrot.lane.b32.xlu0 %v1226, 111
        %v1236 = vpop.permute.xlu0 %1235
        %1237 = vrot.lane.b32.xlu0 %v1227, 111
        %v1238 = vpop.permute.xlu0 %1237
        %1239 = vrot.lane.b32.xlu0 %v1228, 111
        %v1240 = vpop.permute.xlu0 %1239
        %v1241 = vsel %vm861, %v1234, %v1236
        %v1242 = vsel %vm861, %v1236, %v1238
        %v1243 = vsel %vm861, %v1238, %v1240
        %1247 = vst [vmem:[#allocation3 + $0x48] sm:$0xf] %v1241
        %1248 = vst [vmem:[#allocation3 + $0x50] sm:$0xf] %v1242
        %1249 = vst [vmem:[#allocation3 + $0x58] sm:$0xf] %v1243
        %v1250 = vld [vmem:[#allocation2 + $0x8] sm:$0xf]
        %v1251 = vld [vmem:[#allocation2 + $0x10] sm:$0xf]
        %v1252 = vld [vmem:[#allocation2 + $0x18] sm:$0xf]
        %v1253 = vld [vmem:[#allocation2 + $0x20] sm:$0xf]
        %v1258 = vrot.slane %v1250, 4
        %v1259 = vrot.slane %v1251, 4
        %v1260 = vrot.slane %v1252, 4
        %v1261 = vrot.slane %v1253, 4
        %1262 = vrot.lane.b32.xlu0 %v1258, 110
        %v1263 = vpop.permute.xlu0 %1262
        %1264 = vrot.lane.b32.xlu0 %v1259, 110
        %v1265 = vpop.permute.xlu0 %1264
        %1266 = vrot.lane.b32.xlu0 %v1260, 110
        %v1267 = vpop.permute.xlu0 %1266
        %1268 = vrot.lane.b32.xlu0 %v1261, 110
        %v1269 = vpop.permute.xlu0 %1268
        %v1270 = vsel %vm898, %v1263, %v1265
        %v1271 = vsel %vm898, %v1265, %v1267
        %v1272 = vsel %vm898, %v1267, %v1269
        %1276 = vst [vmem:[#allocation3 + $0x48] sm:$0xf0] %v1270
        %1277 = vst [vmem:[#allocation3 + $0x50] sm:$0xf0] %v1271
        %1278 = vst [vmem:[#allocation3 + $0x58] sm:$0xf0] %v1272
        %v1279 = vld [vmem:[#allocation2 + $0x8] sm:$0xf]
        %v1280 = vld [vmem:[#allocation2 + $0x10] sm:$0xf]
        %v1281 = vld [vmem:[#allocation2 + $0x18] sm:$0xf]
        %v1282 = vld [vmem:[#allocation2 + $0x20] sm:$0xf]
        %1287 = vrot.lane.b32.xlu0 %v1279, 109
        %v1288 = vpop.permute.xlu0 %1287
        %1289 = vrot.lane.b32.xlu0 %v1280, 109
        %v1290 = vpop.permute.xlu0 %1289
        %1291 = vrot.lane.b32.xlu0 %v1281, 109
        %v1292 = vpop.permute.xlu0 %1291
        %1293 = vrot.lane.b32.xlu0 %v1282, 109
        %v1294 = vpop.permute.xlu0 %1293
        %v1295 = vsel %vm935, %v1288, %v1290
        %v1296 = vsel %vm935, %v1290, %v1292
        %v1297 = vsel %vm935, %v1292, %v1294
        %1301 = vst [vmem:[#allocation3 + $0x60] sm:$0xf] %v1295
        %1302 = vst [vmem:[#allocation3 + $0x68] sm:$0xf] %v1296
        %1303 = vst [vmem:[#allocation3 + $0x70] sm:$0xf] %v1297
        %v1304 = vld [vmem:[#allocation11] sm:$0xf]
        %v1305 = vld [vmem:[#allocation3] sm:$0xff]
        %v1306 = vld [vmem:[#allocation3 + $0x8] sm:$0xff]
        %v1307 = vld [vmem:[#allocation3 + $0x10] sm:$0xff]
        %v1308 = vld [vmem:[#allocation3 + $0x18] sm:$0xff]
        %v1309 = vld [vmem:[#allocation3 + $0x20] sm:$0xff]
        %v1310 = vld [vmem:[#allocation3 + $0x28] sm:$0xff]
        %v1311 = vld [vmem:[#allocation3 + $0x30] sm:$0xff]
        %v1312 = vld [vmem:[#allocation3 + $0x38] sm:$0xff]
        %v1313 = vld [vmem:[#allocation3 + $0x40] sm:$0xff]
        %v1314 = vld [vmem:[#allocation3 + $0x48] sm:$0xff]
        %v1315 = vld [vmem:[#allocation3 + $0x50] sm:$0xff]
        %v1316 = vld [vmem:[#allocation3 + $0x58] sm:$0xff]
        %v1317 = vld [vmem:[#allocation3 + $0x60] sm:$0xf]
        %v1318 = vld [vmem:[#allocation3 + $0x68] sm:$0xf]
        %v1319 = vld [vmem:[#allocation3 + $0x70] sm:$0xf]
        %vm1320 = vcmask 588800
        %v1322 = vsel %vm1320, %v1304, 0
        %vm1324 = vcmask 1043456
        %v1326 = vsel %vm1324, %v1317, 0
        %v1329 = vsel %vm1324, %v1318, 0
        %v1332 = vsel %vm1324, %v1319, 0
        %1334 = vmatprep.subr.bf16.mxu0 %v1306
        %1335 = vmatpush1.bf16.msra.mxu0 %v1305
        %1336 = vmatprep.subr.bf16.mxu0 %v1309
        %1337 = vmatpush1.bf16.msra.mxu0 %v1308
        %1338 = vmatprep.subr.bf16.mxu0 %v1312
        %1339 = vmatpush1.bf16.msra.mxu0 %v1311
        %1340 = vmatprep.subr.bf16.mxu0 %v1315
        %1341 = vmatpush1.bf16.msra.mxu0 %v1314
        %1342 = vmatprep.subr.bf16.mxu0 %v1329
        %1343 = vmatpush1.bf16.msra.mxu0 %v1326
        %1344 = vmatprep.subr.bf16.mxu0 0
        %1345 = vmatpush1.bf16.msra.mxu0 0
        %1346 = vmatprep.subr.bf16.mxu0 0
        %1347 = vmatpush1.bf16.msra.mxu0 0
        %1348 = vmatprep.subr.bf16.mxu0 0
        %1349 = vmatpush1.bf16.msra.mxu0 0
        %1350 = vmatprep.subr.bf16.mxu0 0
        %1351 = vmatpush1.bf16.msra.mxu0 0
        %1352 = vmatprep.subr.bf16.mxu0 0
        %1353 = vmatpush1.bf16.msra.mxu0 0
        %1354 = vmatprep.subr.bf16.mxu0 0
        %1355 = vmatpush1.bf16.msra.mxu0 0
        %1356 = vmatprep.subr.bf16.mxu0 0
        %1357 = vmatpush1.bf16.msra.mxu0 0
        %1358 = vmatprep.subr.bf16.mxu0 0
        %1359 = vmatpush1.bf16.msra.mxu0 0
        %1360 = vmatprep.subr.bf16.mxu0 0
        %1361 = vmatpush1.bf16.msra.mxu0 0
        %1362 = vmatprep.subr.bf16.mxu0 0
        %1363 = vmatpush1.bf16.msra.mxu0 0
        %1364 = vmatprep.subr.bf16.mxu0 0
        %1365 = vmatpush1.bf16.msra.mxu0 0
        %1366 = vmatprep.mubr.bf16.mxu0 0
        %1367 = vmatmul.mubr.bf16.gmra.mrb[0].mxu0 %v1322
        %v1368 = vpop.f32.mrb[0].mxu0
        %v1369 = vadd.f32 0.0, %v1368
        %v1370 = vpop.f32.mrb[0].mxu0
        %v1371 = vadd.f32 0.0, %v1370
        %v1372 = vpop.f32.mrb[0].mxu0
        %v1373 = vpop.f32.mrb[0].mxu0
        %1374 = vdwg.mxu0
        %1375 = vmatprep.subr.bf16.mxu0 0
        %1376 = vmatpush1.bf16.msra.mxu0 %v1307
        %1377 = vmatprep.subr.bf16.mxu0 0
        %1378 = vmatpush1.bf16.msra.mxu0 %v1310
        %1379 = vmatprep.subr.bf16.mxu0 0
        %1380 = vmatpush1.bf16.msra.mxu0 %v1313
        %1381 = vmatprep.subr.bf16.mxu0 0
        %1382 = vmatpush1.bf16.msra.mxu0 %v1316
        %1383 = vmatprep.subr.bf16.mxu0 0
        %1384 = vmatpush1.bf16.msra.mxu0 %v1332
        %1385 = vmatprep.subr.bf16.mxu0 0
        %1386 = vmatpush1.bf16.msra.mxu0 0
        %1387 = vmatprep.subr.bf16.mxu0 0
        %1388 = vmatpush1.bf16.msra.mxu0 0
        %1389 = vmatprep.subr.bf16.mxu0 0
        %1390 = vmatpush1.bf16.msra.mxu0 0
        %1391 = vmatprep.subr.bf16.mxu0 0
        %1392 = vmatpush1.bf16.msra.mxu0 0
        %1393 = vmatprep.subr.bf16.mxu0 0
        %1394 = vmatpush1.bf16.msra.mxu0 0
        %1395 = vmatprep.subr.bf16.mxu0 0
        %1396 = vmatpush1.bf16.msra.mxu0 0
        %1397 = vmatprep.subr.bf16.mxu0 0
        %1398 = vmatpush1.bf16.msra.mxu0 0
        %1399 = vmatprep.subr.bf16.mxu0 0
        %1400 = vmatpush1.bf16.msra.mxu0 0
        %1401 = vmatprep.subr.bf16.mxu0 0
        %1402 = vmatpush1.bf16.msra.mxu0 0
        %1403 = vmatprep.subr.bf16.mxu0 0
        %1404 = vmatpush1.bf16.msra.mxu0 0
        %1405 = vmatprep.subr.bf16.mxu0 0
        %1406 = vmatpush1.bf16.msra.mxu0 0
        %1407 = vmatprep.mubr.bf16.mxu0 0
        %1408 = vmatmul.mubr.bf16.gmra.mrb[0].mxu0 %v1322
        %v1409 = vpop.f32.mrb[0].mxu0
        %v1410 = vadd.f32 0.0, %v1409
        %v1411 = vpop.f32.mrb[0].mxu0
        %v1412 = vpop.f32.mrb[0].mxu0
        %v1413 = vpop.f32.mrb[0].mxu0
        %1414 = vdwg.mxu0
        %v1415 = vmax.f32 %v1369, 0.0
        %v1416 = vmax.f32 %v1371, 0.0
        %v1417 = vmax.f32 %v1410, 0.0
        %v1418 = vmul.f32 %v1415, %v1061
        %v1419 = vmul.f32 %v1416, %v1065
        %v1420 = vmul.f32 %v1417, %v1069
        %v1421 = vpack.c.bf16 %v1418, %v1418
        %v1422 = vpack.c.bf16 %v1419, %v1419
        %v1423 = vpack.c.bf16 %v1420, %v1420
        %v1427 = vrot.slane %v1421, 4
        %v1428 = vrot.slane %v1422, 4
        %v1429 = vrot.slane %v1423, 4
        %1433 = vst [vmem:[#allocation2 + $0x8] sm:$0xf0] %v1427
        %1434 = vst [vmem:[#allocation2 + $0x10] sm:$0xf0] %v1428
        %1435 = vst [vmem:[#allocation2 + $0x18] sm:$0xf0] %v1429
        %v1436 = vld [vmem:[#allocation2] sm:$0xf0]
        %v1437 = vld [vmem:[#allocation2 + $0x8] sm:$0xf0]
        %v1438 = vld [vmem:[#allocation2 + $0x10] sm:$0xf0]
        %v1439 = vld [vmem:[#allocation2 + $0x18] sm:$0xf0]
        %1444 = vrot.lane.b32.xlu0 %v1436, 19
        %v1445 = vpop.permute.xlu0 %1444
        %1446 = vrot.lane.b32.xlu0 %v1437, 19
        %v1447 = vpop.permute.xlu0 %1446
        %1448 = vrot.lane.b32.xlu0 %v1438, 19
        %v1449 = vpop.permute.xlu0 %1448
        %1450 = vrot.lane.b32.xlu0 %v1439, 19
        %v1451 = vpop.permute.xlu0 %1450
        %v1452 = vsel %vm652, %v1445, %v1447
        %v1453 = vsel %vm652, %v1447, %v1449
        %v1454 = vsel %vm652, %v1449, %v1451
        %1458 = vst [vmem:[#allocation3 + $0x60] sm:$0xf0] %v1452
        %1459 = vst [vmem:[#allocation3 + $0x68] sm:$0xf0] %v1453
        %1460 = vst [vmem:[#allocation3 + $0x70] sm:$0xf0] %v1454
        %v1461 = vld [vmem:[#allocation2] sm:$0xf0]
        %v1462 = vld [vmem:[#allocation2 + $0x8] sm:$0xf0]
        %v1463 = vld [vmem:[#allocation2 + $0x10] sm:$0xf0]
        %v1464 = vld [vmem:[#allocation2 + $0x18] sm:$0xf0]
        %v1469 = vrot.slane %v1461, 4
        %v1470 = vrot.slane %v1462, 4
        %v1471 = vrot.slane %v1463, 4
        %v1472 = vrot.slane %v1464, 4
        %1473 = vrot.lane.b32.xlu0 %v1469, 18
        %v1474 = vpop.permute.xlu0 %1473
        %1475 = vrot.lane.b32.xlu0 %v1470, 18
        %v1476 = vpop.permute.xlu0 %1475
        %1477 = vrot.lane.b32.xlu0 %v1471, 18
        %v1478 = vpop.permute.xlu0 %1477
        %1479 = vrot.lane.b32.xlu0 %v1472, 18
        %v1480 = vpop.permute.xlu0 %1479
        %v1481 = vsel %vm689, %v1474, %v1476
        %v1482 = vsel %vm689, %v1476, %v1478
        %v1483 = vsel %vm689, %v1478, %v1480
        %1487 = vst [vmem:[#allocation3 + $0x78] sm:$0xf] %v1481
        %1488 = vst [vmem:[#allocation3 + $0x80] sm:$0xf] %v1482
        %1489 = vst [vmem:[#allocation3 + $0x88] sm:$0xf] %v1483
        %v1490 = vld [vmem:[#allocation2] sm:$0xf0]
        %v1491 = vld [vmem:[#allocation2 + $0x8] sm:$0xf0]
        %v1492 = vld [vmem:[#allocation2 + $0x10] sm:$0xf0]
        %v1493 = vld [vmem:[#allocation2 + $0x18] sm:$0xf0]
        %1498 = vrot.lane.b32.xlu0 %v1490, 17
        %v1499 = vpop.permute.xlu0 %1498
        %1500 = vrot.lane.b32.xlu0 %v1491, 17
        %v1501 = vpop.permute.xlu0 %1500
        %1502 = vrot.lane.b32.xlu0 %v1492, 17
        %v1503 = vpop.permute.xlu0 %1502
        %1504 = vrot.lane.b32.xlu0 %v1493, 17
        %v1505 = vpop.permute.xlu0 %1504
        %v1506 = vsel %vm726, %v1499, %v1501
        %v1507 = vsel %vm726, %v1501, %v1503
        %v1508 = vsel %vm726, %v1503, %v1505
        %1512 = vst [vmem:[#allocation3 + $0x78] sm:$0xf0] %v1506
        %1513 = vst [vmem:[#allocation3 + $0x80] sm:$0xf0] %v1507
        %1514 = vst [vmem:[#allocation3 + $0x88] sm:$0xf0] %v1508
        %v1515 = vld [vmem:[#allocation2] sm:$0xf0]
        %v1516 = vld [vmem:[#allocation2 + $0x8] sm:$0xf0]
        %v1517 = vld [vmem:[#allocation2 + $0x10] sm:$0xf0]
        %v1518 = vld [vmem:[#allocation2 + $0x18] sm:$0xf0]
        %v1523 = vrot.slane %v1515, 4
        %v1524 = vrot.slane %v1516, 4
        %v1525 = vrot.slane %v1517, 4
        %v1526 = vrot.slane %v1518, 4
        %1527 = vrot.lane.b32.xlu0 %v1523, 1
        %v1528 = vpop.permute.xlu0 %1527
        %1529 = vrot.lane.b32.xlu0 %v1524, 1
        %v1530 = vpop.permute.xlu0 %1529
        %1531 = vrot.lane.b32.xlu0 %v1525, 1
        %v1532 = vpop.permute.xlu0 %1531
        %1533 = vrot.lane.b32.xlu0 %v1526, 1
        %v1534 = vpop.permute.xlu0 %1533
        %v1535 = vsel %vm763, %v1528, %v1530
        %v1536 = vsel %vm763, %v1530, %v1532
        %v1537 = vsel %vm763, %v1532, %v1534
        %1541 = vst [vmem:[#allocation3 + $0x90] sm:$0xf] %v1535
        %1542 = vst [vmem:[#allocation3 + $0x98] sm:$0xf] %v1536
        %1543 = vst [vmem:[#allocation3 + $0xa0] sm:$0xf] %v1537
        %v1544 = vld [vmem:[#allocation2 + $0x8] sm:$0xf0]
        %v1545 = vld [vmem:[#allocation2 + $0x10] sm:$0xf0]
        %v1546 = vld [vmem:[#allocation2 + $0x18] sm:$0xf0]
        %1547 = vst [vmem:[#allocation3 + $0x90] sm:$0xf0] %v1544
        %1548 = vst [vmem:[#allocation3 + $0x98] sm:$0xf0] %v1545
        %1549 = vst [vmem:[#allocation3 + $0xa0] sm:$0xf0] %v1546
        %v1550 = vld [vmem:[#allocation2 + $0x8] sm:$0xf0]
        %v1551 = vld [vmem:[#allocation2 + $0x10] sm:$0xf0]
        %v1552 = vld [vmem:[#allocation2 + $0x18] sm:$0xf0]
        %v1553 = vld [vmem:[#allocation2 + $0x20] sm:$0xf0]
        %v1558 = vrot.slane %v1550, 4
        %v1559 = vrot.slane %v1551, 4
        %v1560 = vrot.slane %v1552, 4
        %v1561 = vrot.slane %v1553, 4
        %1562 = vrot.lane.b32.xlu0 %v1558, 127
        %v1563 = vpop.permute.xlu0 %1562
        %1564 = vrot.lane.b32.xlu0 %v1559, 127
        %v1565 = vpop.permute.xlu0 %1564
        %1566 = vrot.lane.b32.xlu0 %v1560, 127
        %v1567 = vpop.permute.xlu0 %1566
        %1568 = vrot.lane.b32.xlu0 %v1561, 127
        %v1569 = vpop.permute.xlu0 %1568
        %v1570 = vsel %vm824, %v1563, %v1565
        %v1571 = vsel %vm824, %v1565, %v1567
        %v1572 = vsel %vm824, %v1567, %v1569
        %1576 = vst [vmem:[#allocation3 + $0xa8] sm:$0xf] %v1570
        %1577 = vst [vmem:[#allocation3 + $0xb0] sm:$0xf] %v1571
        %1578 = vst [vmem:[#allocation3 + $0xb8] sm:$0xf] %v1572
        %v1579 = vld [vmem:[#allocation2 + $0x8] sm:$0xf0]
        %v1580 = vld [vmem:[#allocation2 + $0x10] sm:$0xf0]
        %v1581 = vld [vmem:[#allocation2 + $0x18] sm:$0xf0]
        %v1582 = vld [vmem:[#allocation2 + $0x20] sm:$0xf0]
        %1587 = vrot.lane.b32.xlu0 %v1579, 111
        %v1588 = vpop.permute.xlu0 %1587
        %1589 = vrot.lane.b32.xlu0 %v1580, 111
        %v1590 = vpop.permute.xlu0 %1589
        %1591 = vrot.lane.b32.xlu0 %v1581, 111
        %v1592 = vpop.permute.xlu0 %1591
        %1593 = vrot.lane.b32.xlu0 %v1582, 111
        %v1594 = vpop.permute.xlu0 %1593
        %v1595 = vsel %vm861, %v1588, %v1590
        %v1596 = vsel %vm861, %v1590, %v1592
        %v1597 = vsel %vm861, %v1592, %v1594
        %1601 = vst [vmem:[#allocation3 + $0xa8] sm:$0xf0] %v1595
        %1602 = vst [vmem:[#allocation3 + $0xb0] sm:$0xf0] %v1596
        %1603 = vst [vmem:[#allocation3 + $0xb8] sm:$0xf0] %v1597
        %v1604 = vld [vmem:[#allocation2 + $0x8] sm:$0xf0]
        %v1605 = vld [vmem:[#allocation2 + $0x10] sm:$0xf0]
        %v1606 = vld [vmem:[#allocation2 + $0x18] sm:$0xf0]
        %v1607 = vld [vmem:[#allocation2 + $0x20] sm:$0xf0]
        %v1612 = vrot.slane %v1604, 4
        %v1613 = vrot.slane %v1605, 4
        %v1614 = vrot.slane %v1606, 4
        %v1615 = vrot.slane %v1607, 4
        %1616 = vrot.lane.b32.xlu0 %v1612, 110
        %v1617 = vpop.permute.xlu0 %1616
        %1618 = vrot.lane.b32.xlu0 %v1613, 110
        %v1619 = vpop.permute.xlu0 %1618
        %1620 = vrot.lane.b32.xlu0 %v1614, 110
        %v1621 = vpop.permute.xlu0 %1620
        %1622 = vrot.lane.b32.xlu0 %v1615, 110
        %v1623 = vpop.permute.xlu0 %1622
        %v1624 = vsel %vm898, %v1617, %v1619
        %v1625 = vsel %vm898, %v1619, %v1621
        %v1626 = vsel %vm898, %v1621, %v1623
        %1630 = vst [vmem:[#allocation3 + $0xc0] sm:$0xf] %v1624
        %1631 = vst [vmem:[#allocation3 + $0xc8] sm:$0xf] %v1625
        %1632 = vst [vmem:[#allocation3 + $0xd0] sm:$0xf] %v1626
        %v1633 = vld [vmem:[#allocation2 + $0x8] sm:$0xf0]
        %v1634 = vld [vmem:[#allocation2 + $0x10] sm:$0xf0]
        %v1635 = vld [vmem:[#allocation2 + $0x18] sm:$0xf0]
        %v1636 = vld [vmem:[#allocation2 + $0x20] sm:$0xf0]
        %1641 = vrot.lane.b32.xlu0 %v1633, 109
        %v1642 = vpop.permute.xlu0 %1641
        %1643 = vrot.lane.b32.xlu0 %v1634, 109
        %v1644 = vpop.permute.xlu0 %1643
        %1645 = vrot.lane.b32.xlu0 %v1635, 109
        %v1646 = vpop.permute.xlu0 %1645
        %1647 = vrot.lane.b32.xlu0 %v1636, 109
        %v1648 = vpop.permute.xlu0 %1647
        %v1649 = vsel %vm935, %v1642, %v1644
        %v1650 = vsel %vm935, %v1644, %v1646
        %v1651 = vsel %vm935, %v1646, %v1648
        %1655 = vst [vmem:[#allocation3 + $0xc0] sm:$0xf0] %v1649
        %1656 = vst [vmem:[#allocation3 + $0xc8] sm:$0xf0] %v1650
        %1657 = vst [vmem:[#allocation3 + $0xd0] sm:$0xf0] %v1651
        %v1658 = vld [vmem:[#allocation13] sm:$0xff]
        %v1659 = vld [vmem:[#allocation3] sm:$0xff]
        %v1660 = vld [vmem:[#allocation3 + $0x8] sm:$0xff]
        %v1661 = vld [vmem:[#allocation3 + $0x10] sm:$0xff]
        %v1662 = vld [vmem:[#allocation3 + $0x18] sm:$0xff]
        %v1663 = vld [vmem:[#allocation3 + $0x20] sm:$0xff]
        %v1664 = vld [vmem:[#allocation3 + $0x28] sm:$0xff]
        %v1665 = vld [vmem:[#allocation3 + $0x30] sm:$0xff]
        %v1666 = vld [vmem:[#allocation3 + $0x38] sm:$0xff]
        %v1667 = vld [vmem:[#allocation3 + $0x40] sm:$0xff]
        %v1668 = vld [vmem:[#allocation3 + $0x48] sm:$0xff]
        %v1669 = vld [vmem:[#allocation3 + $0x50] sm:$0xff]
        %v1670 = vld [vmem:[#allocation3 + $0x58] sm:$0xff]
        %v1671 = vld [vmem:[#allocation3 + $0x60] sm:$0xff]
        %v1672 = vld [vmem:[#allocation3 + $0x68] sm:$0xff]
        %v1673 = vld [vmem:[#allocation3 + $0x70] sm:$0xff]
        %v1674 = vld [vmem:[#allocation3 + $0x78] sm:$0xff]
        %v1675 = vld [vmem:[#allocation3 + $0x80] sm:$0xff]
        %v1676 = vld [vmem:[#allocation3 + $0x88] sm:$0xff]
        %v1677 = vld [vmem:[#allocation3 + $0x90] sm:$0xff]
        %v1678 = vld [vmem:[#allocation3 + $0x98] sm:$0xff]
        %v1679 = vld [vmem:[#allocation3 + $0xa0] sm:$0xff]
        %v1680 = vld [vmem:[#allocation3 + $0xa8] sm:$0xff]
        %v1681 = vld [vmem:[#allocation3 + $0xb0] sm:$0xff]
        %v1682 = vld [vmem:[#allocation3 + $0xb8] sm:$0xff]
        %v1683 = vld [vmem:[#allocation3 + $0xc0] sm:$0xff]
        %v1684 = vld [vmem:[#allocation3 + $0xc8] sm:$0xff]
        %v1685 = vld [vmem:[#allocation3 + $0xd0] sm:$0xff]
        %v1687 = vunpack.c.l.b16 %v1658
        %v1688 = vunpack.c.h.b16 %v1658
        %v1689 = vpack.c.b16 %v1687, %v1687
        %v1690 = vpack.c.b16 %v1688, %v1688
        %vm1692 = vcmask 130048
        %v1694 = vsel %vm1692, %v1690, 0
        %1696 = vmatprep.subr.bf16.mxu0 %v1660
        %1697 = vmatpush1.bf16.msra.mxu0 %v1659
        %1698 = vmatprep.subr.bf16.mxu0 %v1663
        %1699 = vmatpush1.bf16.msra.mxu0 %v1662
        %1700 = vmatprep.subr.bf16.mxu0 %v1666
        %1701 = vmatpush1.bf16.msra.mxu0 %v1665
        %1702 = vmatprep.subr.bf16.mxu0 %v1669
        %1703 = vmatpush1.bf16.msra.mxu0 %v1668
        %1704 = vmatprep.subr.bf16.mxu0 %v1672
        %1705 = vmatpush1.bf16.msra.mxu0 %v1671
        %1706 = vmatprep.subr.bf16.mxu0 %v1675
        %1707 = vmatpush1.bf16.msra.mxu0 %v1674
        %1708 = vmatprep.subr.bf16.mxu0 %v1678
        %1709 = vmatpush1.bf16.msra.mxu0 %v1677
        %1710 = vmatprep.subr.bf16.mxu0 %v1681
        %1711 = vmatpush1.bf16.msra.mxu0 %v1680
        %1712 = vmatprep.subr.bf16.mxu0 %v1684
        %1713 = vmatpush1.bf16.msra.mxu0 %v1683
        %1714 = vmatprep.subr.bf16.mxu0 0
        %1715 = vmatpush1.bf16.msra.mxu0 0
        %1716 = vmatprep.subr.bf16.mxu0 0
        %1717 = vmatpush1.bf16.msra.mxu0 0
        %1718 = vmatprep.subr.bf16.mxu0 0
        %1719 = vmatpush1.bf16.msra.mxu0 0
        %1720 = vmatprep.subr.bf16.mxu0 0
        %1721 = vmatpush1.bf16.msra.mxu0 0
        %1722 = vmatprep.subr.bf16.mxu0 0
        %1723 = vmatpush1.bf16.msra.mxu0 0
        %1724 = vmatprep.subr.bf16.mxu0 0
        %1725 = vmatpush1.bf16.msra.mxu0 0
        %1726 = vmatprep.subr.bf16.mxu0 0
        %1727 = vmatpush1.bf16.msra.mxu0 0
        %1728 = vmatprep.mubr.bf16.mxu0 %v1694
        %1729 = vmatmul.mubr.bf16.gmra.mrb[0].mxu0 %v1689
        %v1730 = vpop.f32.mrb[0].mxu0
        %v1731 = vadd.f32 0.0, %v1730
        %v1732 = vpop.f32.mrb[0].mxu0
        %v1733 = vadd.f32 0.0, %v1732
        %v1734 = vpop.f32.mrb[0].mxu0
        %v1735 = vpop.f32.mrb[0].mxu0
        %1736 = vdwg.mxu0
        %1737 = vmatprep.subr.bf16.mxu0 0
        %1738 = vmatpush1.bf16.msra.mxu0 %v1661
        %1739 = vmatprep.subr.bf16.mxu0 0
        %1740 = vmatpush1.bf16.msra.mxu0 %v1664
        %1741 = vmatprep.subr.bf16.mxu0 0
        %1742 = vmatpush1.bf16.msra.mxu0 %v1667
        %1743 = vmatprep.subr.bf16.mxu0 0
        %1744 = vmatpush1.bf16.msra.mxu0 %v1670
        %1745 = vmatprep.subr.bf16.mxu0 0
        %1746 = vmatpush1.bf16.msra.mxu0 %v1673
        %1747 = vmatprep.subr.bf16.mxu0 0
        %1748 = vmatpush1.bf16.msra.mxu0 %v1676
        %1749 = vmatprep.subr.bf16.mxu0 0
        %1750 = vmatpush1.bf16.msra.mxu0 %v1679
        %1751 = vmatprep.subr.bf16.mxu0 0
        %1752 = vmatpush1.bf16.msra.mxu0 %v1682
        %1753 = vmatprep.subr.bf16.mxu0 0
        %1754 = vmatpush1.bf16.msra.mxu0 %v1685
        %1755 = vmatprep.subr.bf16.mxu0 0
        %1756 = vmatpush1.bf16.msra.mxu0 0
        %1757 = vmatprep.subr.bf16.mxu0 0
        %1758 = vmatpush1.bf16.msra.mxu0 0
        %1759 = vmatprep.subr.bf16.mxu0 0
        %1760 = vmatpush1.bf16.msra.mxu0 0
        %1761 = vmatprep.subr.bf16.mxu0 0
        %1762 = vmatpush1.bf16.msra.mxu0 0
        %1763 = vmatprep.subr.bf16.mxu0 0
        %1764 = vmatpush1.bf16.msra.mxu0 0
        %1765 = vmatprep.subr.bf16.mxu0 0
        %1766 = vmatpush1.bf16.msra.mxu0 0
        %1767 = vmatprep.subr.bf16.mxu0 0
        %1768 = vmatpush1.bf16.msra.mxu0 0
        %1769 = vmatprep.mubr.bf16.mxu0 %v1694
        %1770 = vmatmul.mubr.bf16.gmra.mrb[0].mxu0 %v1689
        %v1771 = vpop.f32.mrb[0].mxu0
        %v1772 = vadd.f32 0.0, %v1771
        %v1773 = vpop.f32.mrb[0].mxu0
        %v1774 = vpop.f32.mrb[0].mxu0
        %v1775 = vpop.f32.mrb[0].mxu0
        %1776 = vdwg.mxu0
        %v1777 = vmax.f32 %v1731, 0.0
        %v1778 = vmax.f32 %v1733, 0.0
        %v1779 = vmax.f32 %v1772, 0.0
        %v1780 = vmul.f32 %v1777, %v1061
        %v1781 = vmul.f32 %v1778, %v1065
        %v1782 = vmul.f32 %v1779, %v1069
        %v1783 = vpack.c.bf16 %v1780, %v1780
        %v1784 = vpack.c.bf16 %v1781, %v1781
        %v1785 = vpack.c.bf16 %v1782, %v1782
        %1786 = vst [vmem:[#allocation2 + $0x30] sm:$0xf] %v1783
        %1787 = vst [vmem:[#allocation2 + $0x38] sm:$0xf] %v1784
        %1788 = vst [vmem:[#allocation2 + $0x40] sm:$0xf] %v1785
        %v1789 = vld [vmem:[#allocation2 + $0x28] sm:$0xf]
        %v1790 = vld [vmem:[#allocation2 + $0x30] sm:$0xf]
        %v1791 = vld [vmem:[#allocation2 + $0x38] sm:$0xf]
        %v1792 = vld [vmem:[#allocation2 + $0x40] sm:$0xf]
        %1797 = vrot.lane.b32.xlu0 %v1789, 19
        %v1798 = vpop.permute.xlu0 %1797
        %1799 = vrot.lane.b32.xlu0 %v1790, 19
        %v1800 = vpop.permute.xlu0 %1799
        %1801 = vrot.lane.b32.xlu0 %v1791, 19
        %v1802 = vpop.permute.xlu0 %1801
        %1803 = vrot.lane.b32.xlu0 %v1792, 19
        %v1804 = vpop.permute.xlu0 %1803
        %v1805 = vsel %vm652, %v1798, %v1800
        %v1806 = vsel %vm652, %v1800, %v1802
        %v1807 = vsel %vm652, %v1802, %v1804
        %1811 = vst [vmem:[#allocation3 + $0xd8] sm:$0xf] %v1805
        %1812 = vst [vmem:[#allocation3 + $0xe0] sm:$0xf] %v1806
        %1813 = vst [vmem:[#allocation3 + $0xe8] sm:$0xf] %v1807
        %v1814 = vld [vmem:[#allocation2 + $0x28] sm:$0xf]
        %v1815 = vld [vmem:[#allocation2 + $0x30] sm:$0xf]
        %v1816 = vld [vmem:[#allocation2 + $0x38] sm:$0xf]
        %v1817 = vld [vmem:[#allocation2 + $0x40] sm:$0xf]
        %v1822 = vrot.slane %v1814, 4
        %v1823 = vrot.slane %v1815, 4
        %v1824 = vrot.slane %v1816, 4
        %v1825 = vrot.slane %v1817, 4
        %1826 = vrot.lane.b32.xlu0 %v1822, 18
        %v1827 = vpop.permute.xlu0 %1826
        %1828 = vrot.lane.b32.xlu0 %v1823, 18
        %v1829 = vpop.permute.xlu0 %1828
        %1830 = vrot.lane.b32.xlu0 %v1824, 18
        %v1831 = vpop.permute.xlu0 %1830
        %1832 = vrot.lane.b32.xlu0 %v1825, 18
        %v1833 = vpop.permute.xlu0 %1832
        %v1834 = vsel %vm689, %v1827, %v1829
        %v1835 = vsel %vm689, %v1829, %v1831
        %v1836 = vsel %vm689, %v1831, %v1833
        %1840 = vst [vmem:[#allocation3 + $0xd8] sm:$0xf0] %v1834
        %1841 = vst [vmem:[#allocation3 + $0xe0] sm:$0xf0] %v1835
        %1842 = vst [vmem:[#allocation3 + $0xe8] sm:$0xf0] %v1836
        %v1843 = vld [vmem:[#allocation2 + $0x28] sm:$0xf]
        %v1844 = vld [vmem:[#allocation2 + $0x30] sm:$0xf]
        %v1845 = vld [vmem:[#allocation2 + $0x38] sm:$0xf]
        %v1846 = vld [vmem:[#allocation2 + $0x40] sm:$0xf]
        %1851 = vrot.lane.b32.xlu0 %v1843, 17
        %v1852 = vpop.permute.xlu0 %1851
        %1853 = vrot.lane.b32.xlu0 %v1844, 17
        %v1854 = vpop.permute.xlu0 %1853
        %1855 = vrot.lane.b32.xlu0 %v1845, 17
        %v1856 = vpop.permute.xlu0 %1855
        %1857 = vrot.lane.b32.xlu0 %v1846, 17
        %v1858 = vpop.permute.xlu0 %1857
        %v1859 = vsel %vm726, %v1852, %v1854
        %v1860 = vsel %vm726, %v1854, %v1856
        %v1861 = vsel %vm726, %v1856, %v1858
        %1865 = vst [vmem:[#allocation3 + $0xf0] sm:$0xf] %v1859
        %1866 = vst [vmem:[#allocation3 + $0xf8] sm:$0xf] %v1860
        %1867 = vst [vmem:[#allocation3 + $0x100] sm:$0xf] %v1861
        %v1868 = vld [vmem:[#allocation2 + $0x28] sm:$0xf]
        %v1869 = vld [vmem:[#allocation2 + $0x30] sm:$0xf]
        %v1870 = vld [vmem:[#allocation2 + $0x38] sm:$0xf]
        %v1871 = vld [vmem:[#allocation2 + $0x40] sm:$0xf]
        %v1876 = vrot.slane %v1868, 4
        %v1877 = vrot.slane %v1869, 4
        %v1878 = vrot.slane %v1870, 4
        %v1879 = vrot.slane %v1871, 4
        %1880 = vrot.lane.b32.xlu0 %v1876, 1
        %v1881 = vpop.permute.xlu0 %1880
        %1882 = vrot.lane.b32.xlu0 %v1877, 1
        %v1883 = vpop.permute.xlu0 %1882
        %1884 = vrot.lane.b32.xlu0 %v1878, 1
        %v1885 = vpop.permute.xlu0 %1884
        %1886 = vrot.lane.b32.xlu0 %v1879, 1
        %v1887 = vpop.permute.xlu0 %1886
        %v1888 = vsel %vm763, %v1881, %v1883
        %v1889 = vsel %vm763, %v1883, %v1885
        %v1890 = vsel %vm763, %v1885, %v1887
        %1894 = vst [vmem:[#allocation3 + $0xf0] sm:$0xf0] %v1888
        %1895 = vst [vmem:[#allocation3 + $0xf8] sm:$0xf0] %v1889
        %1896 = vst [vmem:[#allocation3 + $0x100] sm:$0xf0] %v1890
        %v1897 = vld [vmem:[#allocation2 + $0x30] sm:$0xf]
        %v1898 = vld [vmem:[#allocation2 + $0x38] sm:$0xf]
        %v1899 = vld [vmem:[#allocation2 + $0x40] sm:$0xf]
        %1900 = vst [vmem:[#allocation3 + $0x108] sm:$0xf] %v1897
        %1901 = vst [vmem:[#allocation3 + $0x110] sm:$0xf] %v1898
        %1902 = vst [vmem:[#allocation3 + $0x118] sm:$0xf] %v1899
        %v1903 = vld [vmem:[#allocation2 + $0x30] sm:$0xf]
        %v1904 = vld [vmem:[#allocation2 + $0x38] sm:$0xf]
        %v1905 = vld [vmem:[#allocation2 + $0x40] sm:$0xf]
        %v1906 = vld [vmem:[#allocation2 + $0x48] sm:$0xf]
        %v1911 = vrot.slane %v1903, 4
        %v1912 = vrot.slane %v1904, 4
        %v1913 = vrot.slane %v1905, 4
        %v1914 = vrot.slane %v1906, 4
        %1915 = vrot.lane.b32.xlu0 %v1911, 127
        %v1916 = vpop.permute.xlu0 %1915
        %1917 = vrot.lane.b32.xlu0 %v1912, 127
        %v1918 = vpop.permute.xlu0 %1917
        %1919 = vrot.lane.b32.xlu0 %v1913, 127
        %v1920 = vpop.permute.xlu0 %1919
        %1921 = vrot.lane.b32.xlu0 %v1914, 127
        %v1922 = vpop.permute.xlu0 %1921
        %v1923 = vsel %vm824, %v1916, %v1918
        %v1924 = vsel %vm824, %v1918, %v1920
        %v1925 = vsel %vm824, %v1920, %v1922
        %1929 = vst [vmem:[#allocation3 + $0x108] sm:$0xf0] %v1923
        %1930 = vst [vmem:[#allocation3 + $0x110] sm:$0xf0] %v1924
        %1931 = vst [vmem:[#allocation3 + $0x118] sm:$0xf0] %v1925
        %v1932 = vld [vmem:[#allocation2 + $0x30] sm:$0xf]
        %v1933 = vld [vmem:[#allocation2 + $0x38] sm:$0xf]
        %v1934 = vld [vmem:[#allocation2 + $0x40] sm:$0xf]
        %v1935 = vld [vmem:[#allocation2 + $0x48] sm:$0xf]
        %1940 = vrot.lane.b32.xlu0 %v1932, 111
        %v1941 = vpop.permute.xlu0 %1940
        %1942 = vrot.lane.b32.xlu0 %v1933, 111
        %v1943 = vpop.permute.xlu0 %1942
        %1944 = vrot.lane.b32.xlu0 %v1934, 111
        %v1945 = vpop.permute.xlu0 %1944
        %1946 = vrot.lane.b32.xlu0 %v1935, 111
        %v1947 = vpop.permute.xlu0 %1946
        %v1948 = vsel %vm861, %v1941, %v1943
        %v1949 = vsel %vm861, %v1943, %v1945
        %v1950 = vsel %vm861, %v1945, %v1947
        %1954 = vst [vmem:[#allocation3 + $0x120] sm:$0xf] %v1948
        %1955 = vst [vmem:[#allocation3 + $0x128] sm:$0xf] %v1949
        %1956 = vst [vmem:[#allocation3 + $0x130] sm:$0xf] %v1950
        %v1957 = vld [vmem:[#allocation2 + $0x30] sm:$0xf]
        %v1958 = vld [vmem:[#allocation2 + $0x38] sm:$0xf]
        %v1959 = vld [vmem:[#allocation2 + $0x40] sm:$0xf]
        %v1960 = vld [vmem:[#allocation2 + $0x48] sm:$0xf]
        %v1965 = vrot.slane %v1957, 4
        %v1966 = vrot.slane %v1958, 4
        %v1967 = vrot.slane %v1959, 4
        %v1968 = vrot.slane %v1960, 4
        %1969 = vrot.lane.b32.xlu0 %v1965, 110
        %v1970 = vpop.permute.xlu0 %1969
        %1971 = vrot.lane.b32.xlu0 %v1966, 110
        %v1972 = vpop.permute.xlu0 %1971
        %1973 = vrot.lane.b32.xlu0 %v1967, 110
        %v1974 = vpop.permute.xlu0 %1973
        %1975 = vrot.lane.b32.xlu0 %v1968, 110
        %v1976 = vpop.permute.xlu0 %1975
        %v1977 = vsel %vm898, %v1970, %v1972
        %v1978 = vsel %vm898, %v1972, %v1974
        %v1979 = vsel %vm898, %v1974, %v1976
        %1983 = vst [vmem:[#allocation3 + $0x120] sm:$0xf0] %v1977
        %1984 = vst [vmem:[#allocation3 + $0x128] sm:$0xf0] %v1978
        %1985 = vst [vmem:[#allocation3 + $0x130] sm:$0xf0] %v1979
        %v1986 = vld [vmem:[#allocation2 + $0x30] sm:$0xf]
        %v1987 = vld [vmem:[#allocation2 + $0x38] sm:$0xf]
        %v1988 = vld [vmem:[#allocation2 + $0x40] sm:$0xf]
        %v1989 = vld [vmem:[#allocation2 + $0x48] sm:$0xf]
        %1994 = vrot.lane.b32.xlu0 %v1986, 109
        %v1995 = vpop.permute.xlu0 %1994
        %1996 = vrot.lane.b32.xlu0 %v1987, 109
        %v1997 = vpop.permute.xlu0 %1996
        %1998 = vrot.lane.b32.xlu0 %v1988, 109
        %v1999 = vpop.permute.xlu0 %1998
        %2000 = vrot.lane.b32.xlu0 %v1989, 109
        %v2001 = vpop.permute.xlu0 %2000
        %v2002 = vsel %vm935, %v1995, %v1997
        %v2003 = vsel %vm935, %v1997, %v1999
        %v2004 = vsel %vm935, %v1999, %v2001
        %2008 = vst [vmem:[#allocation3 + $0x138] sm:$0xf] %v2002
        %2009 = vst [vmem:[#allocation3 + $0x140] sm:$0xf] %v2003
        %2010 = vst [vmem:[#allocation3 + $0x148] sm:$0xf] %v2004
        %v2011 = vld [vmem:[#allocation14] sm:$0xff]
        %v2012 = vld [vmem:[#allocation3] sm:$0xff]
        %v2013 = vld [vmem:[#allocation3 + $0x8] sm:$0xff]
        %v2014 = vld [vmem:[#allocation3 + $0x10] sm:$0xff]
        %v2015 = vld [vmem:[#allocation3 + $0x18] sm:$0xff]
        %v2016 = vld [vmem:[#allocation3 + $0x20] sm:$0xff]
        %v2017 = vld [vmem:[#allocation3 + $0x28] sm:$0xff]
        %v2018 = vld [vmem:[#allocation3 + $0x30] sm:$0xff]
        %v2019 = vld [vmem:[#allocation3 + $0x38] sm:$0xff]
        %v2020 = vld [vmem:[#allocation3 + $0x40] sm:$0xff]
        %v2021 = vld [vmem:[#allocation3 + $0x48] sm:$0xff]
        %v2022 = vld [vmem:[#allocation3 + $0x50] sm:$0xff]
        %v2023 = vld [vmem:[#allocation3 + $0x58] sm:$0xff]
        %v2024 = vld [vmem:[#allocation3 + $0x60] sm:$0xff]
        %v2025 = vld [vmem:[#allocation3 + $0x68] sm:$0xff]
        %v2026 = vld [vmem:[#allocation3 + $0x70] sm:$0xff]
        %v2027 = vld [vmem:[#allocation3 + $0x78] sm:$0xff]
        %v2028 = vld [vmem:[#allocation3 + $0x80] sm:$0xff]
        %v2029 = vld [vmem:[#allocation3 + $0x88] sm:$0xff]
        %v2030 = vld [vmem:[#allocation3 + $0x90] sm:$0xff]
        %v2031 = vld [vmem:[#allocation3 + $0x98] sm:$0xff]
        %v2032 = vld [vmem:[#allocation3 + $0xa0] sm:$0xff]
        %v2033 = vld [vmem:[#allocation3 + $0xa8] sm:$0xff]
        %v2034 = vld [vmem:[#allocation3 + $0xb0] sm:$0xff]
        %v2035 = vld [vmem:[#allocation3 + $0xb8] sm:$0xff]
        %v2036 = vld [vmem:[#allocation3 + $0xc0] sm:$0xff]
        %v2037 = vld [vmem:[#allocation3 + $0xc8] sm:$0xff]
        %v2038 = vld [vmem:[#allocation3 + $0xd0] sm:$0xff]
        %v2039 = vld [vmem:[#allocation3 + $0xd8] sm:$0xff]
        %v2040 = vld [vmem:[#allocation3 + $0xe0] sm:$0xff]
        %v2041 = vld [vmem:[#allocation3 + $0xe8] sm:$0xff]
        %v2042 = vld [vmem:[#allocation3 + $0xf0] sm:$0xff]
        %v2043 = vld [vmem:[#allocation3 + $0xf8] sm:$0xff]
        %v2044 = vld [vmem:[#allocation3 + $0x100] sm:$0xff]
        %v2045 = vld [vmem:[#allocation3 + $0x108] sm:$0xff]
        %v2046 = vld [vmem:[#allocation3 + $0x110] sm:$0xff]
        %v2047 = vld [vmem:[#allocation3 + $0x118] sm:$0xff]
        %v2048 = vld [vmem:[#allocation3 + $0x120] sm:$0xff]
        %v2049 = vld [vmem:[#allocation3 + $0x128] sm:$0xff]
        %v2050 = vld [vmem:[#allocation3 + $0x130] sm:$0xff]
        %v2051 = vld [vmem:[#allocation3 + $0x138] sm:$0xf]
        %v2052 = vld [vmem:[#allocation3 + $0x140] sm:$0xf]
        %v2053 = vld [vmem:[#allocation3 + $0x148] sm:$0xf]
        %v2055 = vunpack.c.l.b16 %v2011
        %v2056 = vunpack.c.h.b16 %v2011
        %v2057 = vpack.c.b16 %v2055, %v2055
        %v2058 = vpack.c.b16 %v2056, %v2056
        %vm2060 = vcmask 719872
        %v2062 = vsel %vm2060, %v2058, 0
        %v2065 = vsel %vm1324, %v2051, 0
        %v2068 = vsel %vm1324, %v2052, 0
        %v2071 = vsel %vm1324, %v2053, 0
        %2073 = vmatprep.subr.bf16.mxu0 %v2013
        %2074 = vmatpush1.bf16.msra.mxu0 %v2012
        %2075 = vmatprep.subr.bf16.mxu0 %v2016
        %2076 = vmatpush1.bf16.msra.mxu0 %v2015
        %2077 = vmatprep.subr.bf16.mxu0 %v2019
        %2078 = vmatpush1.bf16.msra.mxu0 %v2018
        %2079 = vmatprep.subr.bf16.mxu0 %v2022
        %2080 = vmatpush1.bf16.msra.mxu0 %v2021
        %2081 = vmatprep.subr.bf16.mxu0 %v2025
        %2082 = vmatpush1.bf16.msra.mxu0 %v2024
        %2083 = vmatprep.subr.bf16.mxu0 %v2028
        %2084 = vmatpush1.bf16.msra.mxu0 %v2027
        %2085 = vmatprep.subr.bf16.mxu0 %v2031
        %2086 = vmatpush1.bf16.msra.mxu0 %v2030
        %2087 = vmatprep.subr.bf16.mxu0 %v2034
        %2088 = vmatpush1.bf16.msra.mxu0 %v2033
        %2089 = vmatprep.subr.bf16.mxu0 %v2037
        %2090 = vmatpush1.bf16.msra.mxu0 %v2036
        %2091 = vmatprep.subr.bf16.mxu0 %v2040
        %2092 = vmatpush1.bf16.msra.mxu0 %v2039
        %2093 = vmatprep.subr.bf16.mxu0 %v2043
        %2094 = vmatpush1.bf16.msra.mxu0 %v2042
        %2095 = vmatprep.subr.bf16.mxu0 %v2046
        %2096 = vmatpush1.bf16.msra.mxu0 %v2045
        %2097 = vmatprep.subr.bf16.mxu0 %v2049
        %2098 = vmatpush1.bf16.msra.mxu0 %v2048
        %2099 = vmatprep.subr.bf16.mxu0 %v2068
        %2100 = vmatpush1.bf16.msra.mxu0 %v2065
        %2101 = vmatprep.subr.bf16.mxu0 0
        %2102 = vmatpush1.bf16.msra.mxu0 0
        %2103 = vmatprep.subr.bf16.mxu0 0
        %2104 = vmatpush1.bf16.msra.mxu0 0
        %2105 = vmatprep.mubr.bf16.mxu0 %v2062
        %2106 = vmatmul.mubr.bf16.gmra.mrb[0].mxu0 %v2057
        %v2107 = vpop.f32.mrb[0].mxu0
        %v2108 = vadd.f32 0.0, %v2107
        %v2109 = vpop.f32.mrb[0].mxu0
        %v2110 = vadd.f32 0.0, %v2109
        %v2111 = vpop.f32.mrb[0].mxu0
        %v2112 = vpop.f32.mrb[0].mxu0
        %2113 = vdwg.mxu0
        %2114 = vmatprep.subr.bf16.mxu0 0
        %2115 = vmatpush1.bf16.msra.mxu0 %v2014
        %2116 = vmatprep.subr.bf16.mxu0 0
        %2117 = vmatpush1.bf16.msra.mxu0 %v2017
        %2118 = vmatprep.subr.bf16.mxu0 0
        %2119 = vmatpush1.bf16.msra.mxu0 %v2020
        %2120 = vmatprep.subr.bf16.mxu0 0
        %2121 = vmatpush1.bf16.msra.mxu0 %v2023
        %2122 = vmatprep.subr.bf16.mxu0 0
        %2123 = vmatpush1.bf16.msra.mxu0 %v2026
        %2124 = vmatprep.subr.bf16.mxu0 0
        %2125 = vmatpush1.bf16.msra.mxu0 %v2029
        %2126 = vmatprep.subr.bf16.mxu0 0
        %2127 = vmatpush1.bf16.msra.mxu0 %v2032
        %2128 = vmatprep.subr.bf16.mxu0 0
        %2129 = vmatpush1.bf16.msra.mxu0 %v2035
        %2130 = vmatprep.subr.bf16.mxu0 0
        %2131 = vmatpush1.bf16.msra.mxu0 %v2038
        %2132 = vmatprep.subr.bf16.mxu0 0
        %2133 = vmatpush1.bf16.msra.mxu0 %v2041
        %2134 = vmatprep.subr.bf16.mxu0 0
        %2135 = vmatpush1.bf16.msra.mxu0 %v2044
        %2136 = vmatprep.subr.bf16.mxu0 0
        %2137 = vmatpush1.bf16.msra.mxu0 %v2047
        %2138 = vmatprep.subr.bf16.mxu0 0
        %2139 = vmatpush1.bf16.msra.mxu0 %v2050
        %2140 = vmatprep.subr.bf16.mxu0 0
        %2141 = vmatpush1.bf16.msra.mxu0 %v2071
        %2142 = vmatprep.subr.bf16.mxu0 0
        %2143 = vmatpush1.bf16.msra.mxu0 0
        %2144 = vmatprep.subr.bf16.mxu0 0
        %2145 = vmatpush1.bf16.msra.mxu0 0
        %2146 = vmatprep.mubr.bf16.mxu0 %v2062
        %2147 = vmatmul.mubr.bf16.gmra.mrb[0].mxu0 %v2057
        %v2148 = vpop.f32.mrb[0].mxu0
        %v2149 = vadd.f32 0.0, %v2148
        %v2150 = vpop.f32.mrb[0].mxu0
        %v2151 = vpop.f32.mrb[0].mxu0
        %v2152 = vpop.f32.mrb[0].mxu0
        %2153 = vdwg.mxu0
        %v2154 = vmax.f32 %v2108, 0.0
        %v2155 = vmax.f32 %v2110, 0.0
        %v2156 = vmax.f32 %v2149, 0.0
        %v2157 = vmul.f32 %v2154, %v1061
        %v2158 = vmul.f32 %v2155, %v1065
        %v2159 = vmul.f32 %v2156, %v1069
        %v2160 = vpack.c.bf16 %v2157, %v2157
        %v2161 = vpack.c.bf16 %v2158, %v2158
        %v2162 = vpack.c.bf16 %v2159, %v2159
        %v2166 = vrot.slane %v2160, 4
        %v2167 = vrot.slane %v2161, 4
        %v2168 = vrot.slane %v2162, 4
        %2172 = vst [vmem:[#allocation2 + $0x30] sm:$0xf0] %v2166
        %2173 = vst [vmem:[#allocation2 + $0x38] sm:$0xf0] %v2167
        %2174 = vst [vmem:[#allocation2 + $0x40] sm:$0xf0] %v2168
        %v2175 = vld [vmem:[#allocation2 + $0x28] sm:$0xf0]
        %v2176 = vld [vmem:[#allocation2 + $0x30] sm:$0xf0]
        %v2177 = vld [vmem:[#allocation2 + $0x38] sm:$0xf0]
        %v2178 = vld [vmem:[#allocation2 + $0x40] sm:$0xf0]
        %2183 = vrot.lane.b32.xlu0 %v2175, 19
        %v2184 = vpop.permute.xlu0 %2183
        %2185 = vrot.lane.b32.xlu0 %v2176, 19
        %v2186 = vpop.permute.xlu0 %2185
        %2187 = vrot.lane.b32.xlu0 %v2177, 19
        %v2188 = vpop.permute.xlu0 %2187
        %2189 = vrot.lane.b32.xlu0 %v2178, 19
        %v2190 = vpop.permute.xlu0 %2189
        %v2191 = vsel %vm652, %v2184, %v2186
        %v2192 = vsel %vm652, %v2186, %v2188
        %v2193 = vsel %vm652, %v2188, %v2190
        %2197 = vst [vmem:[#allocation3 + $0x138] sm:$0xf0] %v2191
        %2198 = vst [vmem:[#allocation3 + $0x140] sm:$0xf0] %v2192
        %2199 = vst [vmem:[#allocation3 + $0x148] sm:$0xf0] %v2193
        %v2200 = vld [vmem:[#allocation2 + $0x28] sm:$0xf0]
        %v2201 = vld [vmem:[#allocation2 + $0x30] sm:$0xf0]
        %v2202 = vld [vmem:[#allocation2 + $0x38] sm:$0xf0]
        %v2203 = vld [vmem:[#allocation2 + $0x40] sm:$0xf0]
        %v2208 = vrot.slane %v2200, 4
        %v2209 = vrot.slane %v2201, 4
        %v2210 = vrot.slane %v2202, 4
        %v2211 = vrot.slane %v2203, 4
        %2212 = vrot.lane.b32.xlu0 %v2208, 18
        %v2213 = vpop.permute.xlu0 %2212
        %2214 = vrot.lane.b32.xlu0 %v2209, 18
        %v2215 = vpop.permute.xlu0 %2214
        %2216 = vrot.lane.b32.xlu0 %v2210, 18
        %v2217 = vpop.permute.xlu0 %2216
        %2218 = vrot.lane.b32.xlu0 %v2211, 18
        %v2219 = vpop.permute.xlu0 %2218
        %v2220 = vsel %vm689, %v2213, %v2215
        %v2221 = vsel %vm689, %v2215, %v2217
        %v2222 = vsel %vm689, %v2217, %v2219
        %2226 = vst [vmem:[#allocation3 + $0x150] sm:$0xf] %v2220
        %2227 = vst [vmem:[#allocation3 + $0x158] sm:$0xf] %v2221
        %2228 = vst [vmem:[#allocation3 + $0x160] sm:$0xf] %v2222
        %v2229 = vld [vmem:[#allocation2 + $0x28] sm:$0xf0]
        %v2230 = vld [vmem:[#allocation2 + $0x30] sm:$0xf0]
        %v2231 = vld [vmem:[#allocation2 + $0x38] sm:$0xf0]
        %v2232 = vld [vmem:[#allocation2 + $0x40] sm:$0xf0]
        %2237 = vrot.lane.b32.xlu0 %v2229, 17
        %v2238 = vpop.permute.xlu0 %2237
        %2239 = vrot.lane.b32.xlu0 %v2230, 17
        %v2240 = vpop.permute.xlu0 %2239
        %2241 = vrot.lane.b32.xlu0 %v2231, 17
        %v2242 = vpop.permute.xlu0 %2241
        %2243 = vrot.lane.b32.xlu0 %v2232, 17
        %v2244 = vpop.permute.xlu0 %2243
        %v2245 = vsel %vm726, %v2238, %v2240
        %v2246 = vsel %vm726, %v2240, %v2242
        %v2247 = vsel %vm726, %v2242, %v2244
        %2251 = vst [vmem:[#allocation3 + $0x150] sm:$0xf0] %v2245
        %2252 = vst [vmem:[#allocation3 + $0x158] sm:$0xf0] %v2246
        %2253 = vst [vmem:[#allocation3 + $0x160] sm:$0xf0] %v2247
        %v2254 = vld [vmem:[#allocation2 + $0x28] sm:$0xf0]
        %v2255 = vld [vmem:[#allocation2 + $0x30] sm:$0xf0]
        %v2256 = vld [vmem:[#allocation2 + $0x38] sm:$0xf0]
        %v2257 = vld [vmem:[#allocation2 + $0x40] sm:$0xf0]
        %v2262 = vrot.slane %v2254, 4
        %v2263 = vrot.slane %v2255, 4
        %v2264 = vrot.slane %v2256, 4
        %v2265 = vrot.slane %v2257, 4
        %2266 = vrot.lane.b32.xlu0 %v2262, 1
        %v2267 = vpop.permute.xlu0 %2266
        %2268 = vrot.lane.b32.xlu0 %v2263, 1
        %v2269 = vpop.permute.xlu0 %2268
        %2270 = vrot.lane.b32.xlu0 %v2264, 1
        %v2271 = vpop.permute.xlu0 %2270
        %2272 = vrot.lane.b32.xlu0 %v2265, 1
        %v2273 = vpop.permute.xlu0 %2272
        %v2274 = vsel %vm763, %v2267, %v2269
        %v2275 = vsel %vm763, %v2269, %v2271
        %v2276 = vsel %vm763, %v2271, %v2273
        %2280 = vst [vmem:[#allocation3 + $0x168] sm:$0xf] %v2274
        %2281 = vst [vmem:[#allocation3 + $0x170] sm:$0xf] %v2275
        %2282 = vst [vmem:[#allocation3 + $0x178] sm:$0xf] %v2276
        %v2283 = vld [vmem:[#allocation2 + $0x30] sm:$0xf0]
        %v2284 = vld [vmem:[#allocation2 + $0x38] sm:$0xf0]
        %v2285 = vld [vmem:[#allocation2 + $0x40] sm:$0xf0]
        %2286 = vst [vmem:[#allocation3 + $0x168] sm:$0xf0] %v2283
        %2287 = vst [vmem:[#allocation3 + $0x170] sm:$0xf0] %v2284
        %2288 = vst [vmem:[#allocation3 + $0x178] sm:$0xf0] %v2285
        %v2289 = vld [vmem:[#allocation2 + $0x30] sm:$0xf0]
        %v2290 = vld [vmem:[#allocation2 + $0x38] sm:$0xf0]
        %v2291 = vld [vmem:[#allocation2 + $0x40] sm:$0xf0]
        %v2292 = vld [vmem:[#allocation2 + $0x48] sm:$0xf0]
        %v2297 = vrot.slane %v2289, 4
        %v2298 = vrot.slane %v2290, 4
        %v2299 = vrot.slane %v2291, 4
        %v2300 = vrot.slane %v2292, 4
        %2301 = vrot.lane.b32.xlu0 %v2297, 127
        %v2302 = vpop.permute.xlu0 %2301
        %2303 = vrot.lane.b32.xlu0 %v2298, 127
        %v2304 = vpop.permute.xlu0 %2303
        %2305 = vrot.lane.b32.xlu0 %v2299, 127
        %v2306 = vpop.permute.xlu0 %2305
        %2307 = vrot.lane.b32.xlu0 %v2300, 127
        %v2308 = vpop.permute.xlu0 %2307
        %v2309 = vsel %vm824, %v2302, %v2304
        %v2310 = vsel %vm824, %v2304, %v2306
        %v2311 = vsel %vm824, %v2306, %v2308
        %2315 = vst [vmem:[#allocation3 + $0x180] sm:$0xf] %v2309
        %2316 = vst [vmem:[#allocation3 + $0x188] sm:$0xf] %v2310
        %2317 = vst [vmem:[#allocation3 + $0x190] sm:$0xf] %v2311
        %v2318 = vld [vmem:[#allocation2 + $0x30] sm:$0xf0]
        %v2319 = vld [vmem:[#allocation2 + $0x38] sm:$0xf0]
        %v2320 = vld [vmem:[#allocation2 + $0x40] sm:$0xf0]
        %v2321 = vld [vmem:[#allocation2 + $0x48] sm:$0xf0]
        %2326 = vrot.lane.b32.xlu0 %v2318, 111
        %v2327 = vpop.permute.xlu0 %2326
        %2328 = vrot.lane.b32.xlu0 %v2319, 111
        %v2329 = vpop.permute.xlu0 %2328
        %2330 = vrot.lane.b32.xlu0 %v2320, 111
        %v2331 = vpop.permute.xlu0 %2330
        %2332 = vrot.lane.b32.xlu0 %v2321, 111
        %v2333 = vpop.permute.xlu0 %2332
        %v2334 = vsel %vm861, %v2327, %v2329
        %v2335 = vsel %vm861, %v2329, %v2331
        %v2336 = vsel %vm861, %v2331, %v2333
        %2340 = vst [vmem:[#allocation3 + $0x180] sm:$0xf0] %v2334
        %2341 = vst [vmem:[#allocation3 + $0x188] sm:$0xf0] %v2335
        %2342 = vst [vmem:[#allocation3 + $0x190] sm:$0xf0] %v2336
        %v2343 = vld [vmem:[#allocation2 + $0x30] sm:$0xf0]
        %v2344 = vld [vmem:[#allocation2 + $0x38] sm:$0xf0]
        %v2345 = vld [vmem:[#allocation2 + $0x40] sm:$0xf0]
        %v2346 = vld [vmem:[#allocation2 + $0x48] sm:$0xf0]
        %v2351 = vrot.slane %v2343, 4
        %v2352 = vrot.slane %v2344, 4
        %v2353 = vrot.slane %v2345, 4
        %v2354 = vrot.slane %v2346, 4
        %2355 = vrot.lane.b32.xlu0 %v2351, 110
        %v2356 = vpop.permute.xlu0 %2355
        %2357 = vrot.lane.b32.xlu0 %v2352, 110
        %v2358 = vpop.permute.xlu0 %2357
        %2359 = vrot.lane.b32.xlu0 %v2353, 110
        %v2360 = vpop.permute.xlu0 %2359
        %2361 = vrot.lane.b32.xlu0 %v2354, 110
        %v2362 = vpop.permute.xlu0 %2361
        %v2363 = vsel %vm898, %v2356, %v2358
        %v2364 = vsel %vm898, %v2358, %v2360
        %v2365 = vsel %vm898, %v2360, %v2362
        %2369 = vst [vmem:[#allocation3 + $0x198] sm:$0xf] %v2363
        %2370 = vst [vmem:[#allocation3 + $0x1a0] sm:$0xf] %v2364
        %2371 = vst [vmem:[#allocation3 + $0x1a8] sm:$0xf] %v2365
        %v2372 = vld [vmem:[#allocation2 + $0x30] sm:$0xf0]
        %v2373 = vld [vmem:[#allocation2 + $0x38] sm:$0xf0]
        %v2374 = vld [vmem:[#allocation2 + $0x40] sm:$0xf0]
        %v2375 = vld [vmem:[#allocation2 + $0x48] sm:$0xf0]
        %2380 = vrot.lane.b32.xlu0 %v2372, 109
        %v2381 = vpop.permute.xlu0 %2380
        %2382 = vrot.lane.b32.xlu0 %v2373, 109
        %v2383 = vpop.permute.xlu0 %2382
        %2384 = vrot.lane.b32.xlu0 %v2374, 109
        %v2385 = vpop.permute.xlu0 %2384
        %2386 = vrot.lane.b32.xlu0 %v2375, 109
        %v2387 = vpop.permute.xlu0 %2386
        %v2388 = vsel %vm935, %v2381, %v2383
        %v2389 = vsel %vm935, %v2383, %v2385
        %v2390 = vsel %vm935, %v2385, %v2387
        %2394 = vst [vmem:[#allocation3 + $0x198] sm:$0xf0] %v2388
        %2395 = vst [vmem:[#allocation3 + $0x1a0] sm:$0xf0] %v2389
        %2396 = vst [vmem:[#allocation3 + $0x1a8] sm:$0xf0] %v2390
        %v2397 = vld [vmem:[#allocation2 + $0x8] sm:$0xff]
        %v2398 = vld [vmem:[#allocation2 + $0x10] sm:$0xff]
        %v2399 = vld [vmem:[#allocation2 + $0x18] sm:$0xff]
        %v2400 = vld [vmem:[#allocation2 + $0x30] sm:$0xff]
        %v2401 = vld [vmem:[#allocation2 + $0x38] sm:$0xff]
        %v2402 = vld [vmem:[#allocation2 + $0x40] sm:$0xff]
        %v2403 = vld [vmem:[#allocation16] sm:$0xf]
        %v2404 = vld [vmem:[#allocation17] sm:$0xf]
        %v2405 = vunpack.c.l.bf16 %v2404
        %2407 = vset.pattern.permute.xlu0 0
        %2408 = vperm.xlu0 %2407, %v2405
        %v2409 = vpop.permute.xlu0 %2408
        %vm2411 = vcmask 261120
        %v2413 = vsel %vm2411, %v2403, 0
        %2415 = vmatprep.subr.bf16.mxu0 %v2398
        %2416 = vmatpush1.bf16.msra.mxu0 %v2397
        %2417 = vmatprep.subr.bf16.mxu0 %v2401
        %2418 = vmatpush1.bf16.msra.mxu0 %v2400
        %2419 = vmatprep.subr.bf16.mxu0 0
        %2420 = vmatpush1.bf16.msra.mxu0 0
        %2421 = vmatprep.subr.bf16.mxu0 0
        %2422 = vmatpush1.bf16.msra.mxu0 0
        %2423 = vmatprep.subr.bf16.mxu0 0
        %2424 = vmatpush1.bf16.msra.mxu0 0
        %2425 = vmatprep.subr.bf16.mxu0 0
        %2426 = vmatpush1.bf16.msra.mxu0 0
        %2427 = vmatprep.subr.bf16.mxu0 0
        %2428 = vmatpush1.bf16.msra.mxu0 0
        %2429 = vmatprep.subr.bf16.mxu0 0
        %2430 = vmatpush1.bf16.msra.mxu0 0
        %2431 = vmatprep.subr.bf16.mxu0 0
        %2432 = vmatpush1.bf16.msra.mxu0 0
        %2433 = vmatprep.subr.bf16.mxu0 0
        %2434 = vmatpush1.bf16.msra.mxu0 0
        %2435 = vmatprep.subr.bf16.mxu0 0
        %2436 = vmatpush1.bf16.msra.mxu0 0
        %2437 = vmatprep.subr.bf16.mxu0 0
        %2438 = vmatpush1.bf16.msra.mxu0 0
        %2439 = vmatprep.subr.bf16.mxu0 0
        %2440 = vmatpush1.bf16.msra.mxu0 0
        %2441 = vmatprep.subr.bf16.mxu0 0
        %2442 = vmatpush1.bf16.msra.mxu0 0
        %2443 = vmatprep.subr.bf16.mxu0 0
        %2444 = vmatpush1.bf16.msra.mxu0 0
        %2445 = vmatprep.subr.bf16.mxu0 0
        %2446 = vmatpush1.bf16.msra.mxu0 0
        %2447 = vmatprep.mubr.bf16.mxu0 0
        %2448 = vmatmul.mubr.bf16.gmra.mrb[0].mxu0 %v2413
        %v2449 = vpop.f32.mrb[0].mxu0
        %v2450 = vadd.f32 %v2409, %v2449
        %v2451 = vpop.f32.mrb[0].mxu0
        %v2452 = vadd.f32 %v2409, %v2451
        %v2453 = vpop.f32.mrb[0].mxu0
        %v2454 = vpop.f32.mrb[0].mxu0
        %2455 = vdwg.mxu0
        %2456 = vmatprep.subr.bf16.mxu0 0
        %2457 = vmatpush1.bf16.msra.mxu0 %v2399
        %2458 = vmatprep.subr.bf16.mxu0 0
        %2459 = vmatpush1.bf16.msra.mxu0 %v2402
        %2460 = vmatprep.subr.bf16.mxu0 0
        %2461 = vmatpush1.bf16.msra.mxu0 0
        %2462 = vmatprep.subr.bf16.mxu0 0
        %2463 = vmatpush1.bf16.msra.mxu0 0
        %2464 = vmatprep.subr.bf16.mxu0 0
        %2465 = vmatpush1.bf16.msra.mxu0 0
        %2466 = vmatprep.subr.bf16.mxu0 0
        %2467 = vmatpush1.bf16.msra.mxu0 0
        %2468 = vmatprep.subr.bf16.mxu0 0
        %2469 = vmatpush1.bf16.msra.mxu0 0
        %2470 = vmatprep.subr.bf16.mxu0 0
        %2471 = vmatpush1.bf16.msra.mxu0 0
        %2472 = vmatprep.subr.bf16.mxu0 0
        %2473 = vmatpush1.bf16.msra.mxu0 0
        %2474 = vmatprep.subr.bf16.mxu0 0
        %2475 = vmatpush1.bf16.msra.mxu0 0
        %2476 = vmatprep.subr.bf16.mxu0 0
        %2477 = vmatpush1.bf16.msra.mxu0 0
        %2478 = vmatprep.subr.bf16.mxu0 0
        %2479 = vmatpush1.bf16.msra.mxu0 0
        %2480 = vmatprep.subr.bf16.mxu0 0
        %2481 = vmatpush1.bf16.msra.mxu0 0
        %2482 = vmatprep.subr.bf16.mxu0 0
        %2483 = vmatpush1.bf16.msra.mxu0 0
        %2484 = vmatprep.subr.bf16.mxu0 0
        %2485 = vmatpush1.bf16.msra.mxu0 0
        %2486 = vmatprep.subr.bf16.mxu0 0
        %2487 = vmatpush1.bf16.msra.mxu0 0
        %2488 = vmatprep.mubr.bf16.mxu0 0
        %2489 = vmatmul.mubr.bf16.gmra.mrb[0].mxu0 %v2413
        %v2490 = vpop.f32.mrb[0].mxu0
        %v2491 = vadd.f32 %v2409, %v2490
        %v2492 = vpop.f32.mrb[0].mxu0
        %v2493 = vpop.f32.mrb[0].mxu0
        %v2494 = vpop.f32.mrb[0].mxu0
        %2495 = vdwg.mxu0
        %v2496 = vunpack.c.l.bf16 %v2397
        %v2497 = vunpack.c.l.bf16 %v2398
        %v2498 = vunpack.c.l.bf16 %v2399
        %v2499 = vadd.f32 %v2450, %v2496
        %v2500 = vadd.f32 %v2452, %v2497
        %v2501 = vadd.f32 %v2491, %v2498
        %v2502 = vmul.f32 %v2499, %v1061
        %v2503 = vmul.f32 %v2500, %v1065
        %v2504 = vmul.f32 %v2501, %v1069
        %v2505 = vpack.c.bf16 %v2502, %v2502
        %v2506 = vpack.c.bf16 %v2503, %v2503
        %v2507 = vpack.c.bf16 %v2504, %v2504
        %2508 = vst [vmem:[#allocation2 + $0x8] sm:$0xf] %v2505
        %2509 = vst [vmem:[#allocation2 + $0x10] sm:$0xf] %v2506
        %2510 = vst [vmem:[#allocation2 + $0x18] sm:$0xf] %v2507
        %v2511 = vld [vmem:[#allocation2 + $0x8] sm:$0xf]
        %v2512 = vld [vmem:[#allocation2 + $0x10] sm:$0xf]
        %v2513 = vld [vmem:[#allocation2 + $0x18] sm:$0xf]
        %v2514 = vld [vmem:[#allocation19] sm:$0xf]
        %vm2515 = vcmask 64512
        %v2517 = vsel %vm2515, %v2514, 0
        %v2520 = vsel %vm1324, %v2511, 0
        %v2523 = vsel %vm1324, %v2512, 0
        %v2526 = vsel %vm1324, %v2513, 0
        %2528 = vmatprep.subr.bf16.mxu0 %v2523
        %2529 = vmatpush1.bf16.msra.mxu0 %v2520
        %2530 = vmatprep.subr.bf16.mxu0 0
        %2531 = vmatpush1.bf16.msra.mxu0 0
        %2532 = vmatprep.subr.bf16.mxu0 0
        %2533 = vmatpush1.bf16.msra.mxu0 0
        %2534 = vmatprep.subr.bf16.mxu0 0
        %2535 = vmatpush1.bf16.msra.mxu0 0
        %2536 = vmatprep.subr.bf16.mxu0 0
        %2537 = vmatpush1.bf16.msra.mxu0 0
        %2538 = vmatprep.subr.bf16.mxu0 0
        %2539 = vmatpush1.bf16.msra.mxu0 0
        %2540 = vmatprep.subr.bf16.mxu0 0
        %2541 = vmatpush1.bf16.msra.mxu0 0
        %2542 = vmatprep.subr.bf16.mxu0 0
        %2543 = vmatpush1.bf16.msra.mxu0 0
        %2544 = vmatprep.subr.bf16.mxu0 0
        %2545 = vmatpush1.bf16.msra.mxu0 0
        %2546 = vmatprep.subr.bf16.mxu0 0
        %2547 = vmatpush1.bf16.msra.mxu0 0
        %2548 = vmatprep.subr.bf16.mxu0 0
        %2549 = vmatpush1.bf16.msra.mxu0 0
        %2550 = vmatprep.subr.bf16.mxu0 0
        %2551 = vmatpush1.bf16.msra.mxu0 0
        %2552 = vmatprep.subr.bf16.mxu0 0
        %2553 = vmatpush1.bf16.msra.mxu0 0
        %2554 = vmatprep.subr.bf16.mxu0 0
        %2555 = vmatpush1.bf16.msra.mxu0 0
        %2556 = vmatprep.subr.bf16.mxu0 0
        %2557 = vmatpush1.bf16.msra.mxu0 0
        %2558 = vmatprep.subr.bf16.mxu0 0
        %2559 = vmatpush1.bf16.msra.mxu0 0
        %2560 = vmatprep.mubr.bf16.mxu0 0
        %2561 = vmatmul.mubr.bf16.gmra.mrb[0].mxu0 %v2517
        %v2562 = vpop.f32.mrb[0].mxu0
        %v2563 = vadd.f32 0.0, %v2562
        %v2564 = vpop.f32.mrb[0].mxu0
        %v2565 = vadd.f32 0.0, %v2564
        %v2566 = vpop.f32.mrb[0].mxu0
        %v2567 = vpop.f32.mrb[0].mxu0
        %2568 = vdwg.mxu0
        %2569 = vmatprep.subr.bf16.mxu0 0
        %2570 = vmatpush1.bf16.msra.mxu0 %v2526
        %2571 = vmatprep.subr.bf16.mxu0 0
        %2572 = vmatpush1.bf16.msra.mxu0 0
        %2573 = vmatprep.subr.bf16.mxu0 0
        %2574 = vmatpush1.bf16.msra.mxu0 0
        %2575 = vmatprep.subr.bf16.mxu0 0
        %2576 = vmatpush1.bf16.msra.mxu0 0
        %2577 = vmatprep.subr.bf16.mxu0 0
        %2578 = vmatpush1.bf16.msra.mxu0 0
        %2579 = vmatprep.subr.bf16.mxu0 0
        %2580 = vmatpush1.bf16.msra.mxu0 0
        %2581 = vmatprep.subr.bf16.mxu0 0
        %2582 = vmatpush1.bf16.msra.mxu0 0
        %2583 = vmatprep.subr.bf16.mxu0 0
        %2584 = vmatpush1.bf16.msra.mxu0 0
        %2585 = vmatprep.subr.bf16.mxu0 0
        %2586 = vmatpush1.bf16.msra.mxu0 0
        %2587 = vmatprep.subr.bf16.mxu0 0
        %2588 = vmatpush1.bf16.msra.mxu0 0
        %2589 = vmatprep.subr.bf16.mxu0 0
        %2590 = vmatpush1.bf16.msra.mxu0 0
        %2591 = vmatprep.subr.bf16.mxu0 0
        %2592 = vmatpush1.bf16.msra.mxu0 0
        %2593 = vmatprep.subr.bf16.mxu0 0
        %2594 = vmatpush1.bf16.msra.mxu0 0
        %2595 = vmatprep.subr.bf16.mxu0 0
        %2596 = vmatpush1.bf16.msra.mxu0 0
        %2597 = vmatprep.subr.bf16.mxu0 0
        %2598 = vmatpush1.bf16.msra.mxu0 0
        %2599 = vmatprep.subr.bf16.mxu0 0
        %2600 = vmatpush1.bf16.msra.mxu0 0
        %2601 = vmatprep.mubr.bf16.mxu0 0
        %2602 = vmatmul.mubr.bf16.gmra.mrb[0].mxu0 %v2517
        %v2603 = vpop.f32.mrb[0].mxu0
        %v2604 = vadd.f32 0.0, %v2603
        %v2605 = vpop.f32.mrb[0].mxu0
        %v2606 = vpop.f32.mrb[0].mxu0
        %v2607 = vpop.f32.mrb[0].mxu0
        %2608 = vdwg.mxu0
        %2609 = vst [vmem:[#allocation4] sm:$0xff] %v2563
        %2610 = vst [vmem:[#allocation4 + $0x8] sm:$0xff] %v2565
        %2611 = vst [vmem:[#allocation4 + $0x10] sm:$0xff] %v2604
        %v2612 = vld [vmem:[#allocation2] sm:$0xf]
        %v2613 = vld [vmem:[#allocation2 + $0x8] sm:$0xf]
        %v2614 = vld [vmem:[#allocation2 + $0x10] sm:$0xf]
        %v2615 = vld [vmem:[#allocation2 + $0x18] sm:$0xf]
        %2620 = vrot.lane.b32.xlu0 %v2612, 19
        %v2621 = vpop.permute.xlu0 %2620
        %2622 = vrot.lane.b32.xlu0 %v2613, 19
        %v2623 = vpop.permute.xlu0 %2622
        %2624 = vrot.lane.b32.xlu0 %v2614, 19
        %v2625 = vpop.permute.xlu0 %2624
        %2626 = vrot.lane.b32.xlu0 %v2615, 19
        %v2627 = vpop.permute.xlu0 %2626
        %v2628 = vsel %vm652, %v2621, %v2623
        %v2629 = vsel %vm652, %v2623, %v2625
        %v2630 = vsel %vm652, %v2625, %v2627
        %2634 = vst [vmem:[#allocation3] sm:$0xf] %v2628
        %2635 = vst [vmem:[#allocation3 + $0x8] sm:$0xf] %v2629
        %2636 = vst [vmem:[#allocation3 + $0x10] sm:$0xf] %v2630
        %v2637 = vld [vmem:[#allocation2] sm:$0xf]
        %v2638 = vld [vmem:[#allocation2 + $0x8] sm:$0xf]
        %v2639 = vld [vmem:[#allocation2 + $0x10] sm:$0xf]
        %v2640 = vld [vmem:[#allocation2 + $0x18] sm:$0xf]
        %v2645 = vrot.slane %v2637, 4
        %v2646 = vrot.slane %v2638, 4
        %v2647 = vrot.slane %v2639, 4
        %v2648 = vrot.slane %v2640, 4
        %2649 = vrot.lane.b32.xlu0 %v2645, 18
        %v2650 = vpop.permute.xlu0 %2649
        %2651 = vrot.lane.b32.xlu0 %v2646, 18
        %v2652 = vpop.permute.xlu0 %2651
        %2653 = vrot.lane.b32.xlu0 %v2647, 18
        %v2654 = vpop.permute.xlu0 %2653
        %2655 = vrot.lane.b32.xlu0 %v2648, 18
        %v2656 = vpop.permute.xlu0 %2655
        %v2657 = vsel %vm689, %v2650, %v2652
        %v2658 = vsel %vm689, %v2652, %v2654
        %v2659 = vsel %vm689, %v2654, %v2656
        %2663 = vst [vmem:[#allocation3] sm:$0xf0] %v2657
        %2664 = vst [vmem:[#allocation3 + $0x8] sm:$0xf0] %v2658
        %2665 = vst [vmem:[#allocation3 + $0x10] sm:$0xf0] %v2659
        %v2666 = vld [vmem:[#allocation2] sm:$0xf]
        %v2667 = vld [vmem:[#allocation2 + $0x8] sm:$0xf]
        %v2668 = vld [vmem:[#allocation2 + $0x10] sm:$0xf]
        %v2669 = vld [vmem:[#allocation2 + $0x18] sm:$0xf]
        %2674 = vrot.lane.b32.xlu0 %v2666, 17
        %v2675 = vpop.permute.xlu0 %2674
        %2676 = vrot.lane.b32.xlu0 %v2667, 17
        %v2677 = vpop.permute.xlu0 %2676
        %2678 = vrot.lane.b32.xlu0 %v2668, 17
        %v2679 = vpop.permute.xlu0 %2678
        %2680 = vrot.lane.b32.xlu0 %v2669, 17
        %v2681 = vpop.permute.xlu0 %2680
        %v2682 = vsel %vm726, %v2675, %v2677
        %v2683 = vsel %vm726, %v2677, %v2679
        %v2684 = vsel %vm726, %v2679, %v2681
        %2688 = vst [vmem:[#allocation3 + $0x18] sm:$0xf] %v2682
        %2689 = vst [vmem:[#allocation3 + $0x20] sm:$0xf] %v2683
        %2690 = vst [vmem:[#allocation3 + $0x28] sm:$0xf] %v2684
        %v2691 = vld [vmem:[#allocation2] sm:$0xf]
        %v2692 = vld [vmem:[#allocation2 + $0x8] sm:$0xf]
        %v2693 = vld [vmem:[#allocation2 + $0x10] sm:$0xf]
        %v2694 = vld [vmem:[#allocation2 + $0x18] sm:$0xf]
        %v2699 = vrot.slane %v2691, 4
        %v2700 = vrot.slane %v2692, 4
        %v2701 = vrot.slane %v2693, 4
        %v2702 = vrot.slane %v2694, 4
        %2703 = vrot.lane.b32.xlu0 %v2699, 1
        %v2704 = vpop.permute.xlu0 %2703
        %2705 = vrot.lane.b32.xlu0 %v2700, 1
        %v2706 = vpop.permute.xlu0 %2705
        %2707 = vrot.lane.b32.xlu0 %v2701, 1
        %v2708 = vpop.permute.xlu0 %2707
        %2709 = vrot.lane.b32.xlu0 %v2702, 1
        %v2710 = vpop.permute.xlu0 %2709
        %v2711 = vsel %vm763, %v2704, %v2706
        %v2712 = vsel %vm763, %v2706, %v2708
        %v2713 = vsel %vm763, %v2708, %v2710
        %2717 = vst [vmem:[#allocation3 + $0x18] sm:$0xf0] %v2711
        %2718 = vst [vmem:[#allocation3 + $0x20] sm:$0xf0] %v2712
        %2719 = vst [vmem:[#allocation3 + $0x28] sm:$0xf0] %v2713
        %v2720 = vld [vmem:[#allocation2 + $0x8] sm:$0xf]
        %v2721 = vld [vmem:[#allocation2 + $0x10] sm:$0xf]
        %v2722 = vld [vmem:[#allocation2 + $0x18] sm:$0xf]
        %2723 = vst [vmem:[#allocation3 + $0x30] sm:$0xf] %v2720
        %2724 = vst [vmem:[#allocation3 + $0x38] sm:$0xf] %v2721
        %2725 = vst [vmem:[#allocation3 + $0x40] sm:$0xf] %v2722
        %v2726 = vld [vmem:[#allocation2 + $0x8] sm:$0xf]
        %v2727 = vld [vmem:[#allocation2 + $0x10] sm:$0xf]
        %v2728 = vld [vmem:[#allocation2 + $0x18] sm:$0xf]
        %v2729 = vld [vmem:[#allocation2 + $0x20] sm:$0xf]
        %v2734 = vrot.slane %v2726, 4
        %v2735 = vrot.slane %v2727, 4
        %v2736 = vrot.slane %v2728, 4
        %v2737 = vrot.slane %v2729, 4
        %2738 = vrot.lane.b32.xlu0 %v2734, 127
        %v2739 = vpop.permute.xlu0 %2738
        %2740 = vrot.lane.b32.xlu0 %v2735, 127
        %v2741 = vpop.permute.xlu0 %2740
        %2742 = vrot.lane.b32.xlu0 %v2736, 127
        %v2743 = vpop.permute.xlu0 %2742
        %2744 = vrot.lane.b32.xlu0 %v2737, 127
        %v2745 = vpop.permute.xlu0 %2744
        %v2746 = vsel %vm824, %v2739, %v2741
        %v2747 = vsel %vm824, %v2741, %v2743
        %v2748 = vsel %vm824, %v2743, %v2745
        %2752 = vst [vmem:[#allocation3 + $0x30] sm:$0xf0] %v2746
        %2753 = vst [vmem:[#allocation3 + $0x38] sm:$0xf0] %v2747
        %2754 = vst [vmem:[#allocation3 + $0x40] sm:$0xf0] %v2748
        %v2755 = vld [vmem:[#allocation2 + $0x8] sm:$0xf]
        %v2756 = vld [vmem:[#allocation2 + $0x10] sm:$0xf]
        %v2757 = vld [vmem:[#allocation2 + $0x18] sm:$0xf]
        %v2758 = vld [vmem:[#allocation2 + $0x20] sm:$0xf]
        %2763 = vrot.lane.b32.xlu0 %v2755, 111
        %v2764 = vpop.permute.xlu0 %2763
        %2765 = vrot.lane.b32.xlu0 %v2756, 111
        %v2766 = vpop.permute.xlu0 %2765
        %2767 = vrot.lane.b32.xlu0 %v2757, 111
        %v2768 = vpop.permute.xlu0 %2767
        %2769 = vrot.lane.b32.xlu0 %v2758, 111
        %v2770 = vpop.permute.xlu0 %2769
        %v2771 = vsel %vm861, %v2764, %v2766
        %v2772 = vsel %vm861, %v2766, %v2768
        %v2773 = vsel %vm861, %v2768, %v2770
        %2777 = vst [vmem:[#allocation3 + $0x48] sm:$0xf] %v2771
        %2778 = vst [vmem:[#allocation3 + $0x50] sm:$0xf] %v2772
        %2779 = vst [vmem:[#allocation3 + $0x58] sm:$0xf] %v2773
        %v2780 = vld [vmem:[#allocation2 + $0x8] sm:$0xf]
        %v2781 = vld [vmem:[#allocation2 + $0x10] sm:$0xf]
        %v2782 = vld [vmem:[#allocation2 + $0x18] sm:$0xf]
        %v2783 = vld [vmem:[#allocation2 + $0x20] sm:$0xf]
        %v2788 = vrot.slane %v2780, 4
        %v2789 = vrot.slane %v2781, 4
        %v2790 = vrot.slane %v2782, 4
        %v2791 = vrot.slane %v2783, 4
        %2792 = vrot.lane.b32.xlu0 %v2788, 110
        %v2793 = vpop.permute.xlu0 %2792
        %2794 = vrot.lane.b32.xlu0 %v2789, 110
        %v2795 = vpop.permute.xlu0 %2794
        %2796 = vrot.lane.b32.xlu0 %v2790, 110
        %v2797 = vpop.permute.xlu0 %2796
        %2798 = vrot.lane.b32.xlu0 %v2791, 110
        %v2799 = vpop.permute.xlu0 %2798
        %v2800 = vsel %vm898, %v2793, %v2795
        %v2801 = vsel %vm898, %v2795, %v2797
        %v2802 = vsel %vm898, %v2797, %v2799
        %2806 = vst [vmem:[#allocation3 + $0x48] sm:$0xf0] %v2800
        %2807 = vst [vmem:[#allocation3 + $0x50] sm:$0xf0] %v2801
        %2808 = vst [vmem:[#allocation3 + $0x58] sm:$0xf0] %v2802
        %v2809 = vld [vmem:[#allocation2 + $0x8] sm:$0xf]
        %v2810 = vld [vmem:[#allocation2 + $0x10] sm:$0xf]
        %v2811 = vld [vmem:[#allocation2 + $0x18] sm:$0xf]
        %v2812 = vld [vmem:[#allocation2 + $0x20] sm:$0xf]
        %2817 = vrot.lane.b32.xlu0 %v2809, 109
        %v2818 = vpop.permute.xlu0 %2817
        %2819 = vrot.lane.b32.xlu0 %v2810, 109
        %v2820 = vpop.permute.xlu0 %2819
        %2821 = vrot.lane.b32.xlu0 %v2811, 109
        %v2822 = vpop.permute.xlu0 %2821
        %2823 = vrot.lane.b32.xlu0 %v2812, 109
        %v2824 = vpop.permute.xlu0 %2823
        %v2825 = vsel %vm935, %v2818, %v2820
        %v2826 = vsel %vm935, %v2820, %v2822
        %v2827 = vsel %vm935, %v2822, %v2824
        %2831 = vst [vmem:[#allocation3 + $0x60] sm:$0xf] %v2825
        %2832 = vst [vmem:[#allocation3 + $0x68] sm:$0xf] %v2826
        %2833 = vst [vmem:[#allocation3 + $0x70] sm:$0xf] %v2827
        %s2834 = scalar_lea.vmem [#allocation11], 4
        %v2835 = vld [vmem:[%s2834] sm:$0xf]
        %v2836 = vld [vmem:[#allocation3] sm:$0xff]
        %v2837 = vld [vmem:[#allocation3 + $0x8] sm:$0xff]
        %v2838 = vld [vmem:[#allocation3 + $0x10] sm:$0xff]
        %v2839 = vld [vmem:[#allocation3 + $0x18] sm:$0xff]
        %v2840 = vld [vmem:[#allocation3 + $0x20] sm:$0xff]
        %v2841 = vld [vmem:[#allocation3 + $0x28] sm:$0xff]
        %v2842 = vld [vmem:[#allocation3 + $0x30] sm:$0xff]
        %v2843 = vld [vmem:[#allocation3 + $0x38] sm:$0xff]
        %v2844 = vld [vmem:[#allocation3 + $0x40] sm:$0xff]
        %v2845 = vld [vmem:[#allocation3 + $0x48] sm:$0xff]
        %v2846 = vld [vmem:[#allocation3 + $0x50] sm:$0xff]
        %v2847 = vld [vmem:[#allocation3 + $0x58] sm:$0xff]
        %v2848 = vld [vmem:[#allocation3 + $0x60] sm:$0xf]
        %v2849 = vld [vmem:[#allocation3 + $0x68] sm:$0xf]
        %v2850 = vld [vmem:[#allocation3 + $0x70] sm:$0xf]
        %v2852 = vsel %vm1320, %v2835, 0
        %v2855 = vsel %vm1324, %v2848, 0
        %v2858 = vsel %vm1324, %v2849, 0
        %v2861 = vsel %vm1324, %v2850, 0
        %2863 = vmatprep.subr.bf16.mxu0 %v2837
        %2864 = vmatpush1.bf16.msra.mxu0 %v2836
        %2865 = vmatprep.subr.bf16.mxu0 %v2840
        %2866 = vmatpush1.bf16.msra.mxu0 %v2839
        %2867 = vmatprep.subr.bf16.mxu0 %v2843
        %2868 = vmatpush1.bf16.msra.mxu0 %v2842
        %2869 = vmatprep.subr.bf16.mxu0 %v2846
        %2870 = vmatpush1.bf16.msra.mxu0 %v2845
        %2871 = vmatprep.subr.bf16.mxu0 %v2858
        %2872 = vmatpush1.bf16.msra.mxu0 %v2855
        %2873 = vmatprep.subr.bf16.mxu0 0
        %2874 = vmatpush1.bf16.msra.mxu0 0
        %2875 = vmatprep.subr.bf16.mxu0 0
        %2876 = vmatpush1.bf16.msra.mxu0 0
        %2877 = vmatprep.subr.bf16.mxu0 0
        %2878 = vmatpush1.bf16.msra.mxu0 0
        %2879 = vmatprep.subr.bf16.mxu0 0
        %2880 = vmatpush1.bf16.msra.mxu0 0
        %2881 = vmatprep.subr.bf16.mxu0 0
        %2882 = vmatpush1.bf16.msra.mxu0 0
        %2883 = vmatprep.subr.bf16.mxu0 0
        %2884 = vmatpush1.bf16.msra.mxu0 0
        %2885 = vmatprep.subr.bf16.mxu0 0
        %2886 = vmatpush1.bf16.msra.mxu0 0
        %2887 = vmatprep.subr.bf16.mxu0 0
        %2888 = vmatpush1.bf16.msra.mxu0 0
        %2889 = vmatprep.subr.bf16.mxu0 0
        %2890 = vmatpush1.bf16.msra.mxu0 0
        %2891 = vmatprep.subr.bf16.mxu0 0
        %2892 = vmatpush1.bf16.msra.mxu0 0
        %2893 = vmatprep.subr.bf16.mxu0 0
        %2894 = vmatpush1.bf16.msra.mxu0 0
        %2895 = vmatprep.mubr.bf16.mxu0 0
        %2896 = vmatmul.mubr.bf16.gmra.mrb[0].mxu0 %v2852
        %v2897 = vpop.f32.mrb[0].mxu0
        %v2898 = vadd.f32 0.0, %v2897
        %v2899 = vpop.f32.mrb[0].mxu0
        %v2900 = vadd.f32 0.0, %v2899
        %v2901 = vpop.f32.mrb[0].mxu0
        %v2902 = vpop.f32.mrb[0].mxu0
        %2903 = vdwg.mxu0
        %2904 = vmatprep.subr.bf16.mxu0 0
        %2905 = vmatpush1.bf16.msra.mxu0 %v2838
        %2906 = vmatprep.subr.bf16.mxu0 0
        %2907 = vmatpush1.bf16.msra.mxu0 %v2841
        %2908 = vmatprep.subr.bf16.mxu0 0
        %2909 = vmatpush1.bf16.msra.mxu0 %v2844
        %2910 = vmatprep.subr.bf16.mxu0 0
        %2911 = vmatpush1.bf16.msra.mxu0 %v2847
        %2912 = vmatprep.subr.bf16.mxu0 0
        %2913 = vmatpush1.bf16.msra.mxu0 %v2861
        %2914 = vmatprep.subr.bf16.mxu0 0
        %2915 = vmatpush1.bf16.msra.mxu0 0
        %2916 = vmatprep.subr.bf16.mxu0 0
        %2917 = vmatpush1.bf16.msra.mxu0 0
        %2918 = vmatprep.subr.bf16.mxu0 0
        %2919 = vmatpush1.bf16.msra.mxu0 0
        %2920 = vmatprep.subr.bf16.mxu0 0
        %2921 = vmatpush1.bf16.msra.mxu0 0
        %2922 = vmatprep.subr.bf16.mxu0 0
        %2923 = vmatpush1.bf16.msra.mxu0 0
        %2924 = vmatprep.subr.bf16.mxu0 0
        %2925 = vmatpush1.bf16.msra.mxu0 0
        %2926 = vmatprep.subr.bf16.mxu0 0
        %2927 = vmatpush1.bf16.msra.mxu0 0
        %2928 = vmatprep.subr.bf16.mxu0 0
        %2929 = vmatpush1.bf16.msra.mxu0 0
        %2930 = vmatprep.subr.bf16.mxu0 0
        %2931 = vmatpush1.bf16.msra.mxu0 0
        %2932 = vmatprep.subr.bf16.mxu0 0
        %2933 = vmatpush1.bf16.msra.mxu0 0
        %2934 = vmatprep.subr.bf16.mxu0 0
        %2935 = vmatpush1.bf16.msra.mxu0 0
        %2936 = vmatprep.mubr.bf16.mxu0 0
        %2937 = vmatmul.mubr.bf16.gmra.mrb[0].mxu0 %v2852
        %v2938 = vpop.f32.mrb[0].mxu0
        %v2939 = vadd.f32 0.0, %v2938
        %v2940 = vpop.f32.mrb[0].mxu0
        %v2941 = vpop.f32.mrb[0].mxu0
        %v2942 = vpop.f32.mrb[0].mxu0
        %2943 = vdwg.mxu0
        %v2944 = vmax.f32 %v2898, 0.0
        %v2945 = vmax.f32 %v2900, 0.0
        %v2946 = vmax.f32 %v2939, 0.0
        %v2947 = vmul.f32 %v2944, %v1061
        %v2948 = vmul.f32 %v2945, %v1065
        %v2949 = vmul.f32 %v2946, %v1069
        %v2950 = vpack.c.bf16 %v2947, %v2947
        %v2951 = vpack.c.bf16 %v2948, %v2948
        %v2952 = vpack.c.bf16 %v2949, %v2949
        %v2956 = vrot.slane %v2950, 4
        %v2957 = vrot.slane %v2951, 4
        %v2958 = vrot.slane %v2952, 4
        %2962 = vst [vmem:[#allocation2 + $0x8] sm:$0xf0] %v2956
        %2963 = vst [vmem:[#allocation2 + $0x10] sm:$0xf0] %v2957
        %2964 = vst [vmem:[#allocation2 + $0x18] sm:$0xf0] %v2958
        %v2965 = vld [vmem:[#allocation2] sm:$0xf0]
        %v2966 = vld [vmem:[#allocation2 + $0x8] sm:$0xf0]
        %v2967 = vld [vmem:[#allocation2 + $0x10] sm:$0xf0]
        %v2968 = vld [vmem:[#allocation2 + $0x18] sm:$0xf0]
        %2973 = vrot.lane.b32.xlu0 %v2965, 19
        %v2974 = vpop.permute.xlu0 %2973
        %2975 = vrot.lane.b32.xlu0 %v2966, 19
        %v2976 = vpop.permute.xlu0 %2975
        %2977 = vrot.lane.b32.xlu0 %v2967, 19
        %v2978 = vpop.permute.xlu0 %2977
        %2979 = vrot.lane.b32.xlu0 %v2968, 19
        %v2980 = vpop.permute.xlu0 %2979
        %v2981 = vsel %vm652, %v2974, %v2976
        %v2982 = vsel %vm652, %v2976, %v2978
        %v2983 = vsel %vm652, %v2978, %v2980
        %2987 = vst [vmem:[#allocation3 + $0x60] sm:$0xf0] %v2981
        %2988 = vst [vmem:[#allocation3 + $0x68] sm:$0xf0] %v2982
        %2989 = vst [vmem:[#allocation3 + $0x70] sm:$0xf0] %v2983
        %v2990 = vld [vmem:[#allocation2] sm:$0xf0]
        %v2991 = vld [vmem:[#allocation2 + $0x8] sm:$0xf0]
        %v2992 = vld [vmem:[#allocation2 + $0x10] sm:$0xf0]
        %v2993 = vld [vmem:[#allocation2 + $0x18] sm:$0xf0]
        %v2998 = vrot.slane %v2990, 4
        %v2999 = vrot.slane %v2991, 4
        %v3000 = vrot.slane %v2992, 4
        %v3001 = vrot.slane %v2993, 4
        %3002 = vrot.lane.b32.xlu0 %v2998, 18
        %v3003 = vpop.permute.xlu0 %3002
        %3004 = vrot.lane.b32.xlu0 %v2999, 18
        %v3005 = vpop.permute.xlu0 %3004
        %3006 = vrot.lane.b32.xlu0 %v3000, 18
        %v3007 = vpop.permute.xlu0 %3006
        %3008 = vrot.lane.b32.xlu0 %v3001, 18
        %v3009 = vpop.permute.xlu0 %3008
        %v3010 = vsel %vm689, %v3003, %v3005
        %v3011 = vsel %vm689, %v3005, %v3007
        %v3012 = vsel %vm689, %v3007, %v3009
        %3016 = vst [vmem:[#allocation3 + $0x78] sm:$0xf] %v3010
        %3017 = vst [vmem:[#allocation3 + $0x80] sm:$0xf] %v3011
        %3018 = vst [vmem:[#allocation3 + $0x88] sm:$0xf] %v3012
        %v3019 = vld [vmem:[#allocation2] sm:$0xf0]
        %v3020 = vld [vmem:[#allocation2 + $0x8] sm:$0xf0]
        %v3021 = vld [vmem:[#allocation2 + $0x10] sm:$0xf0]
        %v3022 = vld [vmem:[#allocation2 + $0x18] sm:$0xf0]
        %3027 = vrot.lane.b32.xlu0 %v3019, 17
        %v3028 = vpop.permute.xlu0 %3027
        %3029 = vrot.lane.b32.xlu0 %v3020, 17
        %v3030 = vpop.permute.xlu0 %3029
        %3031 = vrot.lane.b32.xlu0 %v3021, 17
        %v3032 = vpop.permute.xlu0 %3031
        %3033 = vrot.lane.b32.xlu0 %v3022, 17
        %v3034 = vpop.permute.xlu0 %3033
        %v3035 = vsel %vm726, %v3028, %v3030
        %v3036 = vsel %vm726, %v3030, %v3032
        %v3037 = vsel %vm726, %v3032, %v3034
        %3041 = vst [vmem:[#allocation3 + $0x78] sm:$0xf0] %v3035
        %3042 = vst [vmem:[#allocation3 + $0x80] sm:$0xf0] %v3036
        %3043 = vst [vmem:[#allocation3 + $0x88] sm:$0xf0] %v3037
        %v3044 = vld [vmem:[#allocation2] sm:$0xf0]
        %v3045 = vld [vmem:[#allocation2 + $0x8] sm:$0xf0]
        %v3046 = vld [vmem:[#allocation2 + $0x10] sm:$0xf0]
        %v3047 = vld [vmem:[#allocation2 + $0x18] sm:$0xf0]
        %v3052 = vrot.slane %v3044, 4
        %v3053 = vrot.slane %v3045, 4
        %v3054 = vrot.slane %v3046, 4
        %v3055 = vrot.slane %v3047, 4
        %3056 = vrot.lane.b32.xlu0 %v3052, 1
        %v3057 = vpop.permute.xlu0 %3056
        %3058 = vrot.lane.b32.xlu0 %v3053, 1
        %v3059 = vpop.permute.xlu0 %3058
        %3060 = vrot.lane.b32.xlu0 %v3054, 1
        %v3061 = vpop.permute.xlu0 %3060
        %3062 = vrot.lane.b32.xlu0 %v3055, 1
        %v3063 = vpop.permute.xlu0 %3062
        %v3064 = vsel %vm763, %v3057, %v3059
        %v3065 = vsel %vm763, %v3059, %v3061
        %v3066 = vsel %vm763, %v3061, %v3063
        %3070 = vst [vmem:[#allocation3 + $0x90] sm:$0xf] %v3064
        %3071 = vst [vmem:[#allocation3 + $0x98] sm:$0xf] %v3065
        %3072 = vst [vmem:[#allocation3 + $0xa0] sm:$0xf] %v3066
        %v3073 = vld [vmem:[#allocation2 + $0x8] sm:$0xf0]
        %v3074 = vld [vmem:[#allocation2 + $0x10] sm:$0xf0]
        %v3075 = vld [vmem:[#allocation2 + $0x18] sm:$0xf0]
        %3076 = vst [vmem:[#allocation3 + $0x90] sm:$0xf0] %v3073
        %3077 = vst [vmem:[#allocation3 + $0x98] sm:$0xf0] %v3074
        %3078 = vst [vmem:[#allocation3 + $0xa0] sm:$0xf0] %v3075
        %v3079 = vld [vmem:[#allocation2 + $0x8] sm:$0xf0]
        %v3080 = vld [vmem:[#allocation2 + $0x10] sm:$0xf0]
        %v3081 = vld [vmem:[#allocation2 + $0x18] sm:$0xf0]
        %v3082 = vld [vmem:[#allocation2 + $0x20] sm:$0xf0]
        %v3087 = vrot.slane %v3079, 4
        %v3088 = vrot.slane %v3080, 4
        %v3089 = vrot.slane %v3081, 4
        %v3090 = vrot.slane %v3082, 4
        %3091 = vrot.lane.b32.xlu0 %v3087, 127
        %v3092 = vpop.permute.xlu0 %3091
        %3093 = vrot.lane.b32.xlu0 %v3088, 127
        %v3094 = vpop.permute.xlu0 %3093
        %3095 = vrot.lane.b32.xlu0 %v3089, 127
        %v3096 = vpop.permute.xlu0 %3095
        %3097 = vrot.lane.b32.xlu0 %v3090, 127
        %v3098 = vpop.permute.xlu0 %3097
        %v3099 = vsel %vm824, %v3092, %v3094
        %v3100 = vsel %vm824, %v3094, %v3096
        %v3101 = vsel %vm824, %v3096, %v3098
        %3105 = vst [vmem:[#allocation3 + $0xa8] sm:$0xf] %v3099
        %3106 = vst [vmem:[#allocation3 + $0xb0] sm:$0xf] %v3100
        %3107 = vst [vmem:[#allocation3 + $0xb8] sm:$0xf] %v3101
        %v3108 = vld [vmem:[#allocation2 + $0x8] sm:$0xf0]
        %v3109 = vld [vmem:[#allocation2 + $0x10] sm:$0xf0]
        %v3110 = vld [vmem:[#allocation2 + $0x18] sm:$0xf0]
        %v3111 = vld [vmem:[#allocation2 + $0x20] sm:$0xf0]
        %3116 = vrot.lane.b32.xlu0 %v3108, 111
        %v3117 = vpop.permute.xlu0 %3116
        %3118 = vrot.lane.b32.xlu0 %v3109, 111
        %v3119 = vpop.permute.xlu0 %3118
        %3120 = vrot.lane.b32.xlu0 %v3110, 111
        %v3121 = vpop.permute.xlu0 %3120
        %3122 = vrot.lane.b32.xlu0 %v3111, 111
        %v3123 = vpop.permute.xlu0 %3122
        %v3124 = vsel %vm861, %v3117, %v3119
        %v3125 = vsel %vm861, %v3119, %v3121
        %v3126 = vsel %vm861, %v3121, %v3123
        %3130 = vst [vmem:[#allocation3 + $0xa8] sm:$0xf0] %v3124
        %3131 = vst [vmem:[#allocation3 + $0xb0] sm:$0xf0] %v3125
        %3132 = vst [vmem:[#allocation3 + $0xb8] sm:$0xf0] %v3126
        %v3133 = vld [vmem:[#allocation2 + $0x8] sm:$0xf0]
        %v3134 = vld [vmem:[#allocation2 + $0x10] sm:$0xf0]
        %v3135 = vld [vmem:[#allocation2 + $0x18] sm:$0xf0]
        %v3136 = vld [vmem:[#allocation2 + $0x20] sm:$0xf0]
        %v3141 = vrot.slane %v3133, 4
        %v3142 = vrot.slane %v3134, 4
        %v3143 = vrot.slane %v3135, 4
        %v3144 = vrot.slane %v3136, 4
        %3145 = vrot.lane.b32.xlu0 %v3141, 110
        %v3146 = vpop.permute.xlu0 %3145
        %3147 = vrot.lane.b32.xlu0 %v3142, 110
        %v3148 = vpop.permute.xlu0 %3147
        %3149 = vrot.lane.b32.xlu0 %v3143, 110
        %v3150 = vpop.permute.xlu0 %3149
        %3151 = vrot.lane.b32.xlu0 %v3144, 110
        %v3152 = vpop.permute.xlu0 %3151
        %v3153 = vsel %vm898, %v3146, %v3148
        %v3154 = vsel %vm898, %v3148, %v3150
        %v3155 = vsel %vm898, %v3150, %v3152
        %3159 = vst [vmem:[#allocation3 + $0xc0] sm:$0xf] %v3153
        %3160 = vst [vmem:[#allocation3 + $0xc8] sm:$0xf] %v3154
        %3161 = vst [vmem:[#allocation3 + $0xd0] sm:$0xf] %v3155
        %v3162 = vld [vmem:[#allocation2 + $0x8] sm:$0xf0]
        %v3163 = vld [vmem:[#allocation2 + $0x10] sm:$0xf0]
        %v3164 = vld [vmem:[#allocation2 + $0x18] sm:$0xf0]
        %v3165 = vld [vmem:[#allocation2 + $0x20] sm:$0xf0]
        %3170 = vrot.lane.b32.xlu0 %v3162, 109
        %v3171 = vpop.permute.xlu0 %3170
        %3172 = vrot.lane.b32.xlu0 %v3163, 109
        %v3173 = vpop.permute.xlu0 %3172
        %3174 = vrot.lane.b32.xlu0 %v3164, 109
        %v3175 = vpop.permute.xlu0 %3174
        %3176 = vrot.lane.b32.xlu0 %v3165, 109
        %v3177 = vpop.permute.xlu0 %3176
        %v3178 = vsel %vm935, %v3171, %v3173
        %v3179 = vsel %vm935, %v3173, %v3175
        %v3180 = vsel %vm935, %v3175, %v3177
        %3184 = vst [vmem:[#allocation3 + $0xc0] sm:$0xf0] %v3178
        %3185 = vst [vmem:[#allocation3 + $0xc8] sm:$0xf0] %v3179
        %3186 = vst [vmem:[#allocation3 + $0xd0] sm:$0xf0] %v3180
        %s3187 = scalar_lea.vmem [#allocation13], 8
        %v3188 = vld [vmem:[%s3187] sm:$0xff]
        %v3189 = vld [vmem:[#allocation3] sm:$0xff]
        %v3190 = vld [vmem:[#allocation3 + $0x8] sm:$0xff]
        %v3191 = vld [vmem:[#allocation3 + $0x10] sm:$0xff]
        %v3192 = vld [vmem:[#allocation3 + $0x18] sm:$0xff]
        %v3193 = vld [vmem:[#allocation3 + $0x20] sm:$0xff]
        %v3194 = vld [vmem:[#allocation3 + $0x28] sm:$0xff]
        %v3195 = vld [vmem:[#allocation3 + $0x30] sm:$0xff]
        %v3196 = vld [vmem:[#allocation3 + $0x38] sm:$0xff]
        %v3197 = vld [vmem:[#allocation3 + $0x40] sm:$0xff]
        %v3198 = vld [vmem:[#allocation3 + $0x48] sm:$0xff]
        %v3199 = vld [vmem:[#allocation3 + $0x50] sm:$0xff]
        %v3200 = vld [vmem:[#allocation3 + $0x58] sm:$0xff]
        %v3201 = vld [vmem:[#allocation3 + $0x60] sm:$0xff]
        %v3202 = vld [vmem:[#allocation3 + $0x68] sm:$0xff]
        %v3203 = vld [vmem:[#allocation3 + $0x70] sm:$0xff]
        %v3204 = vld [vmem:[#allocation3 + $0x78] sm:$0xff]
        %v3205 = vld [vmem:[#allocation3 + $0x80] sm:$0xff]
        %v3206 = vld [vmem:[#allocation3 + $0x88] sm:$0xff]
        %v3207 = vld [vmem:[#allocation3 + $0x90] sm:$0xff]
        %v3208 = vld [vmem:[#allocation3 + $0x98] sm:$0xff]
        %v3209 = vld [vmem:[#allocation3 + $0xa0] sm:$0xff]
        %v3210 = vld [vmem:[#allocation3 + $0xa8] sm:$0xff]
        %v3211 = vld [vmem:[#allocation3 + $0xb0] sm:$0xff]
        %v3212 = vld [vmem:[#allocation3 + $0xb8] sm:$0xff]
        %v3213 = vld [vmem:[#allocation3 + $0xc0] sm:$0xff]
        %v3214 = vld [vmem:[#allocation3 + $0xc8] sm:$0xff]
        %v3215 = vld [vmem:[#allocation3 + $0xd0] sm:$0xff]
        %v3217 = vunpack.c.l.b16 %v3188
        %v3218 = vunpack.c.h.b16 %v3188
        %v3219 = vpack.c.b16 %v3217, %v3217
        %v3220 = vpack.c.b16 %v3218, %v3218
        %v3223 = vsel %vm1692, %v3220, 0
        %3225 = vmatprep.subr.bf16.mxu0 %v3190
        %3226 = vmatpush1.bf16.msra.mxu0 %v3189
        %3227 = vmatprep.subr.bf16.mxu0 %v3193
        %3228 = vmatpush1.bf16.msra.mxu0 %v3192
        %3229 = vmatprep.subr.bf16.mxu0 %v3196
        %3230 = vmatpush1.bf16.msra.mxu0 %v3195
        %3231 = vmatprep.subr.bf16.mxu0 %v3199
        %3232 = vmatpush1.bf16.msra.mxu0 %v3198
        %3233 = vmatprep.subr.bf16.mxu0 %v3202
        %3234 = vmatpush1.bf16.msra.mxu0 %v3201
        %3235 = vmatprep.subr.bf16.mxu0 %v3205
        %3236 = vmatpush1.bf16.msra.mxu0 %v3204
        %3237 = vmatprep.subr.bf16.mxu0 %v3208
        %3238 = vmatpush1.bf16.msra.mxu0 %v3207
        %3239 = vmatprep.subr.bf16.mxu0 %v3211
        %3240 = vmatpush1.bf16.msra.mxu0 %v3210
        %3241 = vmatprep.subr.bf16.mxu0 %v3214
        %3242 = vmatpush1.bf16.msra.mxu0 %v3213
        %3243 = vmatprep.subr.bf16.mxu0 0
        %3244 = vmatpush1.bf16.msra.mxu0 0
        %3245 = vmatprep.subr.bf16.mxu0 0
        %3246 = vmatpush1.bf16.msra.mxu0 0
        %3247 = vmatprep.subr.bf16.mxu0 0
        %3248 = vmatpush1.bf16.msra.mxu0 0
        %3249 = vmatprep.subr.bf16.mxu0 0
        %3250 = vmatpush1.bf16.msra.mxu0 0
        %3251 = vmatprep.subr.bf16.mxu0 0
        %3252 = vmatpush1.bf16.msra.mxu0 0
        %3253 = vmatprep.subr.bf16.mxu0 0
        %3254 = vmatpush1.bf16.msra.mxu0 0
        %3255 = vmatprep.subr.bf16.mxu0 0
        %3256 = vmatpush1.bf16.msra.mxu0 0
        %3257 = vmatprep.mubr.bf16.mxu0 %v3223
        %3258 = vmatmul.mubr.bf16.gmra.mrb[0].mxu0 %v3219
        %v3259 = vpop.f32.mrb[0].mxu0
        %v3260 = vadd.f32 0.0, %v3259
        %v3261 = vpop.f32.mrb[0].mxu0
        %v3262 = vadd.f32 0.0, %v3261
        %v3263 = vpop.f32.mrb[0].mxu0
        %v3264 = vpop.f32.mrb[0].mxu0
        %3265 = vdwg.mxu0
        %3266 = vmatprep.subr.bf16.mxu0 0
        %3267 = vmatpush1.bf16.msra.mxu0 %v3191
        %3268 = vmatprep.subr.bf16.mxu0 0
        %3269 = vmatpush1.bf16.msra.mxu0 %v3194
        %3270 = vmatprep.subr.bf16.mxu0 0
        %3271 = vmatpush1.bf16.msra.mxu0 %v3197
        %3272 = vmatprep.subr.bf16.mxu0 0
        %3273 = vmatpush1.bf16.msra.mxu0 %v3200
        %3274 = vmatprep.subr.bf16.mxu0 0
        %3275 = vmatpush1.bf16.msra.mxu0 %v3203
        %3276 = vmatprep.subr.bf16.mxu0 0
        %3277 = vmatpush1.bf16.msra.mxu0 %v3206
        %3278 = vmatprep.subr.bf16.mxu0 0
        %3279 = vmatpush1.bf16.msra.mxu0 %v3209
        %3280 = vmatprep.subr.bf16.mxu0 0
        %3281 = vmatpush1.bf16.msra.mxu0 %v3212
        %3282 = vmatprep.subr.bf16.mxu0 0
        %3283 = vmatpush1.bf16.msra.mxu0 %v3215
        %3284 = vmatprep.subr.bf16.mxu0 0
        %3285 = vmatpush1.bf16.msra.mxu0 0
        %3286 = vmatprep.subr.bf16.mxu0 0
        %3287 = vmatpush1.bf16.msra.mxu0 0
        %3288 = vmatprep.subr.bf16.mxu0 0
        %3289 = vmatpush1.bf16.msra.mxu0 0
        %3290 = vmatprep.subr.bf16.mxu0 0
        %3291 = vmatpush1.bf16.msra.mxu0 0
        %3292 = vmatprep.subr.bf16.mxu0 0
        %3293 = vmatpush1.bf16.msra.mxu0 0
        %3294 = vmatprep.subr.bf16.mxu0 0
        %3295 = vmatpush1.bf16.msra.mxu0 0
        %3296 = vmatprep.subr.bf16.mxu0 0
        %3297 = vmatpush1.bf16.msra.mxu0 0
        %3298 = vmatprep.mubr.bf16.mxu0 %v3223
        %3299 = vmatmul.mubr.bf16.gmra.mrb[0].mxu0 %v3219
        %v3300 = vpop.f32.mrb[0].mxu0
        %v3301 = vadd.f32 0.0, %v3300
        %v3302 = vpop.f32.mrb[0].mxu0
        %v3303 = vpop.f32.mrb[0].mxu0
        %v3304 = vpop.f32.mrb[0].mxu0
        %3305 = vdwg.mxu0
        %v3306 = vmax.f32 %v3260, 0.0
        %v3307 = vmax.f32 %v3262, 0.0
        %v3308 = vmax.f32 %v3301, 0.0
        %v3309 = vmul.f32 %v3306, %v1061
        %v3310 = vmul.f32 %v3307, %v1065
        %v3311 = vmul.f32 %v3308, %v1069
        %v3312 = vpack.c.bf16 %v3309, %v3309
        %v3313 = vpack.c.bf16 %v3310, %v3310
        %v3314 = vpack.c.bf16 %v3311, %v3311
        %3315 = vst [vmem:[#allocation2 + $0x30] sm:$0xf] %v3312
        %3316 = vst [vmem:[#allocation2 + $0x38] sm:$0xf] %v3313
        %3317 = vst [vmem:[#allocation2 + $0x40] sm:$0xf] %v3314
        %v3318 = vld [vmem:[#allocation2 + $0x28] sm:$0xf]
        %v3319 = vld [vmem:[#allocation2 + $0x30] sm:$0xf]
        %v3320 = vld [vmem:[#allocation2 + $0x38] sm:$0xf]
        %v3321 = vld [vmem:[#allocation2 + $0x40] sm:$0xf]
        %3326 = vrot.lane.b32.xlu0 %v3318, 19
        %v3327 = vpop.permute.xlu0 %3326
        %3328 = vrot.lane.b32.xlu0 %v3319, 19
        %v3329 = vpop.permute.xlu0 %3328
        %3330 = vrot.lane.b32.xlu0 %v3320, 19
        %v3331 = vpop.permute.xlu0 %3330
        %3332 = vrot.lane.b32.xlu0 %v3321, 19
        %v3333 = vpop.permute.xlu0 %3332
        %v3334 = vsel %vm652, %v3327, %v3329
        %v3335 = vsel %vm652, %v3329, %v3331
        %v3336 = vsel %vm652, %v3331, %v3333
        %3340 = vst [vmem:[#allocation3 + $0xd8] sm:$0xf] %v3334
        %3341 = vst [vmem:[#allocation3 + $0xe0] sm:$0xf] %v3335
        %3342 = vst [vmem:[#allocation3 + $0xe8] sm:$0xf] %v3336
        %v3343 = vld [vmem:[#allocation2 + $0x28] sm:$0xf]
        %v3344 = vld [vmem:[#allocation2 + $0x30] sm:$0xf]
        %v3345 = vld [vmem:[#allocation2 + $0x38] sm:$0xf]
        %v3346 = vld [vmem:[#allocation2 + $0x40] sm:$0xf]
        %v3351 = vrot.slane %v3343, 4
        %v3352 = vrot.slane %v3344, 4
        %v3353 = vrot.slane %v3345, 4
        %v3354 = vrot.slane %v3346, 4
        %3355 = vrot.lane.b32.xlu0 %v3351, 18
        %v3356 = vpop.permute.xlu0 %3355
        %3357 = vrot.lane.b32.xlu0 %v3352, 18
        %v3358 = vpop.permute.xlu0 %3357
        %3359 = vrot.lane.b32.xlu0 %v3353, 18
        %v3360 = vpop.permute.xlu0 %3359
        %3361 = vrot.lane.b32.xlu0 %v3354, 18
        %v3362 = vpop.permute.xlu0 %3361
        %v3363 = vsel %vm689, %v3356, %v3358
        %v3364 = vsel %vm689, %v3358, %v3360
        %v3365 = vsel %vm689, %v3360, %v3362
        %3369 = vst [vmem:[#allocation3 + $0xd8] sm:$0xf0] %v3363
        %3370 = vst [vmem:[#allocation3 + $0xe0] sm:$0xf0] %v3364
        %3371 = vst [vmem:[#allocation3 + $0xe8] sm:$0xf0] %v3365
        %v3372 = vld [vmem:[#allocation2 + $0x28] sm:$0xf]
        %v3373 = vld [vmem:[#allocation2 + $0x30] sm:$0xf]
        %v3374 = vld [vmem:[#allocation2 + $0x38] sm:$0xf]
        %v3375 = vld [vmem:[#allocation2 + $0x40] sm:$0xf]
        %3380 = vrot.lane.b32.xlu0 %v3372, 17
        %v3381 = vpop.permute.xlu0 %3380
        %3382 = vrot.lane.b32.xlu0 %v3373, 17
        %v3383 = vpop.permute.xlu0 %3382
        %3384 = vrot.lane.b32.xlu0 %v3374, 17
        %v3385 = vpop.permute.xlu0 %3384
        %3386 = vrot.lane.b32.xlu0 %v3375, 17
        %v3387 = vpop.permute.xlu0 %3386
        %v3388 = vsel %vm726, %v3381, %v3383
        %v3389 = vsel %vm726, %v3383, %v3385
        %v3390 = vsel %vm726, %v3385, %v3387
        %3394 = vst [vmem:[#allocation3 + $0xf0] sm:$0xf] %v3388
        %3395 = vst [vmem:[#allocation3 + $0xf8] sm:$0xf] %v3389
        %3396 = vst [vmem:[#allocation3 + $0x100] sm:$0xf] %v3390
        %v3397 = vld [vmem:[#allocation2 + $0x28] sm:$0xf]
        %v3398 = vld [vmem:[#allocation2 + $0x30] sm:$0xf]
        %v3399 = vld [vmem:[#allocation2 + $0x38] sm:$0xf]
        %v3400 = vld [vmem:[#allocation2 + $0x40] sm:$0xf]
        %v3405 = vrot.slane %v3397, 4
        %v3406 = vrot.slane %v3398, 4
        %v3407 = vrot.slane %v3399, 4
        %v3408 = vrot.slane %v3400, 4
        %3409 = vrot.lane.b32.xlu0 %v3405, 1
        %v3410 = vpop.permute.xlu0 %3409
        %3411 = vrot.lane.b32.xlu0 %v3406, 1
        %v3412 = vpop.permute.xlu0 %3411
        %3413 = vrot.lane.b32.xlu0 %v3407, 1
        %v3414 = vpop.permute.xlu0 %3413
        %3415 = vrot.lane.b32.xlu0 %v3408, 1
        %v3416 = vpop.permute.xlu0 %3415
        %v3417 = vsel %vm763, %v3410, %v3412
        %v3418 = vsel %vm763, %v3412, %v3414
        %v3419 = vsel %vm763, %v3414, %v3416
        %3423 = vst [vmem:[#allocation3 + $0xf0] sm:$0xf0] %v3417
        %3424 = vst [vmem:[#allocation3 + $0xf8] sm:$0xf0] %v3418
        %3425 = vst [vmem:[#allocation3 + $0x100] sm:$0xf0] %v3419
        %v3426 = vld [vmem:[#allocation2 + $0x30] sm:$0xf]
        %v3427 = vld [vmem:[#allocation2 + $0x38] sm:$0xf]
        %v3428 = vld [vmem:[#allocation2 + $0x40] sm:$0xf]
        %3429 = vst [vmem:[#allocation3 + $0x108] sm:$0xf] %v3426
        %3430 = vst [vmem:[#allocation3 + $0x110] sm:$0xf] %v3427
        %3431 = vst [vmem:[#allocation3 + $0x118] sm:$0xf] %v3428
        %v3432 = vld [vmem:[#allocation2 + $0x30] sm:$0xf]
        %v3433 = vld [vmem:[#allocation2 + $0x38] sm:$0xf]
        %v3434 = vld [vmem:[#allocation2 + $0x40] sm:$0xf]
        %v3435 = vld [vmem:[#allocation2 + $0x48] sm:$0xf]
        %v3440 = vrot.slane %v3432, 4
        %v3441 = vrot.slane %v3433, 4
        %v3442 = vrot.slane %v3434, 4
        %v3443 = vrot.slane %v3435, 4
        %3444 = vrot.lane.b32.xlu0 %v3440, 127
        %v3445 = vpop.permute.xlu0 %3444
        %3446 = vrot.lane.b32.xlu0 %v3441, 127
        %v3447 = vpop.permute.xlu0 %3446
        %3448 = vrot.lane.b32.xlu0 %v3442, 127
        %v3449 = vpop.permute.xlu0 %3448
        %3450 = vrot.lane.b32.xlu0 %v3443, 127
        %v3451 = vpop.permute.xlu0 %3450
        %v3452 = vsel %vm824, %v3445, %v3447
        %v3453 = vsel %vm824, %v3447, %v3449
        %v3454 = vsel %vm824, %v3449, %v3451
        %3458 = vst [vmem:[#allocation3 + $0x108] sm:$0xf0] %v3452
        %3459 = vst [vmem:[#allocation3 + $0x110] sm:$0xf0] %v3453
        %3460 = vst [vmem:[#allocation3 + $0x118] sm:$0xf0] %v3454
        %v3461 = vld [vmem:[#allocation2 + $0x30] sm:$0xf]
        %v3462 = vld [vmem:[#allocation2 + $0x38] sm:$0xf]
        %v3463 = vld [vmem:[#allocation2 + $0x40] sm:$0xf]
        %v3464 = vld [vmem:[#allocation2 + $0x48] sm:$0xf]
        %3469 = vrot.lane.b32.xlu0 %v3461, 111
        %v3470 = vpop.permute.xlu0 %3469
        %3471 = vrot.lane.b32.xlu0 %v3462, 111
        %v3472 = vpop.permute.xlu0 %3471
        %3473 = vrot.lane.b32.xlu0 %v3463, 111
        %v3474 = vpop.permute.xlu0 %3473
        %3475 = vrot.lane.b32.xlu0 %v3464, 111
        %v3476 = vpop.permute.xlu0 %3475
        %v3477 = vsel %vm861, %v3470, %v3472
        %v3478 = vsel %vm861, %v3472, %v3474
        %v3479 = vsel %vm861, %v3474, %v3476
        %3483 = vst [vmem:[#allocation3 + $0x120] sm:$0xf] %v3477
        %3484 = vst [vmem:[#allocation3 + $0x128] sm:$0xf] %v3478
        %3485 = vst [vmem:[#allocation3 + $0x130] sm:$0xf] %v3479
        %v3486 = vld [vmem:[#allocation2 + $0x30] sm:$0xf]
        %v3487 = vld [vmem:[#allocation2 + $0x38] sm:$0xf]
        %v3488 = vld [vmem:[#allocation2 + $0x40] sm:$0xf]
        %v3489 = vld [vmem:[#allocation2 + $0x48] sm:$0xf]
        %v3494 = vrot.slane %v3486, 4
        %v3495 = vrot.slane %v3487, 4
        %v3496 = vrot.slane %v3488, 4
        %v3497 = vrot.slane %v3489, 4
        %3498 = vrot.lane.b32.xlu0 %v3494, 110
        %v3499 = vpop.permute.xlu0 %3498
        %3500 = vrot.lane.b32.xlu0 %v3495, 110
        %v3501 = vpop.permute.xlu0 %3500
        %3502 = vrot.lane.b32.xlu0 %v3496, 110
        %v3503 = vpop.permute.xlu0 %3502
        %3504 = vrot.lane.b32.xlu0 %v3497, 110
        %v3505 = vpop.permute.xlu0 %3504
        %v3506 = vsel %vm898, %v3499, %v3501
        %v3507 = vsel %vm898, %v3501, %v3503
        %v3508 = vsel %vm898, %v3503, %v3505
        %3512 = vst [vmem:[#allocation3 + $0x120] sm:$0xf0] %v3506
        %3513 = vst [vmem:[#allocation3 + $0x128] sm:$0xf0] %v3507
        %3514 = vst [vmem:[#allocation3 + $0x130] sm:$0xf0] %v3508
        %v3515 = vld [vmem:[#allocation2 + $0x30] sm:$0xf]
        %v3516 = vld [vmem:[#allocation2 + $0x38] sm:$0xf]
        %v3517 = vld [vmem:[#allocation2 + $0x40] sm:$0xf]
        %v3518 = vld [vmem:[#allocation2 + $0x48] sm:$0xf]
        %3523 = vrot.lane.b32.xlu0 %v3515, 109
        %v3524 = vpop.permute.xlu0 %3523
        %3525 = vrot.lane.b32.xlu0 %v3516, 109
        %v3526 = vpop.permute.xlu0 %3525
        %3527 = vrot.lane.b32.xlu0 %v3517, 109
        %v3528 = vpop.permute.xlu0 %3527
        %3529 = vrot.lane.b32.xlu0 %v3518, 109
        %v3530 = vpop.permute.xlu0 %3529
        %v3531 = vsel %vm935, %v3524, %v3526
        %v3532 = vsel %vm935, %v3526, %v3528
        %v3533 = vsel %vm935, %v3528, %v3530
        %3537 = vst [vmem:[#allocation3 + $0x138] sm:$0xf] %v3531
        %3538 = vst [vmem:[#allocation3 + $0x140] sm:$0xf] %v3532
        %3539 = vst [vmem:[#allocation3 + $0x148] sm:$0xf] %v3533
        %s3540 = scalar_lea.vmem [#allocation14], 8
        %v3541 = vld [vmem:[%s3540] sm:$0xff]
        %v3542 = vld [vmem:[#allocation3] sm:$0xff]
        %v3543 = vld [vmem:[#allocation3 + $0x8] sm:$0xff]
        %v3544 = vld [vmem:[#allocation3 + $0x10] sm:$0xff]
        %v3545 = vld [vmem:[#allocation3 + $0x18] sm:$0xff]
        %v3546 = vld [vmem:[#allocation3 + $0x20] sm:$0xff]
        %v3547 = vld [vmem:[#allocation3 + $0x28] sm:$0xff]
        %v3548 = vld [vmem:[#allocation3 + $0x30] sm:$0xff]
        %v3549 = vld [vmem:[#allocation3 + $0x38] sm:$0xff]
        %v3550 = vld [vmem:[#allocation3 + $0x40] sm:$0xff]
        %v3551 = vld [vmem:[#allocation3 + $0x48] sm:$0xff]
        %v3552 = vld [vmem:[#allocation3 + $0x50] sm:$0xff]
        %v3553 = vld [vmem:[#allocation3 + $0x58] sm:$0xff]
        %v3554 = vld [vmem:[#allocation3 + $0x60] sm:$0xff]
        %v3555 = vld [vmem:[#allocation3 + $0x68] sm:$0xff]
        %v3556 = vld [vmem:[#allocation3 + $0x70] sm:$0xff]
        %v3557 = vld [vmem:[#allocation3 + $0x78] sm:$0xff]
        %v3558 = vld [vmem:[#allocation3 + $0x80] sm:$0xff]
        %v3559 = vld [vmem:[#allocation3 + $0x88] sm:$0xff]
        %v3560 = vld [vmem:[#allocation3 + $0x90] sm:$0xff]
        %v3561 = vld [vmem:[#allocation3 + $0x98] sm:$0xff]
        %v3562 = vld [vmem:[#allocation3 + $0xa0] sm:$0xff]
        %v3563 = vld [vmem:[#allocation3 + $0xa8] sm:$0xff]
        %v3564 = vld [vmem:[#allocation3 + $0xb0] sm:$0xff]
        %v3565 = vld [vmem:[#allocation3 + $0xb8] sm:$0xff]
        %v3566 = vld [vmem:[#allocation3 + $0xc0] sm:$0xff]
        %v3567 = vld [vmem:[#allocation3 + $0xc8] sm:$0xff]
        %v3568 = vld [vmem:[#allocation3 + $0xd0] sm:$0xff]
        %v3569 = vld [vmem:[#allocation3 + $0xd8] sm:$0xff]
        %v3570 = vld [vmem:[#allocation3 + $0xe0] sm:$0xff]
        %v3571 = vld [vmem:[#allocation3 + $0xe8] sm:$0xff]
        %v3572 = vld [vmem:[#allocation3 + $0xf0] sm:$0xff]
        %v3573 = vld [vmem:[#allocation3 + $0xf8] sm:$0xff]
        %v3574 = vld [vmem:[#allocation3 + $0x100] sm:$0xff]
        %v3575 = vld [vmem:[#allocation3 + $0x108] sm:$0xff]
        %v3576 = vld [vmem:[#allocation3 + $0x110] sm:$0xff]
        %v3577 = vld [vmem:[#allocation3 + $0x118] sm:$0xff]
        %v3578 = vld [vmem:[#allocation3 + $0x120] sm:$0xff]
        %v3579 = vld [vmem:[#allocation3 + $0x128] sm:$0xff]
        %v3580 = vld [vmem:[#allocation3 + $0x130] sm:$0xff]
        %v3581 = vld [vmem:[#allocation3 + $0x138] sm:$0xf]
        %v3582 = vld [vmem:[#allocation3 + $0x140] sm:$0xf]
        %v3583 = vld [vmem:[#allocation3 + $0x148] sm:$0xf]
        %v3585 = vunpack.c.l.b16 %v3541
        %v3586 = vunpack.c.h.b16 %v3541
        %v3587 = vpack.c.b16 %v3585, %v3585
        %v3588 = vpack.c.b16 %v3586, %v3586
        %v3591 = vsel %vm2060, %v3588, 0
        %v3594 = vsel %vm1324, %v3581, 0
        %v3597 = vsel %vm1324, %v3582, 0
        %v3600 = vsel %vm1324, %v3583, 0
        %3602 = vmatprep.subr.bf16.mxu0 %v3543
        %3603 = vmatpush1.bf16.msra.mxu0 %v3542
        %3604 = vmatprep.subr.bf16.mxu0 %v3546
        %3605 = vmatpush1.bf16.msra.mxu0 %v3545
        %3606 = vmatprep.subr.bf16.mxu0 %v3549
        %3607 = vmatpush1.bf16.msra.mxu0 %v3548
        %3608 = vmatprep.subr.bf16.mxu0 %v3552
        %3609 = vmatpush1.bf16.msra.mxu0 %v3551
        %3610 = vmatprep.subr.bf16.mxu0 %v3555
        %3611 = vmatpush1.bf16.msra.mxu0 %v3554
        %3612 = vmatprep.subr.bf16.mxu0 %v3558
        %3613 = vmatpush1.bf16.msra.mxu0 %v3557
        %3614 = vmatprep.subr.bf16.mxu0 %v3561
        %3615 = vmatpush1.bf16.msra.mxu0 %v3560
        %3616 = vmatprep.subr.bf16.mxu0 %v3564
        %3617 = vmatpush1.bf16.msra.mxu0 %v3563
        %3618 = vmatprep.subr.bf16.mxu0 %v3567
        %3619 = vmatpush1.bf16.msra.mxu0 %v3566
        %3620 = vmatprep.subr.bf16.mxu0 %v3570
        %3621 = vmatpush1.bf16.msra.mxu0 %v3569
        %3622 = vmatprep.subr.bf16.mxu0 %v3573
        %3623 = vmatpush1.bf16.msra.mxu0 %v3572
        %3624 = vmatprep.subr.bf16.mxu0 %v3576
        %3625 = vmatpush1.bf16.msra.mxu0 %v3575
        %3626 = vmatprep.subr.bf16.mxu0 %v3579
        %3627 = vmatpush1.bf16.msra.mxu0 %v3578
        %3628 = vmatprep.subr.bf16.mxu0 %v3597
        %3629 = vmatpush1.bf16.msra.mxu0 %v3594
        %3630 = vmatprep.subr.bf16.mxu0 0
        %3631 = vmatpush1.bf16.msra.mxu0 0
        %3632 = vmatprep.subr.bf16.mxu0 0
        %3633 = vmatpush1.bf16.msra.mxu0 0
        %3634 = vmatprep.mubr.bf16.mxu0 %v3591
        %3635 = vmatmul.mubr.bf16.gmra.mrb[0].mxu0 %v3587
        %v3636 = vpop.f32.mrb[0].mxu0
        %v3637 = vadd.f32 0.0, %v3636
        %v3638 = vpop.f32.mrb[0].mxu0
        %v3639 = vadd.f32 0.0, %v3638
        %v3640 = vpop.f32.mrb[0].mxu0
        %v3641 = vpop.f32.mrb[0].mxu0
        %3642 = vdwg.mxu0
        %3643 = vmatprep.subr.bf16.mxu0 0
        %3644 = vmatpush1.bf16.msra.mxu0 %v3544
        %3645 = vmatprep.subr.bf16.mxu0 0
        %3646 = vmatpush1.bf16.msra.mxu0 %v3547
        %3647 = vmatprep.subr.bf16.mxu0 0
        %3648 = vmatpush1.bf16.msra.mxu0 %v3550
        %3649 = vmatprep.subr.bf16.mxu0 0
        %3650 = vmatpush1.bf16.msra.mxu0 %v3553
        %3651 = vmatprep.subr.bf16.mxu0 0
        %3652 = vmatpush1.bf16.msra.mxu0 %v3556
        %3653 = vmatprep.subr.bf16.mxu0 0
        %3654 = vmatpush1.bf16.msra.mxu0 %v3559
        %3655 = vmatprep.subr.bf16.mxu0 0
        %3656 = vmatpush1.bf16.msra.mxu0 %v3562
        %3657 = vmatprep.subr.bf16.mxu0 0
        %3658 = vmatpush1.bf16.msra.mxu0 %v3565
        %3659 = vmatprep.subr.bf16.mxu0 0
        %3660 = vmatpush1.bf16.msra.mxu0 %v3568
        %3661 = vmatprep.subr.bf16.mxu0 0
        %3662 = vmatpush1.bf16.msra.mxu0 %v3571
        %3663 = vmatprep.subr.bf16.mxu0 0
        %3664 = vmatpush1.bf16.msra.mxu0 %v3574
        %3665 = vmatprep.subr.bf16.mxu0 0
        %3666 = vmatpush1.bf16.msra.mxu0 %v3577
        %3667 = vmatprep.subr.bf16.mxu0 0
        %3668 = vmatpush1.bf16.msra.mxu0 %v3580
        %3669 = vmatprep.subr.bf16.mxu0 0
        %3670 = vmatpush1.bf16.msra.mxu0 %v3600
        %3671 = vmatprep.subr.bf16.mxu0 0
        %3672 = vmatpush1.bf16.msra.mxu0 0
        %3673 = vmatprep.subr.bf16.mxu0 0
        %3674 = vmatpush1.bf16.msra.mxu0 0
        %3675 = vmatprep.mubr.bf16.mxu0 %v3591
        %3676 = vmatmul.mubr.bf16.gmra.mrb[0].mxu0 %v3587
        %v3677 = vpop.f32.mrb[0].mxu0
        %v3678 = vadd.f32 0.0, %v3677
        %v3679 = vpop.f32.mrb[0].mxu0
        %v3680 = vpop.f32.mrb[0].mxu0
        %v3681 = vpop.f32.mrb[0].mxu0
        %3682 = vdwg.mxu0
        %v3683 = vmax.f32 %v3637, 0.0
        %v3684 = vmax.f32 %v3639, 0.0
        %v3685 = vmax.f32 %v3678, 0.0
        %v3686 = vmul.f32 %v3683, %v1061
        %v3687 = vmul.f32 %v3684, %v1065
        %v3688 = vmul.f32 %v3685, %v1069
        %v3689 = vpack.c.bf16 %v3686, %v3686
        %v3690 = vpack.c.bf16 %v3687, %v3687
        %v3691 = vpack.c.bf16 %v3688, %v3688
        %v3695 = vrot.slane %v3689, 4
        %v3696 = vrot.slane %v3690, 4
        %v3697 = vrot.slane %v3691, 4
        %3701 = vst [vmem:[#allocation2 + $0x30] sm:$0xf0] %v3695
        %3702 = vst [vmem:[#allocation2 + $0x38] sm:$0xf0] %v3696
        %3703 = vst [vmem:[#allocation2 + $0x40] sm:$0xf0] %v3697
        %v3704 = vld [vmem:[#allocation2 + $0x28] sm:$0xf0]
        %v3705 = vld [vmem:[#allocation2 + $0x30] sm:$0xf0]
        %v3706 = vld [vmem:[#allocation2 + $0x38] sm:$0xf0]
        %v3707 = vld [vmem:[#allocation2 + $0x40] sm:$0xf0]
        %3712 = vrot.lane.b32.xlu0 %v3704, 19
        %v3713 = vpop.permute.xlu0 %3712
        %3714 = vrot.lane.b32.xlu0 %v3705, 19
        %v3715 = vpop.permute.xlu0 %3714
        %3716 = vrot.lane.b32.xlu0 %v3706, 19
        %v3717 = vpop.permute.xlu0 %3716
        %3718 = vrot.lane.b32.xlu0 %v3707, 19
        %v3719 = vpop.permute.xlu0 %3718
        %v3720 = vsel %vm652, %v3713, %v3715
        %v3721 = vsel %vm652, %v3715, %v3717
        %v3722 = vsel %vm652, %v3717, %v3719
        %3726 = vst [vmem:[#allocation3 + $0x138] sm:$0xf0] %v3720
        %3727 = vst [vmem:[#allocation3 + $0x140] sm:$0xf0] %v3721
        %3728 = vst [vmem:[#allocation3 + $0x148] sm:$0xf0] %v3722
        %v3729 = vld [vmem:[#allocation2 + $0x28] sm:$0xf0]
        %v3730 = vld [vmem:[#allocation2 + $0x30] sm:$0xf0]
        %v3731 = vld [vmem:[#allocation2 + $0x38] sm:$0xf0]
        %v3732 = vld [vmem:[#allocation2 + $0x40] sm:$0xf0]
        %v3737 = vrot.slane %v3729, 4
        %v3738 = vrot.slane %v3730, 4
        %v3739 = vrot.slane %v3731, 4
        %v3740 = vrot.slane %v3732, 4
        %3741 = vrot.lane.b32.xlu0 %v3737, 18
        %v3742 = vpop.permute.xlu0 %3741
        %3743 = vrot.lane.b32.xlu0 %v3738, 18
        %v3744 = vpop.permute.xlu0 %3743
        %3745 = vrot.lane.b32.xlu0 %v3739, 18
        %v3746 = vpop.permute.xlu0 %3745
        %3747 = vrot.lane.b32.xlu0 %v3740, 18
        %v3748 = vpop.permute.xlu0 %3747
        %v3749 = vsel %vm689, %v3742, %v3744
        %v3750 = vsel %vm689, %v3744, %v3746
        %v3751 = vsel %vm689, %v3746, %v3748
        %3755 = vst [vmem:[#allocation3 + $0x150] sm:$0xf] %v3749
        %3756 = vst [vmem:[#allocation3 + $0x158] sm:$0xf] %v3750
        %3757 = vst [vmem:[#allocation3 + $0x160] sm:$0xf] %v3751
        %v3758 = vld [vmem:[#allocation2 + $0x28] sm:$0xf0]
        %v3759 = vld [vmem:[#allocation2 + $0x30] sm:$0xf0]
        %v3760 = vld [vmem:[#allocation2 + $0x38] sm:$0xf0]
        %v3761 = vld [vmem:[#allocation2 + $0x40] sm:$0xf0]
        %3766 = vrot.lane.b32.xlu0 %v3758, 17
        %v3767 = vpop.permute.xlu0 %3766
        %3768 = vrot.lane.b32.xlu0 %v3759, 17
        %v3769 = vpop.permute.xlu0 %3768
        %3770 = vrot.lane.b32.xlu0 %v3760, 17
        %v3771 = vpop.permute.xlu0 %3770
        %3772 = vrot.lane.b32.xlu0 %v3761, 17
        %v3773 = vpop.permute.xlu0 %3772
        %v3774 = vsel %vm726, %v3767, %v3769
        %v3775 = vsel %vm726, %v3769, %v3771
        %v3776 = vsel %vm726, %v3771, %v3773
        %3780 = vst [vmem:[#allocation3 + $0x150] sm:$0xf0] %v3774
        %3781 = vst [vmem:[#allocation3 + $0x158] sm:$0xf0] %v3775
        %3782 = vst [vmem:[#allocation3 + $0x160] sm:$0xf0] %v3776
        %v3783 = vld [vmem:[#allocation2 + $0x28] sm:$0xf0]
        %v3784 = vld [vmem:[#allocation2 + $0x30] sm:$0xf0]
        %v3785 = vld [vmem:[#allocation2 + $0x38] sm:$0xf0]
        %v3786 = vld [vmem:[#allocation2 + $0x40] sm:$0xf0]
        %v3791 = vrot.slane %v3783, 4
        %v3792 = vrot.slane %v3784, 4
        %v3793 = vrot.slane %v3785, 4
        %v3794 = vrot.slane %v3786, 4
        %3795 = vrot.lane.b32.xlu0 %v3791, 1
        %v3796 = vpop.permute.xlu0 %3795
        %3797 = vrot.lane.b32.xlu0 %v3792, 1
        %v3798 = vpop.permute.xlu0 %3797
        %3799 = vrot.lane.b32.xlu0 %v3793, 1
        %v3800 = vpop.permute.xlu0 %3799
        %3801 = vrot.lane.b32.xlu0 %v3794, 1
        %v3802 = vpop.permute.xlu0 %3801
        %v3803 = vsel %vm763, %v3796, %v3798
        %v3804 = vsel %vm763, %v3798, %v3800
        %v3805 = vsel %vm763, %v3800, %v3802
        %3809 = vst [vmem:[#allocation3 + $0x168] sm:$0xf] %v3803
        %3810 = vst [vmem:[#allocation3 + $0x170] sm:$0xf] %v3804
        %3811 = vst [vmem:[#allocation3 + $0x178] sm:$0xf] %v3805
        %v3812 = vld [vmem:[#allocation2 + $0x30] sm:$0xf0]
        %v3813 = vld [vmem:[#allocation2 + $0x38] sm:$0xf0]
        %v3814 = vld [vmem:[#allocation2 + $0x40] sm:$0xf0]
        %3815 = vst [vmem:[#allocation3 + $0x168] sm:$0xf0] %v3812
        %3816 = vst [vmem:[#allocation3 + $0x170] sm:$0xf0] %v3813
        %3817 = vst [vmem:[#allocation3 + $0x178] sm:$0xf0] %v3814
        %v3818 = vld [vmem:[#allocation2 + $0x30] sm:$0xf0]
        %v3819 = vld [vmem:[#allocation2 + $0x38] sm:$0xf0]
        %v3820 = vld [vmem:[#allocation2 + $0x40] sm:$0xf0]
        %v3821 = vld [vmem:[#allocation2 + $0x48] sm:$0xf0]
        %v3826 = vrot.slane %v3818, 4
        %v3827 = vrot.slane %v3819, 4
        %v3828 = vrot.slane %v3820, 4
        %v3829 = vrot.slane %v3821, 4
        %3830 = vrot.lane.b32.xlu0 %v3826, 127
        %v3831 = vpop.permute.xlu0 %3830
        %3832 = vrot.lane.b32.xlu0 %v3827, 127
        %v3833 = vpop.permute.xlu0 %3832
        %3834 = vrot.lane.b32.xlu0 %v3828, 127
        %v3835 = vpop.permute.xlu0 %3834
        %3836 = vrot.lane.b32.xlu0 %v3829, 127
        %v3837 = vpop.permute.xlu0 %3836
        %v3838 = vsel %vm824, %v3831, %v3833
        %v3839 = vsel %vm824, %v3833, %v3835
        %v3840 = vsel %vm824, %v3835, %v3837
        %3844 = vst [vmem:[#allocation3 + $0x180] sm:$0xf] %v3838
        %3845 = vst [vmem:[#allocation3 + $0x188] sm:$0xf] %v3839
        %3846 = vst [vmem:[#allocation3 + $0x190] sm:$0xf] %v3840
        %v3847 = vld [vmem:[#allocation2 + $0x30] sm:$0xf0]
        %v3848 = vld [vmem:[#allocation2 + $0x38] sm:$0xf0]
        %v3849 = vld [vmem:[#allocation2 + $0x40] sm:$0xf0]
        %v3850 = vld [vmem:[#allocation2 + $0x48] sm:$0xf0]
        %3855 = vrot.lane.b32.xlu0 %v3847, 111
        %v3856 = vpop.permute.xlu0 %3855
        %3857 = vrot.lane.b32.xlu0 %v3848, 111
        %v3858 = vpop.permute.xlu0 %3857
        %3859 = vrot.lane.b32.xlu0 %v3849, 111
        %v3860 = vpop.permute.xlu0 %3859
        %3861 = vrot.lane.b32.xlu0 %v3850, 111
        %v3862 = vpop.permute.xlu0 %3861
        %v3863 = vsel %vm861, %v3856, %v3858
        %v3864 = vsel %vm861, %v3858, %v3860
        %v3865 = vsel %vm861, %v3860, %v3862
        %3869 = vst [vmem:[#allocation3 + $0x180] sm:$0xf0] %v3863
        %3870 = vst [vmem:[#allocation3 + $0x188] sm:$0xf0] %v3864
        %3871 = vst [vmem:[#allocation3 + $0x190] sm:$0xf0] %v3865
        %v3872 = vld [vmem:[#allocation2 + $0x30] sm:$0xf0]
        %v3873 = vld [vmem:[#allocation2 + $0x38] sm:$0xf0]
        %v3874 = vld [vmem:[#allocation2 + $0x40] sm:$0xf0]
        %v3875 = vld [vmem:[#allocation2 + $0x48] sm:$0xf0]
        %v3880 = vrot.slane %v3872, 4
        %v3881 = vrot.slane %v3873, 4
        %v3882 = vrot.slane %v3874, 4
        %v3883 = vrot.slane %v3875, 4
        %3884 = vrot.lane.b32.xlu0 %v3880, 110
        %v3885 = vpop.permute.xlu0 %3884
        %3886 = vrot.lane.b32.xlu0 %v3881, 110
        %v3887 = vpop.permute.xlu0 %3886
        %3888 = vrot.lane.b32.xlu0 %v3882, 110
        %v3889 = vpop.permute.xlu0 %3888
        %3890 = vrot.lane.b32.xlu0 %v3883, 110
        %v3891 = vpop.permute.xlu0 %3890
        %v3892 = vsel %vm898, %v3885, %v3887
        %v3893 = vsel %vm898, %v3887, %v3889
        %v3894 = vsel %vm898, %v3889, %v3891
        %3898 = vst [vmem:[#allocation3 + $0x198] sm:$0xf] %v3892
        %3899 = vst [vmem:[#allocation3 + $0x1a0] sm:$0xf] %v3893
        %3900 = vst [vmem:[#allocation3 + $0x1a8] sm:$0xf] %v3894
        %v3901 = vld [vmem:[#allocation2 + $0x30] sm:$0xf0]
        %v3902 = vld [vmem:[#allocation2 + $0x38] sm:$0xf0]
        %v3903 = vld [vmem:[#allocation2 + $0x40] sm:$0xf0]
        %v3904 = vld [vmem:[#allocation2 + $0x48] sm:$0xf0]
        %3909 = vrot.lane.b32.xlu0 %v3901, 109
        %v3910 = vpop.permute.xlu0 %3909
        %3911 = vrot.lane.b32.xlu0 %v3902, 109
        %v3912 = vpop.permute.xlu0 %3911
        %3913 = vrot.lane.b32.xlu0 %v3903, 109
        %v3914 = vpop.permute.xlu0 %3913
        %3915 = vrot.lane.b32.xlu0 %v3904, 109
        %v3916 = vpop.permute.xlu0 %3915
        %v3917 = vsel %vm935, %v3910, %v3912
        %v3918 = vsel %vm935, %v3912, %v3914
        %v3919 = vsel %vm935, %v3914, %v3916
        %3923 = vst [vmem:[#allocation3 + $0x198] sm:$0xf0] %v3917
        %3924 = vst [vmem:[#allocation3 + $0x1a0] sm:$0xf0] %v3918
        %3925 = vst [vmem:[#allocation3 + $0x1a8] sm:$0xf0] %v3919
        %v3926 = vld [vmem:[#allocation2 + $0x8] sm:$0xff]
        %v3927 = vld [vmem:[#allocation2 + $0x10] sm:$0xff]
        %v3928 = vld [vmem:[#allocation2 + $0x18] sm:$0xff]
        %v3929 = vld [vmem:[#allocation2 + $0x30] sm:$0xff]
        %v3930 = vld [vmem:[#allocation2 + $0x38] sm:$0xff]
        %v3931 = vld [vmem:[#allocation2 + $0x40] sm:$0xff]
        %s3932 = scalar_lea.vmem [#allocation16], 4
        %v3933 = vld [vmem:[%s3932] sm:$0xf]
        %s3934 = scalar_lea.vmem [#allocation17], 4
        %v3935 = vld [vmem:[%s3934] sm:$0xf]
        %v3936 = vunpack.c.l.bf16 %v3935
        %3938 = vset.pattern.permute.xlu0 0
        %3939 = vperm.xlu0 %3938, %v3936
        %v3940 = vpop.permute.xlu0 %3939
        %v3943 = vsel %vm2411, %v3933, 0
        %3945 = vmatprep.subr.bf16.mxu0 %v3927
        %3946 = vmatpush1.bf16.msra.mxu0 %v3926
        %3947 = vmatprep.subr.bf16.mxu0 %v3930
        %3948 = vmatpush1.bf16.msra.mxu0 %v3929
        %3949 = vmatprep.subr.bf16.mxu0 0
        %3950 = vmatpush1.bf16.msra.mxu0 0
        %3951 = vmatprep.subr.bf16.mxu0 0
        %3952 = vmatpush1.bf16.msra.mxu0 0
        %3953 = vmatprep.subr.bf16.mxu0 0
        %3954 = vmatpush1.bf16.msra.mxu0 0
        %3955 = vmatprep.subr.bf16.mxu0 0
        %3956 = vmatpush1.bf16.msra.mxu0 0
        %3957 = vmatprep.subr.bf16.mxu0 0
        %3958 = vmatpush1.bf16.msra.mxu0 0
        %3959 = vmatprep.subr.bf16.mxu0 0
        %3960 = vmatpush1.bf16.msra.mxu0 0
        %3961 = vmatprep.subr.bf16.mxu0 0
        %3962 = vmatpush1.bf16.msra.mxu0 0
        %3963 = vmatprep.subr.bf16.mxu0 0
        %3964 = vmatpush1.bf16.msra.mxu0 0
        %3965 = vmatprep.subr.bf16.mxu0 0
        %3966 = vmatpush1.bf16.msra.mxu0 0
        %3967 = vmatprep.subr.bf16.mxu0 0
        %3968 = vmatpush1.bf16.msra.mxu0 0
        %3969 = vmatprep.subr.bf16.mxu0 0
        %3970 = vmatpush1.bf16.msra.mxu0 0
        %3971 = vmatprep.subr.bf16.mxu0 0
        %3972 = vmatpush1.bf16.msra.mxu0 0
        %3973 = vmatprep.subr.bf16.mxu0 0
        %3974 = vmatpush1.bf16.msra.mxu0 0
        %3975 = vmatprep.subr.bf16.mxu0 0
        %3976 = vmatpush1.bf16.msra.mxu0 0
        %3977 = vmatprep.mubr.bf16.mxu0 0
        %3978 = vmatmul.mubr.bf16.gmra.mrb[0].mxu0 %v3943
        %v3979 = vpop.f32.mrb[0].mxu0
        %v3980 = vadd.f32 %v3940, %v3979
        %v3981 = vpop.f32.mrb[0].mxu0
        %v3982 = vadd.f32 %v3940, %v3981
        %v3983 = vpop.f32.mrb[0].mxu0
        %v3984 = vpop.f32.mrb[0].mxu0
        %3985 = vdwg.mxu0
        %3986 = vmatprep.subr.bf16.mxu0 0
        %3987 = vmatpush1.bf16.msra.mxu0 %v3928
        %3988 = vmatprep.subr.bf16.mxu0 0
        %3989 = vmatpush1.bf16.msra.mxu0 %v3931
        %3990 = vmatprep.subr.bf16.mxu0 0
        %3991 = vmatpush1.bf16.msra.mxu0 0
        %3992 = vmatprep.subr.bf16.mxu0 0
        %3993 = vmatpush1.bf16.msra.mxu0 0
        %3994 = vmatprep.subr.bf16.mxu0 0
        %3995 = vmatpush1.bf16.msra.mxu0 0
        %3996 = vmatprep.subr.bf16.mxu0 0
        %3997 = vmatpush1.bf16.msra.mxu0 0
        %3998 = vmatprep.subr.bf16.mxu0 0
        %3999 = vmatpush1.bf16.msra.mxu0 0
        %4000 = vmatprep.subr.bf16.mxu0 0
        %4001 = vmatpush1.bf16.msra.mxu0 0
        %4002 = vmatprep.subr.bf16.mxu0 0
        %4003 = vmatpush1.bf16.msra.mxu0 0
        %4004 = vmatprep.subr.bf16.mxu0 0
        %4005 = vmatpush1.bf16.msra.mxu0 0
        %4006 = vmatprep.subr.bf16.mxu0 0
        %4007 = vmatpush1.bf16.msra.mxu0 0
        %4008 = vmatprep.subr.bf16.mxu0 0
        %4009 = vmatpush1.bf16.msra.mxu0 0
        %4010 = vmatprep.subr.bf16.mxu0 0
        %4011 = vmatpush1.bf16.msra.mxu0 0
        %4012 = vmatprep.subr.bf16.mxu0 0
        %4013 = vmatpush1.bf16.msra.mxu0 0
        %4014 = vmatprep.subr.bf16.mxu0 0
        %4015 = vmatpush1.bf16.msra.mxu0 0
        %4016 = vmatprep.subr.bf16.mxu0 0
        %4017 = vmatpush1.bf16.msra.mxu0 0
        %4018 = vmatprep.mubr.bf16.mxu0 0
        %4019 = vmatmul.mubr.bf16.gmra.mrb[0].mxu0 %v3943
        %v4020 = vpop.f32.mrb[0].mxu0
        %v4021 = vadd.f32 %v3940, %v4020
        %v4022 = vpop.f32.mrb[0].mxu0
        %v4023 = vpop.f32.mrb[0].mxu0
        %v4024 = vpop.f32.mrb[0].mxu0
        %4025 = vdwg.mxu0
        %v4026 = vunpack.c.l.bf16 %v3926
        %v4027 = vunpack.c.l.bf16 %v3927
        %v4028 = vunpack.c.l.bf16 %v3928
        %v4029 = vadd.f32 %v3980, %v4026
        %v4030 = vadd.f32 %v3982, %v4027
        %v4031 = vadd.f32 %v4021, %v4028
        %v4032 = vmul.f32 %v4029, %v1061
        %v4033 = vmul.f32 %v4030, %v1065
        %v4034 = vmul.f32 %v4031, %v1069
        %v4035 = vpack.c.bf16 %v4032, %v4032
        %v4036 = vpack.c.bf16 %v4033, %v4033
        %v4037 = vpack.c.bf16 %v4034, %v4034
        %4038 = vst [vmem:[#allocation2 + $0x8] sm:$0xf] %v4035
        %4039 = vst [vmem:[#allocation2 + $0x10] sm:$0xf] %v4036
        %4040 = vst [vmem:[#allocation2 + $0x18] sm:$0xf] %v4037
        %v4041 = vld [vmem:[#allocation2 + $0x8] sm:$0xf]
        %v4042 = vld [vmem:[#allocation2 + $0x10] sm:$0xf]
        %v4043 = vld [vmem:[#allocation2 + $0x18] sm:$0xf]
        %s4044 = scalar_lea.vmem [#allocation19], 4
        %v4045 = vld [vmem:[%s4044] sm:$0xf]
        %v4047 = vsel %vm2515, %v4045, 0
        %v4050 = vsel %vm1324, %v4041, 0
        %v4053 = vsel %vm1324, %v4042, 0
        %v4056 = vsel %vm1324, %v4043, 0
        %4058 = vmatprep.subr.bf16.mxu0 %v4053
        %4059 = vmatpush1.bf16.msra.mxu0 %v4050
        %4060 = vmatprep.subr.bf16.mxu0 0
        %4061 = vmatpush1.bf16.msra.mxu0 0
        %4062 = vmatprep.subr.bf16.mxu0 0
        %4063 = vmatpush1.bf16.msra.mxu0 0
        %4064 = vmatprep.subr.bf16.mxu0 0
        %4065 = vmatpush1.bf16.msra.mxu0 0
        %4066 = vmatprep.subr.bf16.mxu0 0
        %4067 = vmatpush1.bf16.msra.mxu0 0
        %4068 = vmatprep.subr.bf16.mxu0 0
        %4069 = vmatpush1.bf16.msra.mxu0 0
        %4070 = vmatprep.subr.bf16.mxu0 0
        %4071 = vmatpush1.bf16.msra.mxu0 0
        %4072 = vmatprep.subr.bf16.mxu0 0
        %4073 = vmatpush1.bf16.msra.mxu0 0
        %4074 = vmatprep.subr.bf16.mxu0 0
        %4075 = vmatpush1.bf16.msra.mxu0 0
        %4076 = vmatprep.subr.bf16.mxu0 0
        %4077 = vmatpush1.bf16.msra.mxu0 0
        %4078 = vmatprep.subr.bf16.mxu0 0
        %4079 = vmatpush1.bf16.msra.mxu0 0
        %4080 = vmatprep.subr.bf16.mxu0 0
        %4081 = vmatpush1.bf16.msra.mxu0 0
        %4082 = vmatprep.subr.bf16.mxu0 0
        %4083 = vmatpush1.bf16.msra.mxu0 0
        %4084 = vmatprep.subr.bf16.mxu0 0
        %4085 = vmatpush1.bf16.msra.mxu0 0
        %4086 = vmatprep.subr.bf16.mxu0 0
        %4087 = vmatpush1.bf16.msra.mxu0 0
        %4088 = vmatprep.subr.bf16.mxu0 0
        %4089 = vmatpush1.bf16.msra.mxu0 0
        %4090 = vmatprep.mubr.bf16.mxu0 0
        %4091 = vmatmul.mubr.bf16.gmra.mrb[0].mxu0 %v4047
        %v4092 = vpop.f32.mrb[0].mxu0
        %v4093 = vadd.f32 0.0, %v4092
        %v4094 = vpop.f32.mrb[0].mxu0
        %v4095 = vadd.f32 0.0, %v4094
        %v4096 = vpop.f32.mrb[0].mxu0
        %v4097 = vpop.f32.mrb[0].mxu0
        %4098 = vdwg.mxu0
        %4099 = vmatprep.subr.bf16.mxu0 0
        %4100 = vmatpush1.bf16.msra.mxu0 %v4056
        %4101 = vmatprep.subr.bf16.mxu0 0
        %4102 = vmatpush1.bf16.msra.mxu0 0
        %4103 = vmatprep.subr.bf16.mxu0 0
        %4104 = vmatpush1.bf16.msra.mxu0 0
        %4105 = vmatprep.subr.bf16.mxu0 0
        %4106 = vmatpush1.bf16.msra.mxu0 0
        %4107 = vmatprep.subr.bf16.mxu0 0
        %4108 = vmatpush1.bf16.msra.mxu0 0
        %4109 = vmatprep.subr.bf16.mxu0 0
        %4110 = vmatpush1.bf16.msra.mxu0 0
        %4111 = vmatprep.subr.bf16.mxu0 0
        %4112 = vmatpush1.bf16.msra.mxu0 0
        %4113 = vmatprep.subr.bf16.mxu0 0
        %4114 = vmatpush1.bf16.msra.mxu0 0
        %4115 = vmatprep.subr.bf16.mxu0 0
        %4116 = vmatpush1.bf16.msra.mxu0 0
        %4117 = vmatprep.subr.bf16.mxu0 0
        %4118 = vmatpush1.bf16.msra.mxu0 0
        %4119 = vmatprep.subr.bf16.mxu0 0
        %4120 = vmatpush1.bf16.msra.mxu0 0
        %4121 = vmatprep.subr.bf16.mxu0 0
        %4122 = vmatpush1.bf16.msra.mxu0 0
        %4123 = vmatprep.subr.bf16.mxu0 0
        %4124 = vmatpush1.bf16.msra.mxu0 0
        %4125 = vmatprep.subr.bf16.mxu0 0
        %4126 = vmatpush1.bf16.msra.mxu0 0
        %4127 = vmatprep.subr.bf16.mxu0 0
        %4128 = vmatpush1.bf16.msra.mxu0 0
        %4129 = vmatprep.subr.bf16.mxu0 0
        %4130 = vmatpush1.bf16.msra.mxu0 0
        %4131 = vmatprep.mubr.bf16.mxu0 0
        %4132 = vmatmul.mubr.bf16.gmra.mrb[0].mxu0 %v4047
        %v4133 = vpop.f32.mrb[0].mxu0
        %v4134 = vadd.f32 0.0, %v4133
        %v4135 = vpop.f32.mrb[0].mxu0
        %v4136 = vpop.f32.mrb[0].mxu0
        %v4137 = vpop.f32.mrb[0].mxu0
        %4138 = vdwg.mxu0
        %v4139 = vld [vmem:[#allocation4] sm:$0xff]
        %v4140 = vld [vmem:[#allocation4 + $0x8] sm:$0xff]
        %v4141 = vld [vmem:[#allocation4 + $0x10] sm:$0xff]
        %v4142 = vadd.f32 %v4139, %v4093
        %v4143 = vadd.f32 %v4140, %v4095
        %v4144 = vadd.f32 %v4141, %v4134
        %4145 = vst [vmem:[#allocation4] sm:$0xff] %v4142
        %4146 = vst [vmem:[#allocation4 + $0x8] sm:$0xff] %v4143
        %4147 = vst [vmem:[#allocation4 + $0x10] sm:$0xff] %v4144
        %v4148 = vld [vmem:[#allocation4] sm:$0xff]
        %v4149 = vld [vmem:[#allocation4 + $0x8] sm:$0xff]
        %v4150 = vld [vmem:[#allocation4 + $0x10] sm:$0xff]
        %v4151 = vld [vmem:[#allocation20] sm:$0xf]
        %v4152 = vunpack.c.l.bf16 %v4151
        %4154 = vset.pattern.permute.xlu0 0
        %4155 = vperm.xlu0 %4154, %v4152
        %v4156 = vpop.permute.xlu0 %4155
        %v4158 = vadd.f32 %v4148, %v4156
        %v4159 = vadd.f32 %v4149, %v4156
        %v4160 = vadd.f32 %v4150, %v4156
        %v4161 = vmul.f32 %v4158, %v1061
        %v4162 = vmul.f32 %v4159, %v1065
        %v4163 = vmul.f32 %v4160, %v1069
        %v4164 = vpack.c.bf16 %v4161, %v4161
        %v4165 = vpack.c.bf16 %v4162, %v4162
        %v4166 = vpack.c.bf16 %v4163, %v4163
        %4167 = vst [vmem:[#allocation2 + $0x8] sm:$0xf] %v4164
        %4168 = vst [vmem:[#allocation2 + $0x10] sm:$0xf] %v4165
        %4169 = vst [vmem:[#allocation2 + $0x18] sm:$0xf] %v4166
        %v4170 = vld [vmem:[#allocation2] sm:$0xf]
        %v4171 = vld [vmem:[#allocation2 + $0x8] sm:$0xf]
        %v4172 = vld [vmem:[#allocation2 + $0x10] sm:$0xf]
        %v4173 = vld [vmem:[#allocation2 + $0x18] sm:$0xf]
        %4178 = vrot.lane.b32.xlu0 %v4170, 19
        %v4179 = vpop.permute.xlu0 %4178
        %4180 = vrot.lane.b32.xlu0 %v4171, 19
        %v4181 = vpop.permute.xlu0 %4180
        %4182 = vrot.lane.b32.xlu0 %v4172, 19
        %v4183 = vpop.permute.xlu0 %4182
        %4184 = vrot.lane.b32.xlu0 %v4173, 19
        %v4185 = vpop.permute.xlu0 %4184
        %v4186 = vsel %vm652, %v4179, %v4181
        %v4187 = vsel %vm652, %v4181, %v4183
        %v4188 = vsel %vm652, %v4183, %v4185
        %4192 = vst [vmem:[#allocation3] sm:$0xf] %v4186
        %4193 = vst [vmem:[#allocation3 + $0x8] sm:$0xf] %v4187
        %4194 = vst [vmem:[#allocation3 + $0x10] sm:$0xf] %v4188
        %v4195 = vld [vmem:[#allocation2] sm:$0xf]
        %v4196 = vld [vmem:[#allocation2 + $0x8] sm:$0xf]
        %v4197 = vld [vmem:[#allocation2 + $0x10] sm:$0xf]
        %v4198 = vld [vmem:[#allocation2 + $0x18] sm:$0xf]
        %v4203 = vrot.slane %v4195, 4
        %v4204 = vrot.slane %v4196, 4
        %v4205 = vrot.slane %v4197, 4
        %v4206 = vrot.slane %v4198, 4
        %4207 = vrot.lane.b32.xlu0 %v4203, 18
        %v4208 = vpop.permute.xlu0 %4207
        %4209 = vrot.lane.b32.xlu0 %v4204, 18
        %v4210 = vpop.permute.xlu0 %4209
        %4211 = vrot.lane.b32.xlu0 %v4205, 18
        %v4212 = vpop.permute.xlu0 %4211
        %4213 = vrot.lane.b32.xlu0 %v4206, 18
        %v4214 = vpop.permute.xlu0 %4213
        %v4215 = vsel %vm689, %v4208, %v4210
        %v4216 = vsel %vm689, %v4210, %v4212
        %v4217 = vsel %vm689, %v4212, %v4214
        %4221 = vst [vmem:[#allocation3] sm:$0xf0] %v4215
        %4222 = vst [vmem:[#allocation3 + $0x8] sm:$0xf0] %v4216
        %4223 = vst [vmem:[#allocation3 + $0x10] sm:$0xf0] %v4217
        %v4224 = vld [vmem:[#allocation2] sm:$0xf]
        %v4225 = vld [vmem:[#allocation2 + $0x8] sm:$0xf]
        %v4226 = vld [vmem:[#allocation2 + $0x10] sm:$0xf]
        %v4227 = vld [vmem:[#allocation2 + $0x18] sm:$0xf]
        %4232 = vrot.lane.b32.xlu0 %v4224, 17
        %v4233 = vpop.permute.xlu0 %4232
        %4234 = vrot.lane.b32.xlu0 %v4225, 17
        %v4235 = vpop.permute.xlu0 %4234
        %4236 = vrot.lane.b32.xlu0 %v4226, 17
        %v4237 = vpop.permute.xlu0 %4236
        %4238 = vrot.lane.b32.xlu0 %v4227, 17
        %v4239 = vpop.permute.xlu0 %4238
        %v4240 = vsel %vm726, %v4233, %v4235
        %v4241 = vsel %vm726, %v4235, %v4237
        %v4242 = vsel %vm726, %v4237, %v4239
        %4246 = vst [vmem:[#allocation3 + $0x18] sm:$0xf] %v4240
        %4247 = vst [vmem:[#allocation3 + $0x20] sm:$0xf] %v4241
        %4248 = vst [vmem:[#allocation3 + $0x28] sm:$0xf] %v4242
        %v4249 = vld [vmem:[#allocation2] sm:$0xf]
        %v4250 = vld [vmem:[#allocation2 + $0x8] sm:$0xf]
        %v4251 = vld [vmem:[#allocation2 + $0x10] sm:$0xf]
        %v4252 = vld [vmem:[#allocation2 + $0x18] sm:$0xf]
        %v4257 = vrot.slane %v4249, 4
        %v4258 = vrot.slane %v4250, 4
        %v4259 = vrot.slane %v4251, 4
        %v4260 = vrot.slane %v4252, 4
        %4261 = vrot.lane.b32.xlu0 %v4257, 1
        %v4262 = vpop.permute.xlu0 %4261
        %4263 = vrot.lane.b32.xlu0 %v4258, 1
        %v4264 = vpop.permute.xlu0 %4263
        %4265 = vrot.lane.b32.xlu0 %v4259, 1
        %v4266 = vpop.permute.xlu0 %4265
        %4267 = vrot.lane.b32.xlu0 %v4260, 1
        %v4268 = vpop.permute.xlu0 %4267
        %v4269 = vsel %vm763, %v4262, %v4264
        %v4270 = vsel %vm763, %v4264, %v4266
        %v4271 = vsel %vm763, %v4266, %v4268
        %4275 = vst [vmem:[#allocation3 + $0x18] sm:$0xf0] %v4269
        %4276 = vst [vmem:[#allocation3 + $0x20] sm:$0xf0] %v4270
        %4277 = vst [vmem:[#allocation3 + $0x28] sm:$0xf0] %v4271
        %v4278 = vld [vmem:[#allocation2 + $0x8] sm:$0xf]
        %v4279 = vld [vmem:[#allocation2 + $0x10] sm:$0xf]
        %v4280 = vld [vmem:[#allocation2 + $0x18] sm:$0xf]
        %4281 = vst [vmem:[#allocation3 + $0x30] sm:$0xf] %v4278
        %4282 = vst [vmem:[#allocation3 + $0x38] sm:$0xf] %v4279
        %4283 = vst [vmem:[#allocation3 + $0x40] sm:$0xf] %v4280
        %v4284 = vld [vmem:[#allocation2 + $0x8] sm:$0xf]
        %v4285 = vld [vmem:[#allocation2 + $0x10] sm:$0xf]
        %v4286 = vld [vmem:[#allocation2 + $0x18] sm:$0xf]
        %v4287 = vld [vmem:[#allocation2 + $0x20] sm:$0xf]
        %v4292 = vrot.slane %v4284, 4
        %v4293 = vrot.slane %v4285, 4
        %v4294 = vrot.slane %v4286, 4
        %v4295 = vrot.slane %v4287, 4
        %4296 = vrot.lane.b32.xlu0 %v4292, 127
        %v4297 = vpop.permute.xlu0 %4296
        %4298 = vrot.lane.b32.xlu0 %v4293, 127
        %v4299 = vpop.permute.xlu0 %4298
        %4300 = vrot.lane.b32.xlu0 %v4294, 127
        %v4301 = vpop.permute.xlu0 %4300
        %4302 = vrot.lane.b32.xlu0 %v4295, 127
        %v4303 = vpop.permute.xlu0 %4302
        %v4304 = vsel %vm824, %v4297, %v4299
        %v4305 = vsel %vm824, %v4299, %v4301
        %v4306 = vsel %vm824, %v4301, %v4303
        %4310 = vst [vmem:[#allocation3 + $0x30] sm:$0xf0] %v4304
        %4311 = vst [vmem:[#allocation3 + $0x38] sm:$0xf0] %v4305
        %4312 = vst [vmem:[#allocation3 + $0x40] sm:$0xf0] %v4306
        %v4313 = vld [vmem:[#allocation2 + $0x8] sm:$0xf]
        %v4314 = vld [vmem:[#allocation2 + $0x10] sm:$0xf]
        %v4315 = vld [vmem:[#allocation2 + $0x18] sm:$0xf]
        %v4316 = vld [vmem:[#allocation2 + $0x20] sm:$0xf]
        %4321 = vrot.lane.b32.xlu0 %v4313, 111
        %v4322 = vpop.permute.xlu0 %4321
        %4323 = vrot.lane.b32.xlu0 %v4314, 111
        %v4324 = vpop.permute.xlu0 %4323
        %4325 = vrot.lane.b32.xlu0 %v4315, 111
        %v4326 = vpop.permute.xlu0 %4325
        %4327 = vrot.lane.b32.xlu0 %v4316, 111
        %v4328 = vpop.permute.xlu0 %4327
        %v4329 = vsel %vm861, %v4322, %v4324
        %v4330 = vsel %vm861, %v4324, %v4326
        %v4331 = vsel %vm861, %v4326, %v4328
        %4335 = vst [vmem:[#allocation3 + $0x48] sm:$0xf] %v4329
        %4336 = vst [vmem:[#allocation3 + $0x50] sm:$0xf] %v4330
        %4337 = vst [vmem:[#allocation3 + $0x58] sm:$0xf] %v4331
        %v4338 = vld [vmem:[#allocation2 + $0x8] sm:$0xf]
        %v4339 = vld [vmem:[#allocation2 + $0x10] sm:$0xf]
        %v4340 = vld [vmem:[#allocation2 + $0x18] sm:$0xf]
        %v4341 = vld [vmem:[#allocation2 + $0x20] sm:$0xf]
        %v4346 = vrot.slane %v4338, 4
        %v4347 = vrot.slane %v4339, 4
        %v4348 = vrot.slane %v4340, 4
        %v4349 = vrot.slane %v4341, 4
        %4350 = vrot.lane.b32.xlu0 %v4346, 110
        %v4351 = vpop.permute.xlu0 %4350
        %4352 = vrot.lane.b32.xlu0 %v4347, 110
        %v4353 = vpop.permute.xlu0 %4352
        %4354 = vrot.lane.b32.xlu0 %v4348, 110
        %v4355 = vpop.permute.xlu0 %4354
        %4356 = vrot.lane.b32.xlu0 %v4349, 110
        %v4357 = vpop.permute.xlu0 %4356
        %v4358 = vsel %vm898, %v4351, %v4353
        %v4359 = vsel %vm898, %v4353, %v4355
        %v4360 = vsel %vm898, %v4355, %v4357
        %4364 = vst [vmem:[#allocation3 + $0x48] sm:$0xf0] %v4358
        %4365 = vst [vmem:[#allocation3 + $0x50] sm:$0xf0] %v4359
        %4366 = vst [vmem:[#allocation3 + $0x58] sm:$0xf0] %v4360
        %v4367 = vld [vmem:[#allocation2 + $0x8] sm:$0xf]
        %v4368 = vld [vmem:[#allocation2 + $0x10] sm:$0xf]
        %v4369 = vld [vmem:[#allocation2 + $0x18] sm:$0xf]
        %v4370 = vld [vmem:[#allocation2 + $0x20] sm:$0xf]
        %4375 = vrot.lane.b32.xlu0 %v4367, 109
        %v4376 = vpop.permute.xlu0 %4375
        %4377 = vrot.lane.b32.xlu0 %v4368, 109
        %v4378 = vpop.permute.xlu0 %4377
        %4379 = vrot.lane.b32.xlu0 %v4369, 109
        %v4380 = vpop.permute.xlu0 %4379
        %4381 = vrot.lane.b32.xlu0 %v4370, 109
        %v4382 = vpop.permute.xlu0 %4381
        %v4383 = vsel %vm935, %v4376, %v4378
        %v4384 = vsel %vm935, %v4378, %v4380
        %v4385 = vsel %vm935, %v4380, %v4382
        %4389 = vst [vmem:[#allocation3 + $0x60] sm:$0xf] %v4383
        %4390 = vst [vmem:[#allocation3 + $0x68] sm:$0xf] %v4384
        %4391 = vst [vmem:[#allocation3 + $0x70] sm:$0xf] %v4385
        %v4392 = vld [vmem:[#allocation22] sm:$0x3]
        %v4393 = vld [vmem:[#allocation3] sm:$0xff]
        %v4394 = vld [vmem:[#allocation3 + $0x8] sm:$0xff]
        %v4395 = vld [vmem:[#allocation3 + $0x10] sm:$0xff]
        %v4396 = vld [vmem:[#allocation3 + $0x18] sm:$0xff]
        %v4397 = vld [vmem:[#allocation3 + $0x20] sm:$0xff]
        %v4398 = vld [vmem:[#allocation3 + $0x28] sm:$0xff]
        %v4399 = vld [vmem:[#allocation3 + $0x30] sm:$0xff]
        %v4400 = vld [vmem:[#allocation3 + $0x38] sm:$0xff]
        %v4401 = vld [vmem:[#allocation3 + $0x40] sm:$0xff]
        %v4402 = vld [vmem:[#allocation3 + $0x48] sm:$0xff]
        %v4403 = vld [vmem:[#allocation3 + $0x50] sm:$0xff]
        %v4404 = vld [vmem:[#allocation3 + $0x58] sm:$0xff]
        %v4405 = vld [vmem:[#allocation3 + $0x60] sm:$0xf]
        %v4406 = vld [vmem:[#allocation3 + $0x68] sm:$0xf]
        %v4407 = vld [vmem:[#allocation3 + $0x70] sm:$0xf]
        %v4408 = vld [vmem:[#allocation23] sm:$0x3]
        %v4409 = vunpack.c.l.bf16 %v4408
        %4411 = vset.pattern.permute.xlu0 0
        %4412 = vperm.xlu0 %4411, %v4409
        %v4413 = vpop.permute.xlu0 %4412
        %v4416 = vunpack.c.l.s4 839922192
        %v4417 = vunpack.c.0.s8 %v4416
        %v4418 = vlaneseq
        %v4419 = vshrl.u32 %v4418, 7
        %v4420 = vsub.s32 %v4417, %v4419
        %v4421 = vrot.slane %v4413, %v4420
        %v4423 = vcombine.high %v4421, %v4421
        %v4426 = vsel %vm1320, %v4392, 0
        %v4429 = vsel %vm1324, %v4405, 0
        %v4432 = vsel %vm1324, %v4406, 0
        %v4435 = vsel %vm1324, %v4407, 0
        %4437 = vmatprep.subr.bf16.mxu0 %v4394
        %4438 = vmatpush1.bf16.msra.mxu0 %v4393
        %4439 = vmatprep.subr.bf16.mxu0 %v4397
        %4440 = vmatpush1.bf16.msra.mxu0 %v4396
        %4441 = vmatprep.subr.bf16.mxu0 %v4400
        %4442 = vmatpush1.bf16.msra.mxu0 %v4399
        %4443 = vmatprep.subr.bf16.mxu0 %v4403
        %4444 = vmatpush1.bf16.msra.mxu0 %v4402
        %4445 = vmatprep.subr.bf16.mxu0 %v4432
        %4446 = vmatpush1.bf16.msra.mxu0 %v4429
        %4447 = vmatprep.subr.bf16.mxu0 0
        %4448 = vmatpush1.bf16.msra.mxu0 0
        %4449 = vmatprep.subr.bf16.mxu0 0
        %4450 = vmatpush1.bf16.msra.mxu0 0
        %4451 = vmatprep.subr.bf16.mxu0 0
        %4452 = vmatpush1.bf16.msra.mxu0 0
        %4453 = vmatprep.subr.bf16.mxu0 0
        %4454 = vmatpush1.bf16.msra.mxu0 0
        %4455 = vmatprep.subr.bf16.mxu0 0
        %4456 = vmatpush1.bf16.msra.mxu0 0
        %4457 = vmatprep.subr.bf16.mxu0 0
        %4458 = vmatpush1.bf16.msra.mxu0 0
        %4459 = vmatprep.subr.bf16.mxu0 0
        %4460 = vmatpush1.bf16.msra.mxu0 0
        %4461 = vmatprep.subr.bf16.mxu0 0
        %4462 = vmatpush1.bf16.msra.mxu0 0
        %4463 = vmatprep.subr.bf16.mxu0 0
        %4464 = vmatpush1.bf16.msra.mxu0 0
        %4465 = vmatprep.subr.bf16.mxu0 0
        %4466 = vmatpush1.bf16.msra.mxu0 0
        %4467 = vmatprep.subr.bf16.mxu0 0
        %4468 = vmatpush1.bf16.msra.mxu0 0
        %4469 = vmatprep.mubr.bf16.mxu0 0
        %4470 = vmatmul.mubr.bf16.gmra.mrb[0].mxu0 %v4426
        %v4471 = vpop.f32.mrb[0].mxu0
        %v4472 = vadd.f32 %v4421, %v4471
        %v4473 = vpop.f32.mrb[0].mxu0
        %v4474 = vadd.f32 %v4423, %v4473
        %v4475 = vpop.f32.mrb[0].mxu0
        %v4476 = vpop.f32.mrb[0].mxu0
        %4477 = vdwg.mxu0
        %4478 = vmatprep.subr.bf16.mxu0 0
        %4479 = vmatpush1.bf16.msra.mxu0 %v4395
        %4480 = vmatprep.subr.bf16.mxu0 0
        %4481 = vmatpush1.bf16.msra.mxu0 %v4398
        %4482 = vmatprep.subr.bf16.mxu0 0
        %4483 = vmatpush1.bf16.msra.mxu0 %v4401
        %4484 = vmatprep.subr.bf16.mxu0 0
        %4485 = vmatpush1.bf16.msra.mxu0 %v4404
        %4486 = vmatprep.subr.bf16.mxu0 0
        %4487 = vmatpush1.bf16.msra.mxu0 %v4435
        %4488 = vmatprep.subr.bf16.mxu0 0
        %4489 = vmatpush1.bf16.msra.mxu0 0
        %4490 = vmatprep.subr.bf16.mxu0 0
        %4491 = vmatpush1.bf16.msra.mxu0 0
        %4492 = vmatprep.subr.bf16.mxu0 0
        %4493 = vmatpush1.bf16.msra.mxu0 0
        %4494 = vmatprep.subr.bf16.mxu0 0
        %4495 = vmatpush1.bf16.msra.mxu0 0
        %4496 = vmatprep.subr.bf16.mxu0 0
        %4497 = vmatpush1.bf16.msra.mxu0 0
        %4498 = vmatprep.subr.bf16.mxu0 0
        %4499 = vmatpush1.bf16.msra.mxu0 0
        %4500 = vmatprep.subr.bf16.mxu0 0
        %4501 = vmatpush1.bf16.msra.mxu0 0
        %4502 = vmatprep.subr.bf16.mxu0 0
        %4503 = vmatpush1.bf16.msra.mxu0 0
        %4504 = vmatprep.subr.bf16.mxu0 0
        %4505 = vmatpush1.bf16.msra.mxu0 0
        %4506 = vmatprep.subr.bf16.mxu0 0
        %4507 = vmatpush1.bf16.msra.mxu0 0
        %4508 = vmatprep.subr.bf16.mxu0 0
        %4509 = vmatpush1.bf16.msra.mxu0 0
        %4510 = vmatprep.mubr.bf16.mxu0 0
        %4511 = vmatmul.mubr.bf16.gmra.mrb[0].mxu0 %v4426
        %v4512 = vpop.f32.mrb[0].mxu0
        %v4513 = vadd.f32 %v4421, %v4512
        %v4514 = vpop.f32.mrb[0].mxu0
        %v4515 = vpop.f32.mrb[0].mxu0
        %v4516 = vpop.f32.mrb[0].mxu0
        %4517 = vdwg.mxu0
        %v4518 = vld [vmem:[%s528 + $0x2] sm:$0x3f]
        %v4519 = vunpack.c.l.bf16 %v4518
        %v4520 = vunpack.c.h.bf16 %v4518
        %v4522 = vcombine.high %v4519, %v4519
        %v4524 = vadd.f32 %v4472, %v4519
        %v4525 = vadd.f32 %v4474, %v4522
        %v4526 = vadd.f32 %v4513, %v4520
        %v4527 = vmul.f32 %v4524, %v1061
        %v4528 = vmul.f32 %v4525, %v1065
        %v4529 = vmul.f32 %v4526, %v1069
        %v4530 = vpack.c.bf16 %v4527, %v4527
        %v4531 = vpack.c.bf16 %v4528, %v4528
        %v4532 = vpack.c.bf16 %v4529, %v4529
        %v4536 = vcombine.low %v4530, %v4531
        %v4538 = vunpack.c.l.s4 1983009808
        %v4539 = vunpack.c.0.s8 %v4538
        %v4540 = vlaneseq
        %v4541 = vshrl.u32 %v4540, 7
        %v4542 = vsub.s32 %v4539, %v4541
        %v4543 = vrot.slane %v4536, %v4542
        %v4545 = vunpack.c.l.s4 1983009808
        %v4546 = vunpack.c.0.s8 %v4545
        %v4547 = vlaneseq
        %v4548 = vshrl.u32 %v4547, 7
        %v4549 = vsub.s32 %v4546, %v4548
        %v4550 = vrot.slane %v4532, %v4549
        %v4551 = vcombine.low %v4543, %v4550
        %4553 = vst [vmem:[%s618] sm:$0x3f] %v4551
        %s4554 = sand.u32 %s322, 1
        %s4555 = scalar_lea.sflag [#allocation7], %s4554
        %s4556 = sand.u32 %s322, 1
        %s4557 = smul.addr %s4556, 6
        %s4558 = scalar_lea.vmem [#allocation26], %s4557
        // Predicated region
        $region125: #{global_residual_forward_pallas.1} parent=71 // pred_check
          %p4559 = pneg %p332
        $region126: #{global_residual_forward_pallas.1} parent=71 // pred_check_branch
          %4561 = sbr.rel (%p4559) target = $region128
        $region127: #{global_residual_forward_pallas.1} parent=71 // pred_region
          %s4563 = ssub.s32 96, 96
          %4564 = vsyncadd %s4555, %s4563
          %s4565 = smul.addr %s36, 3
          %s4566 = smul.addr %s4565, 32
          %s4567 = scalar_lea.hbm %s13, %s4566
          %s4569 = sshll.u32 %s4558, 4
          %s4570 = int_to_ptr.vmem [resolvable:$true] %s4569
          %4572 = dma.vmem_to_hbm [thread:$0]  %s4570, 96, %s4567, %s4555
        $region128: #{global_residual_forward_pallas.1} parent=71 // pred_fallthru
          _
      $region72: #{global_residual_forward_pallas.1} parent=5 // pred_fallthru
        _
      %p4573 = scmp.le.s32.totalorder 2, %s31
      // Predicated region
      $region129: #{global_residual_forward_pallas.1} parent=5 // pred_check
        %p4574 = pneg %p4573
      $region130: #{global_residual_forward_pallas.1} parent=5 // pred_check_branch
        %4576 = sbr.rel (%p4574) target = $region132
      $region131: #{global_residual_forward_pallas.1} parent=5 // pred_region
        %s4577 = ssub.s32 %s31, 2
        // Predicated region
        $region133: #{global_residual_forward_pallas.1} parent=131 // pred_check
          %p4578 = pneg %p338
        $region134: #{global_residual_forward_pallas.1} parent=131 // pred_check_branch
          %4580 = sbr.rel (%p4578) target = $region136
        $region135: #{global_residual_forward_pallas.1} parent=131 // pred_region
          %s4581 = sand.u32 %s323, 1
          %s4582 = scalar_lea.sflag [#allocation7], %s4581
          %s4583 = sand.u32 %s323, 1
          %s4584 = smul.addr %s4583, 6
          %s4585 = scalar_lea.vmem [#allocation26], %s4584
          %4586 = dma.done %s4582, 96
        $region136: #{global_residual_forward_pallas.1} parent=131 // pred_fallthru
          _
      $region132: #{global_residual_forward_pallas.1} parent=5 // pred_fallthru
        _
    $region6: #{global_residual_forward_pallas.1} parent=1 // loop_footer
      %s35 = sadd.s32 1, %s31
    $region7: #{global_residual_forward_pallas.1} parent=1 // loop_footer_branch
      %30 = sbr.rel target = $region3
    $region8: #{global_residual_forward_pallas.1} parent=1 // loop_exit
      _
    %4587 = vsyncpa [#allocation6], 1
    %s4588 = scalar_lea.sflag [#allocation6], 1
    %4589 = vsyncpa %s4588, 1
    %4590 = vsyncpa [#allocation9], 1
    %4591 = vsyncpa [#allocation12], 1
    %4592 = vsyncpa [#allocation15], 1
    %4593 = vsyncpa [#allocation18], 1
    %4594 = vsyncpa [#allocation21], 1
    %4595 = vsyncpa [#allocation24], 1
    %4596 = vsyncpa [#allocation7], 1
    %s4597 = scalar_lea.sflag [#allocation7], 1
    %4598 = vsyncpa %s4597, 1

</llo_original>
